<compile_context>
chip_gen: v6e
topology: v6e:2x2x1
jax: 0.10.0
libtpu: 0.0.40
codegen_flags: <defaults>
</compile_context>

<pallas_src>
import jax
import jax.numpy as jnp
from jax.experimental import pallas as pl
from jax.experimental.pallas import tpu as pltpu

# ----------------------------- config -------------------------------------
VOCAB = 128
HIDDEN = 64
N_HEADS = 4
N_KV_HEADS = 2
HEAD_DIM = HIDDEN // N_HEADS          # 16
INTERMEDIATE = 128
N_LAYERS = 2
SEQ = 8
ROPE_THETA = 10000.0
EPS = 1e-5

Q_SIZE = N_HEADS * HEAD_DIM           # 64
KV_SIZE = N_KV_HEADS * HEAD_DIM       # 32
GROUP = N_HEADS // N_KV_HEADS         # 2
SCALE = HEAD_DIM ** -0.5
GELU_C = 0.7978845608028654           # sqrt(2/pi)


# --------------------------- in-kernel helpers ------------------------------
def _layernorm(x, g, b):
    mean = jnp.mean(x, axis=-1, keepdims=True)
    xc = x - mean
    var = jnp.mean(xc * xc, axis=-1, keepdims=True)
    return xc * jax.lax.rsqrt(var + EPS) * g + b


def _gelu_tanh(x):  # gelu_pytorch_tanh (Starcoder2 hidden_act)
    return 0.5 * x * (1.0 + jnp.tanh(GELU_C * (x + 0.044715 * x * x * x)))


# --------------------------- fused model kernel -----------------------------
def _model_kernel(ids_ref, embed_ref,
                  ln1_g_ref, ln1_b_ref, ln2_g_ref, ln2_b_ref,
                  wqkv_ref, bqkv_ref, wo_ref, bo_ref,
                  wfc_ref, bfc_ref, wproj_ref, bproj_ref,
                  normf_g_ref, normf_b_ref,
                  cos_q_ref, sin_q_ref, cos_k_ref, sin_k_ref,
                  rot_q_ref, rot_k_ref,
                  out_ref):
    T = out_ref.shape[0]

    # ---- token embedding: one_hot(ids, V) @ table on the MXU (single step) ----
    ids = ids_ref[...]                                              # (T, 1) int32
    col = jax.lax.broadcasted_iota(jnp.int32, (T, VOCAB), 1)
    onehot = (col == ids).astype(jnp.float32)
    h = jnp.dot(onehot, embed_ref[...], preferred_element_type=jnp.float32)

    # rope tables / rotate-half matrices (loaded once, reused by both layers)
    cos_q = cos_q_ref[...]
    sin_q = sin_q_ref[...]
    cos_k = cos_k_ref[...]
    sin_k = sin_k_ref[...]
    rot_q = rot_q_ref[...]
    rot_k = rot_k_ref[...]

    # causal mask (positions are contiguous arange for this prefill)
    row = jax.lax.broadcasted_iota(jnp.int32, (T, T), 0)
    colm = jax.lax.broadcasted_iota(jnp.int32, (T, T), 1)
    causal = row >= colm

    for l in range(N_LAYERS):                       # static unroll
        # ===================== self-attention block ========================
        x = _layernorm(h, ln1_g_ref[l], ln1_b_ref[l])
        qkv = jnp.dot(x.astype(jnp.bfloat16), wqkv_ref[l],
                      preferred_element_type=jnp.float32) + bqkv_ref[l]
        q = qkv[:, :Q_SIZE]
        k = qkv[:, Q_SIZE:Q_SIZE + KV_SIZE]
        v = qkv[:, Q_SIZE + KV_SIZE:]

        # neox RoPE on all heads at once:  x*cos + (x @ R)*sin   (R is block-diag)
        q = q * cos_q + jnp.dot(q, rot_q, preferred_element_type=jnp.float32) * sin_q
        k = k * cos_k + jnp.dot(k, rot_k, preferred_element_type=jnp.float32) * sin_k

        wo_l = wo_ref[l]                                            # (Q, H) bf16
        acc = jnp.zeros((T, HIDDEN), jnp.float32)                   # lane-dense accum
        for hh in range(N_HEADS):
            kv = hh // GROUP                                        # GQA mapping
            qh = q[:, hh * HEAD_DIM:(hh + 1) * HEAD_DIM].astype(jnp.bfloat16)
            kh = k[:, kv * HEAD_DIM:(kv + 1) * HEAD_DIM].astype(jnp.bfloat16)
            vh = v[:, kv * HEAD_DIM:(kv + 1) * HEAD_DIM].astype(jnp.bfloat16)

            s = jax.lax.dot_general(qh, kh, (((1,), (1,)), ((), ())),
                                    preferred_element_type=jnp.float32) * SCALE
            s = jnp.where(causal, s, -jnp.inf)
            m = jnp.max(s, axis=-1, keepdims=True)
            p = jnp.exp(s - m)
            lsum = jnp.sum(p, axis=-1, keepdims=True)
            ah = jnp.dot(p.astype(jnp.bfloat16), vh,
                         preferred_element_type=jnp.float32)
            ah = ah * pl.reciprocal(lsum, approx=True)

            # fused o_proj partial sum: attn_h @ Wo[h*d:(h+1)*d, :]
            acc = acc + jnp.dot(ah.astype(jnp.bfloat16),
                                wo_l[hh * HEAD_DIM:(hh + 1) * HEAD_DIM, :],
                                preferred_element_type=jnp.float32)
        h = h + acc + bo_ref[l]                                     # fused residual

        # ============================ MLP block =============================
        x = _layernorm(h, ln2_g_ref[l], ln2_b_ref[l])
        u = jnp.dot(x.astype(jnp.bfloat16), wfc_ref[l],
                    preferred_element_type=jnp.float32) + bfc_ref[l]
        u = _gelu_tanh(u)
        mlp = jnp.dot(u.astype(jnp.bfloat16), wproj_ref[l],
                      preferred_element_type=jnp.float32) + bproj_ref[l]
        h = h + mlp                                                 # fused residual

    out_ref[...] = _layernorm(h, normf_g_ref[...], normf_b_ref[...]).astype(out_ref.dtype)


# ----------------------------- parameters ----------------------------------
def init_params(key):
    def dense(key, fan_in, fan_out):
        k1, k2 = jax.random.split(key)
        w = 0.02 * jax.random.normal(k1, (fan_in, fan_out), jnp.float32)
        b = 0.02 * jax.random.normal(k2, (fan_out,), jnp.float32)
        return w, b

    keys = jax.random.split(key, N_LAYERS + 1)
    embed = 0.02 * jax.random.normal(keys[0], (VOCAB, HIDDEN), jnp.float32)

    wqkv, bqkv, wo, bo, wfc, bfc, wproj, bproj = ([] for _ in range(8))
    for li in range(N_LAYERS):
        lk = jax.random.split(keys[li + 1], 4)
        w, b = dense(lk[0], HIDDEN, Q_SIZE + 2 * KV_SIZE); wqkv.append(w); bqkv.append(b)
        w, b = dense(lk[1], Q_SIZE, HIDDEN);               wo.append(w);   bo.append(b)
        w, b = dense(lk[2], HIDDEN, INTERMEDIATE);         wfc.append(w);  bfc.append(b)
        w, b = dense(lk[3], INTERMEDIATE, HIDDEN);         wproj.append(w); bproj.append(b)

    stack = lambda xs: jnp.stack(xs, axis=0)
    return dict(
        embed=embed,                                               # f32 (exact gather)
        ln1_g=jnp.ones((N_LAYERS, 1, HIDDEN), jnp.float32),
        ln1_b=jnp.zeros((N_LAYERS, 1, HIDDEN), jnp.float32),
        ln2_g=jnp.ones((N_LAYERS, 1, HIDDEN), jnp.float32),
        ln2_b=jnp.zeros((N_LAYERS, 1, HIDDEN), jnp.float32),
        wqkv=stack(wqkv).astype(jnp.bfloat16), bqkv=stack(bqkv)[:, None, :],
        wo=stack(wo).astype(jnp.bfloat16),     bo=stack(bo)[:, None, :],
        wfc=stack(wfc).astype(jnp.bfloat16),   bfc=stack(bfc)[:, None, :],
        wproj=stack(wproj).astype(jnp.bfloat16), bproj=stack(bproj)[:, None, :],
        norm_g=jnp.ones((1, HIDDEN), jnp.float32),
        norm_b=jnp.zeros((1, HIDDEN), jnp.float32),
    )


# -------------------- RoPE glue (computed once, outside kernel) -------------
def rope_tables(positions, head_dim, theta):
    inv_freq = 1.0 / (theta ** (jnp.arange(0, head_dim, 2, dtype=jnp.float32) / head_dim))
    freqs = positions.astype(jnp.float32)[:, None] * inv_freq[None, :]   # (T, d//2)
    return jnp.cos(freqs), jnp.sin(freqs)


def _rotate_half_matrix(d):
    # R such that (x @ R) == concat([-x2, x1]) for x = [x1, x2]
    half = d // 2
    idx = jnp.arange(half)
    m = jnp.zeros((d, d), jnp.float32)
    m = m.at[idx + half, idx].set(-1.0)
    m = m.at[idx, idx + half].set(1.0)
    return m


# ------------------------------- forward -----------------------------------
def starcoder2_forward(params, input_ids, positions):
    T = input_ids.shape[0]
    cos_h, sin_h = rope_tables(positions, HEAD_DIM, ROPE_THETA)      # (T, d//2)
    cos_full = jnp.concatenate([cos_h, cos_h], axis=-1)              # (T, d)
    sin_full = jnp.concatenate([sin_h, sin_h], axis=-1)
    cos_q = jnp.tile(cos_full, (1, N_HEADS))                         # (T, Q)
    sin_q = jnp.tile(sin_full, (1, N_HEADS))
    cos_k = jnp.tile(cos_full, (1, N_KV_HEADS))                      # (T, KV)
    sin_k = jnp.tile(sin_full, (1, N_KV_HEADS))
    rot_head = _rotate_half_matrix(HEAD_DIM)
    rot_q = jnp.kron(jnp.eye(N_HEADS, dtype=jnp.float32), rot_head)      # (Q, Q)
    rot_k = jnp.kron(jnp.eye(N_KV_HEADS, dtype=jnp.float32), rot_head)   # (KV, KV)

    ids2d = input_ids.astype(jnp.int32).reshape(T, 1)

    vmem = pl.BlockSpec(memory_space=pltpu.MemorySpace.VMEM)
    return pl.pallas_call(
        _model_kernel,
        out_shape=jax.ShapeDtypeStruct((T, HIDDEN), jnp.float32),
        in_specs=[vmem] * 22,
        out_specs=vmem,
    )(ids2d, params["embed"],
      params["ln1_g"], params["ln1_b"], params["ln2_g"], params["ln2_b"],
      params["wqkv"], params["bqkv"], params["wo"], params["bo"],
      params["wfc"], params["bfc"], params["wproj"], params["bproj"],
      params["norm_g"], params["norm_b"],
      cos_q, sin_q, cos_k, sin_k, rot_q, rot_k)


# -------------------------------- main --------------------------------------
if __name__ == "__main__":
    key = jax.random.PRNGKey(0)
    pkey, ikey = jax.random.split(key)
    params = init_params(pkey)

    input_ids = jax.random.randint(ikey, (SEQ,), 0, VOCAB, dtype=jnp.int32)
    positions = jnp.arange(SEQ, dtype=jnp.int32)

    out = starcoder2_forward(params, input_ids, positions)
    out = jax.block_until_ready(out)
    assert out.shape == (SEQ, HIDDEN)
    assert bool(jnp.all(jnp.isfinite(out)))
    print("KERNEL_OK")
</pallas_src>

<mosaic_0001>
module attributes {stable_mosaic.version = 11 : i64} {
  func.func @_model_kernel(%arg0: memref<8x1xi32, #tpu.memory_space<vmem>>, %arg1: memref<128x64xf32, #tpu.memory_space<vmem>>, %arg2: memref<2x1x64xf32, #tpu.memory_space<vmem>>, %arg3: memref<2x1x64xf32, #tpu.memory_space<vmem>>, %arg4: memref<2x1x64xf32, #tpu.memory_space<vmem>>, %arg5: memref<2x1x64xf32, #tpu.memory_space<vmem>>, %arg6: memref<2x64x128xbf16, #tpu.memory_space<vmem>>, %arg7: memref<2x1x128xf32, #tpu.memory_space<vmem>>, %arg8: memref<2x64x64xbf16, #tpu.memory_space<vmem>>, %arg9: memref<2x1x64xf32, #tpu.memory_space<vmem>>, %arg10: memref<2x64x128xbf16, #tpu.memory_space<vmem>>, %arg11: memref<2x1x128xf32, #tpu.memory_space<vmem>>, %arg12: memref<2x128x64xbf16, #tpu.memory_space<vmem>>, %arg13: memref<2x1x64xf32, #tpu.memory_space<vmem>>, %arg14: memref<1x64xf32, #tpu.memory_space<vmem>>, %arg15: memref<1x64xf32, #tpu.memory_space<vmem>>, %arg16: memref<8x64xf32, #tpu.memory_space<vmem>>, %arg17: memref<8x64xf32, #tpu.memory_space<vmem>>, %arg18: memref<8x32xf32, #tpu.memory_space<vmem>>, %arg19: memref<8x32xf32, #tpu.memory_space<vmem>>, %arg20: memref<64x64xf32, #tpu.memory_space<vmem>>, %arg21: memref<32x32xf32, #tpu.memory_space<vmem>>, %arg22: memref<8x64xf32, #tpu.memory_space<vmem>>) attributes {dimension_semantics = [], scalar_prefetch = 0 : i64, scratch_operands = 0 : i64, tpu.core_type = #tpu.core_type<tc>} {
    %c0 = arith.constant 0 : index
    %c0_0 = arith.constant 0 : index
    %0 = vector.load %arg0[%c0, %c0_0] : memref<8x1xi32, #tpu.memory_space<vmem>>, vector<8x1xi32>
    %1 = tpu.iota {dimensions = array<i32: 1>} : vector<8x128xi32>
    %2 = vector.broadcast %0 : vector<8x1xi32> to vector<8x128xi32>
    %3 = arith.cmpi eq, %1, %2 : vector<8x128xi32>
    %4 = arith.extui %3 : vector<8x128xi1> to vector<8x128xi32>
    %5 = arith.sitofp %4 : vector<8x128xi32> to vector<8x128xf32>
    %c0_1 = arith.constant 0 : index
    %c0_2 = arith.constant 0 : index
    %6 = vector.load %arg1[%c0_1, %c0_2] : memref<128x64xf32, #tpu.memory_space<vmem>>, vector<128x64xf32>
    %cst = arith.constant dense<0.000000e+00> : vector<8x64xf32>
    %7 = tpu.matmul %5, %6, %cst {dimension_numbers = #tpu.dot_dimension_numbers<[1], [0], [0], [1], [0, 0, 1, 1], [], []>} : vector<8x128xf32>, vector<128x64xf32>, vector<8x64xf32> -> vector<8x64xf32>
    %c0_3 = arith.constant 0 : index
    %c0_4 = arith.constant 0 : index
    %8 = vector.load %arg16[%c0_3, %c0_4] : memref<8x64xf32, #tpu.memory_space<vmem>>, vector<8x64xf32>
    %c0_5 = arith.constant 0 : index
    %c0_6 = arith.constant 0 : index
    %9 = vector.load %arg17[%c0_5, %c0_6] : memref<8x64xf32, #tpu.memory_space<vmem>>, vector<8x64xf32>
    %c0_7 = arith.constant 0 : index
    %c0_8 = arith.constant 0 : index
    %10 = vector.load %arg18[%c0_7, %c0_8] : memref<8x32xf32, #tpu.memory_space<vmem>>, vector<8x32xf32>
    %c0_9 = arith.constant 0 : index
    %c0_10 = arith.constant 0 : index
    %11 = vector.load %arg19[%c0_9, %c0_10] : memref<8x32xf32, #tpu.memory_space<vmem>>, vector<8x32xf32>
    %c0_11 = arith.constant 0 : index
    %c0_12 = arith.constant 0 : index
    %12 = vector.load %arg20[%c0_11, %c0_12] : memref<64x64xf32, #tpu.memory_space<vmem>>, vector<64x64xf32>
    %c0_13 = arith.constant 0 : index
    %c0_14 = arith.constant 0 : index
    %13 = vector.load %arg21[%c0_13, %c0_14] : memref<32x32xf32, #tpu.memory_space<vmem>>, vector<32x32xf32>
    %14 = tpu.iota {dimensions = array<i32: 0>} : vector<8x8xi32>
    %15 = tpu.iota {dimensions = array<i32: 1>} : vector<8x8xi32>
    %16 = arith.cmpi sge, %14, %15 : vector<8x8xi32>
    %c0_15 = arith.constant 0 : index
    %c0_16 = arith.constant 0 : index
    %c0_17 = arith.constant 0 : index
    %17 = vector.load %arg2[%c0_15, %c0_16, %c0_17] : memref<2x1x64xf32, #tpu.memory_space<vmem>>, vector<1x1x64xf32>
    %18 = vector.shape_cast %17 : vector<1x1x64xf32> to vector<1x64xf32>
    %c0_18 = arith.constant 0 : index
    %c0_19 = arith.constant 0 : index
    %c0_20 = arith.constant 0 : index
    %19 = vector.load %arg3[%c0_18, %c0_19, %c0_20] : memref<2x1x64xf32, #tpu.memory_space<vmem>>, vector<1x1x64xf32>
    %20 = vector.shape_cast %19 : vector<1x1x64xf32> to vector<1x64xf32>
    %cst_21 = arith.constant dense<0.000000e+00> : vector<8xf32>
    %21 = vector.multi_reduction <add>, %7, %cst_21 [1] : vector<8x64xf32> to vector<8xf32>
    %22 = vector.shape_cast %21 : vector<8xf32> to vector<8x1xf32>
    %cst_22 = arith.constant 6.400000e+01 : f32
    %23 = vector.broadcast %cst_22 : f32 to vector<8x1xf32>
    %24 = arith.divf %22, %23 : vector<8x1xf32>
    %25 = vector.broadcast %24 : vector<8x1xf32> to vector<8x64xf32>
    %26 = arith.subf %7, %25 : vector<8x64xf32>
    %27 = arith.mulf %26, %26 : vector<8x64xf32>
    %cst_23 = arith.constant dense<0.000000e+00> : vector<8xf32>
    %28 = vector.multi_reduction <add>, %27, %cst_23 [1] : vector<8x64xf32> to vector<8xf32>
    %29 = vector.shape_cast %28 : vector<8xf32> to vector<8x1xf32>
    %cst_24 = arith.constant 6.400000e+01 : f32
    %30 = vector.broadcast %cst_24 : f32 to vector<8x1xf32>
    %31 = arith.divf %29, %30 : vector<8x1xf32>
    %cst_25 = arith.constant 9.99999974E-6 : f32
    %32 = vector.broadcast %cst_25 : f32 to vector<8x1xf32>
    %33 = arith.addf %31, %32 : vector<8x1xf32>
    %34 = math.rsqrt %33 : vector<8x1xf32>
    %35 = vector.broadcast %34 : vector<8x1xf32> to vector<8x64xf32>
    %36 = arith.mulf %26, %35 : vector<8x64xf32>
    %37 = vector.broadcast %18 : vector<1x64xf32> to vector<8x64xf32>
    %38 = arith.mulf %36, %37 : vector<8x64xf32>
    %39 = vector.broadcast %20 : vector<1x64xf32> to vector<8x64xf32>
    %40 = arith.addf %38, %39 : vector<8x64xf32>
    %41 = arith.truncf %40 : vector<8x64xf32> to vector<8x64xbf16>
    %c0_26 = arith.constant 0 : index
    %c0_27 = arith.constant 0 : index
    %c0_28 = arith.constant 0 : index
    %42 = vector.load %arg6[%c0_26, %c0_27, %c0_28] : memref<2x64x128xbf16, #tpu.memory_space<vmem>>, vector<1x64x128xbf16>
    %43 = vector.shape_cast %42 : vector<1x64x128xbf16> to vector<64x128xbf16>
    %cst_29 = arith.constant dense<0.000000e+00> : vector<8x128xf32>
    %44 = tpu.matmul %41, %43, %cst_29 {dimension_numbers = #tpu.dot_dimension_numbers<[1], [0], [0], [1], [0, 0, 1, 1], [], []>} : vector<8x64xbf16>, vector<64x128xbf16>, vector<8x128xf32> -> vector<8x128xf32>
    %c0_30 = arith.constant 0 : index
    %c0_31 = arith.constant 0 : index
    %c0_32 = arith.constant 0 : index
    %45 = vector.load %arg7[%c0_30, %c0_31, %c0_32] : memref<2x1x128xf32, #tpu.memory_space<vmem>>, vector<1x1x128xf32>
    %46 = vector.shape_cast %45 : vector<1x1x128xf32> to vector<1x128xf32>
    %47 = vector.broadcast %46 : vector<1x128xf32> to vector<8x128xf32>
    %48 = arith.addf %44, %47 : vector<8x128xf32>
    %49 = vector.extract_strided_slice %48 {offsets = [0, 0], sizes = [8, 64], strides = [1, 1]} : vector<8x128xf32> to vector<8x64xf32>
    %50 = vector.extract_strided_slice %48 {offsets = [0, 64], sizes = [8, 32], strides = [1, 1]} : vector<8x128xf32> to vector<8x32xf32>
    %51 = vector.extract_strided_slice %48 {offsets = [0, 96], sizes = [8, 32], strides = [1, 1]} : vector<8x128xf32> to vector<8x32xf32>
    %52 = arith.mulf %49, %8 : vector<8x64xf32>
    %cst_33 = arith.constant dense<0.000000e+00> : vector<8x64xf32>
    %53 = tpu.matmul %49, %12, %cst_33 {dimension_numbers = #tpu.dot_dimension_numbers<[1], [0], [0], [1], [0, 0, 1, 1], [], []>} : vector<8x64xf32>, vector<64x64xf32>, vector<8x64xf32> -> vector<8x64xf32>
    %54 = arith.mulf %53, %9 : vector<8x64xf32>
    %55 = arith.addf %52, %54 : vector<8x64xf32>
    %56 = arith.mulf %50, %10 : vector<8x32xf32>
    %cst_34 = arith.constant dense<0.000000e+00> : vector<8x32xf32>
    %57 = tpu.matmul %50, %13, %cst_34 {dimension_numbers = #tpu.dot_dimension_numbers<[1], [0], [0], [1], [0, 0, 1, 1], [], []>} : vector<8x32xf32>, vector<32x32xf32>, vector<8x32xf32> -> vector<8x32xf32>
    %58 = arith.mulf %57, %11 : vector<8x32xf32>
    %59 = arith.addf %56, %58 : vector<8x32xf32>
    %c0_35 = arith.constant 0 : index
    %c0_36 = arith.constant 0 : index
    %c0_37 = arith.constant 0 : index
    %60 = vector.load %arg8[%c0_35, %c0_36, %c0_37] : memref<2x64x64xbf16, #tpu.memory_space<vmem>>, vector<1x64x64xbf16>
    %61 = vector.shape_cast %60 : vector<1x64x64xbf16> to vector<64x64xbf16>
    %cst_38 = arith.constant 0.000000e+00 : f32
    %62 = vector.broadcast %cst_38 : f32 to vector<8x64xf32>
    %63 = vector.extract_strided_slice %55 {offsets = [0, 0], sizes = [8, 16], strides = [1, 1]} : vector<8x64xf32> to vector<8x16xf32>
    %64 = arith.truncf %63 : vector<8x16xf32> to vector<8x16xbf16>
    %65 = vector.extract_strided_slice %59 {offsets = [0, 0], sizes = [8, 16], strides = [1, 1]} : vector<8x32xf32> to vector<8x16xf32>
    %66 = arith.truncf %65 : vector<8x16xf32> to vector<8x16xbf16>
    %67 = vector.extract_strided_slice %51 {offsets = [0, 0], sizes = [8, 16], strides = [1, 1]} : vector<8x32xf32> to vector<8x16xf32>
    %68 = arith.truncf %67 : vector<8x16xf32> to vector<8x16xbf16>
    %cst_39 = arith.constant dense<0.000000e+00> : vector<8x8xf32>
    %69 = tpu.matmul %64, %66, %cst_39 {dimension_numbers = #tpu.dot_dimension_numbers<[1], [1], [0], [0], [0, 0, 1, 0], [], []>} : vector<8x16xbf16>, vector<8x16xbf16>, vector<8x8xf32> -> vector<8x8xf32>
    %cst_40 = arith.constant 2.500000e-01 : f32
    %70 = vector.broadcast %cst_40 : f32 to vector<8x8xf32>
    %71 = arith.mulf %69, %70 : vector<8x8xf32>
    %cst_41 = arith.constant 0xFF800000 : f32
    %72 = vector.broadcast %cst_41 : f32 to vector<8x8xf32>
    %73 = arith.select %16, %71, %72 : vector<8x8xi1>, vector<8x8xf32>
    %cst_42 = arith.constant dense<0xFF800000> : vector<8xf32>
    %74 = vector.multi_reduction <maximumf>, %73, %cst_42 [1] : vector<8x8xf32> to vector<8xf32>
    %75 = vector.shape_cast %74 : vector<8xf32> to vector<8x1xf32>
    %76 = vector.broadcast %75 : vector<8x1xf32> to vector<8x8xf32>
    %77 = arith.subf %73, %76 : vector<8x8xf32>
    %78 = math.exp %77 : vector<8x8xf32>
    %cst_43 = arith.constant dense<0.000000e+00> : vector<8xf32>
    %79 = vector.multi_reduction <add>, %78, %cst_43 [1] : vector<8x8xf32> to vector<8xf32>
    %80 = vector.shape_cast %79 : vector<8xf32> to vector<8x1xf32>
    %81 = arith.truncf %78 : vector<8x8xf32> to vector<8x8xbf16>
    %cst_44 = arith.constant dense<0.000000e+00> : vector<8x16xf32>
    %82 = tpu.matmul %81, %68, %cst_44 {dimension_numbers = #tpu.dot_dimension_numbers<[1], [0], [0], [1], [0, 0, 1, 1], [], []>} : vector<8x8xbf16>, vector<8x16xbf16>, vector<8x16xf32> -> vector<8x16xf32>
    %83 = tpu.reciprocal %80 {approx = true} : vector<8x1xf32> -> vector<8x1xf32>
    %84 = vector.broadcast %83 : vector<8x1xf32> to vector<8x16xf32>
    %85 = arith.mulf %82, %84 : vector<8x16xf32>
    %86 = arith.truncf %85 : vector<8x16xf32> to vector<8x16xbf16>
    %87 = vector.extract_strided_slice %61 {offsets = [0, 0], sizes = [16, 64], strides = [1, 1]} : vector<64x64xbf16> to vector<16x64xbf16>
    %cst_45 = arith.constant dense<0.000000e+00> : vector<8x64xf32>
    %88 = tpu.matmul %86, %87, %cst_45 {dimension_numbers = #tpu.dot_dimension_numbers<[1], [0], [0], [1], [0, 0, 1, 1], [], []>} : vector<8x16xbf16>, vector<16x64xbf16>, vector<8x64xf32> -> vector<8x64xf32>
    %89 = arith.addf %62, %88 : vector<8x64xf32>
    %90 = vector.extract_strided_slice %55 {offsets = [0, 16], sizes = [8, 16], strides = [1, 1]} : vector<8x64xf32> to vector<8x16xf32>
    %91 = arith.truncf %90 : vector<8x16xf32> to vector<8x16xbf16>
    %92 = vector.extract_strided_slice %59 {offsets = [0, 0], sizes = [8, 16], strides = [1, 1]} : vector<8x32xf32> to vector<8x16xf32>
    %93 = arith.truncf %92 : vector<8x16xf32> to vector<8x16xbf16>
    %94 = vector.extract_strided_slice %51 {offsets = [0, 0], sizes = [8, 16], strides = [1, 1]} : vector<8x32xf32> to vector<8x16xf32>
    %95 = arith.truncf %94 : vector<8x16xf32> to vector<8x16xbf16>
    %cst_46 = arith.constant dense<0.000000e+00> : vector<8x8xf32>
    %96 = tpu.matmul %91, %93, %cst_46 {dimension_numbers = #tpu.dot_dimension_numbers<[1], [1], [0], [0], [0, 0, 1, 0], [], []>} : vector<8x16xbf16>, vector<8x16xbf16>, vector<8x8xf32> -> vector<8x8xf32>
    %cst_47 = arith.constant 2.500000e-01 : f32
    %97 = vector.broadcast %cst_47 : f32 to vector<8x8xf32>
    %98 = arith.mulf %96, %97 : vector<8x8xf32>
    %cst_48 = arith.constant 0xFF800000 : f32
    %99 = vector.broadcast %cst_48 : f32 to vector<8x8xf32>
    %100 = arith.select %16, %98, %99 : vector<8x8xi1>, vector<8x8xf32>
    %cst_49 = arith.constant dense<0xFF800000> : vector<8xf32>
    %101 = vector.multi_reduction <maximumf>, %100, %cst_49 [1] : vector<8x8xf32> to vector<8xf32>
    %102 = vector.shape_cast %101 : vector<8xf32> to vector<8x1xf32>
    %103 = vector.broadcast %102 : vector<8x1xf32> to vector<8x8xf32>
    %104 = arith.subf %100, %103 : vector<8x8xf32>
    %105 = math.exp %104 : vector<8x8xf32>
    %cst_50 = arith.constant dense<0.000000e+00> : vector<8xf32>
    %106 = vector.multi_reduction <add>, %105, %cst_50 [1] : vector<8x8xf32> to vector<8xf32>
    %107 = vector.shape_cast %106 : vector<8xf32> to vector<8x1xf32>
    %108 = arith.truncf %105 : vector<8x8xf32> to vector<8x8xbf16>
    %cst_51 = arith.constant dense<0.000000e+00> : vector<8x16xf32>
    %109 = tpu.matmul %108, %95, %cst_51 {dimension_numbers = #tpu.dot_dimension_numbers<[1], [0], [0], [1], [0, 0, 1, 1], [], []>} : vector<8x8xbf16>, vector<8x16xbf16>, vector<8x16xf32> -> vector<8x16xf32>
    %110 = tpu.reciprocal %107 {approx = true} : vector<8x1xf32> -> vector<8x1xf32>
    %111 = vector.broadcast %110 : vector<8x1xf32> to vector<8x16xf32>
    %112 = arith.mulf %109, %111 : vector<8x16xf32>
    %113 = arith.truncf %112 : vector<8x16xf32> to vector<8x16xbf16>
    %114 = vector.extract_strided_slice %61 {offsets = [16, 0], sizes = [16, 64], strides = [1, 1]} : vector<64x64xbf16> to vector<16x64xbf16>
    %cst_52 = arith.constant dense<0.000000e+00> : vector<8x64xf32>
    %115 = tpu.matmul %113, %114, %cst_52 {dimension_numbers = #tpu.dot_dimension_numbers<[1], [0], [0], [1], [0, 0, 1, 1], [], []>} : vector<8x16xbf16>, vector<16x64xbf16>, vector<8x64xf32> -> vector<8x64xf32>
    %116 = arith.addf %89, %115 : vector<8x64xf32>
    %117 = vector.extract_strided_slice %55 {offsets = [0, 32], sizes = [8, 16], strides = [1, 1]} : vector<8x64xf32> to vector<8x16xf32>
    %118 = arith.truncf %117 : vector<8x16xf32> to vector<8x16xbf16>
    %119 = vector.extract_strided_slice %59 {offsets = [0, 16], sizes = [8, 16], strides = [1, 1]} : vector<8x32xf32> to vector<8x16xf32>
    %120 = arith.truncf %119 : vector<8x16xf32> to vector<8x16xbf16>
    %121 = vector.extract_strided_slice %51 {offsets = [0, 16], sizes = [8, 16], strides = [1, 1]} : vector<8x32xf32> to vector<8x16xf32>
    %122 = arith.truncf %121 : vector<8x16xf32> to vector<8x16xbf16>
    %cst_53 = arith.constant dense<0.000000e+00> : vector<8x8xf32>
    %123 = tpu.matmul %118, %120, %cst_53 {dimension_numbers = #tpu.dot_dimension_numbers<[1], [1], [0], [0], [0, 0, 1, 0], [], []>} : vector<8x16xbf16>, vector<8x16xbf16>, vector<8x8xf32> -> vector<8x8xf32>
    %cst_54 = arith.constant 2.500000e-01 : f32
    %124 = vector.broadcast %cst_54 : f32 to vector<8x8xf32>
    %125 = arith.mulf %123, %124 : vector<8x8xf32>
    %cst_55 = arith.constant 0xFF800000 : f32
    %126 = vector.broadcast %cst_55 : f32 to vector<8x8xf32>
    %127 = arith.select %16, %125, %126 : vector<8x8xi1>, vector<8x8xf32>
    %cst_56 = arith.constant dense<0xFF800000> : vector<8xf32>
    %128 = vector.multi_reduction <maximumf>, %127, %cst_56 [1] : vector<8x8xf32> to vector<8xf32>
    %129 = vector.shape_cast %128 : vector<8xf32> to vector<8x1xf32>
    %130 = vector.broadcast %129 : vector<8x1xf32> to vector<8x8xf32>
    %131 = arith.subf %127, %130 : vector<8x8xf32>
    %132 = math.exp %131 : vector<8x8xf32>
    %cst_57 = arith.constant dense<0.000000e+00> : vector<8xf32>
    %133 = vector.multi_reduction <add>, %132, %cst_57 [1] : vector<8x8xf32> to vector<8xf32>
    %134 = vector.shape_cast %133 : vector<8xf32> to vector<8x1xf32>
    %135 = arith.truncf %132 : vector<8x8xf32> to vector<8x8xbf16>
    %cst_58 = arith.constant dense<0.000000e+00> : vector<8x16xf32>
    %136 = tpu.matmul %135, %122, %cst_58 {dimension_numbers = #tpu.dot_dimension_numbers<[1], [0], [0], [1], [0, 0, 1, 1], [], []>} : vector<8x8xbf16>, vector<8x16xbf16>, vector<8x16xf32> -> vector<8x16xf32>
    %137 = tpu.reciprocal %134 {approx = true} : vector<8x1xf32> -> vector<8x1xf32>
    %138 = vector.broadcast %137 : vector<8x1xf32> to vector<8x16xf32>
    %139 = arith.mulf %136, %138 : vector<8x16xf32>
    %140 = arith.truncf %139 : vector<8x16xf32> to vector<8x16xbf16>
    %141 = vector.extract_strided_slice %61 {offsets = [32, 0], sizes = [16, 64], strides = [1, 1]} : vector<64x64xbf16> to vector<16x64xbf16>
    %cst_59 = arith.constant dense<0.000000e+00> : vector<8x64xf32>
    %142 = tpu.matmul %140, %141, %cst_59 {dimension_numbers = #tpu.dot_dimension_numbers<[1], [0], [0], [1], [0, 0, 1, 1], [], []>} : vector<8x16xbf16>, vector<16x64xbf16>, vector<8x64xf32> -> vector<8x64xf32>
    %143 = arith.addf %116, %142 : vector<8x64xf32>
    %144 = vector.extract_strided_slice %55 {offsets = [0, 48], sizes = [8, 16], strides = [1, 1]} : vector<8x64xf32> to vector<8x16xf32>
    %145 = arith.truncf %144 : vector<8x16xf32> to vector<8x16xbf16>
    %146 = vector.extract_strided_slice %59 {offsets = [0, 16], sizes = [8, 16], strides = [1, 1]} : vector<8x32xf32> to vector<8x16xf32>
    %147 = arith.truncf %146 : vector<8x16xf32> to vector<8x16xbf16>
    %148 = vector.extract_strided_slice %51 {offsets = [0, 16], sizes = [8, 16], strides = [1, 1]} : vector<8x32xf32> to vector<8x16xf32>
    %149 = arith.truncf %148 : vector<8x16xf32> to vector<8x16xbf16>
    %cst_60 = arith.constant dense<0.000000e+00> : vector<8x8xf32>
    %150 = tpu.matmul %145, %147, %cst_60 {dimension_numbers = #tpu.dot_dimension_numbers<[1], [1], [0], [0], [0, 0, 1, 0], [], []>} : vector<8x16xbf16>, vector<8x16xbf16>, vector<8x8xf32> -> vector<8x8xf32>
    %cst_61 = arith.constant 2.500000e-01 : f32
    %151 = vector.broadcast %cst_61 : f32 to vector<8x8xf32>
    %152 = arith.mulf %150, %151 : vector<8x8xf32>
    %cst_62 = arith.constant 0xFF800000 : f32
    %153 = vector.broadcast %cst_62 : f32 to vector<8x8xf32>
    %154 = arith.select %16, %152, %153 : vector<8x8xi1>, vector<8x8xf32>
    %cst_63 = arith.constant dense<0xFF800000> : vector<8xf32>
    %155 = vector.multi_reduction <maximumf>, %154, %cst_63 [1] : vector<8x8xf32> to vector<8xf32>
    %156 = vector.shape_cast %155 : vector<8xf32> to vector<8x1xf32>
    %157 = vector.broadcast %156 : vector<8x1xf32> to vector<8x8xf32>
    %158 = arith.subf %154, %157 : vector<8x8xf32>
    %159 = math.exp %158 : vector<8x8xf32>
    %cst_64 = arith.constant dense<0.000000e+00> : vector<8xf32>
    %160 = vector.multi_reduction <add>, %159, %cst_64 [1] : vector<8x8xf32> to vector<8xf32>
    %161 = vector.shape_cast %160 : vector<8xf32> to vector<8x1xf32>
    %162 = arith.truncf %159 : vector<8x8xf32> to vector<8x8xbf16>
    %cst_65 = arith.constant dense<0.000000e+00> : vector<8x16xf32>
    %163 = tpu.matmul %162, %149, %cst_65 {dimension_numbers = #tpu.dot_dimension_numbers<[1], [0], [0], [1], [0, 0, 1, 1], [], []>} : vector<8x8xbf16>, vector<8x16xbf16>, vector<8x16xf32> -> vector<8x16xf32>
    %164 = tpu.reciprocal %161 {approx = true} : vector<8x1xf32> -> vector<8x1xf32>
    %165 = vector.broadcast %164 : vector<8x1xf32> to vector<8x16xf32>
    %166 = arith.mulf %163, %165 : vector<8x16xf32>
    %167 = arith.truncf %166 : vector<8x16xf32> to vector<8x16xbf16>
    %168 = vector.extract_strided_slice %61 {offsets = [48, 0], sizes = [16, 64], strides = [1, 1]} : vector<64x64xbf16> to vector<16x64xbf16>
    %cst_66 = arith.constant dense<0.000000e+00> : vector<8x64xf32>
    %169 = tpu.matmul %167, %168, %cst_66 {dimension_numbers = #tpu.dot_dimension_numbers<[1], [0], [0], [1], [0, 0, 1, 1], [], []>} : vector<8x16xbf16>, vector<16x64xbf16>, vector<8x64xf32> -> vector<8x64xf32>
    %170 = arith.addf %143, %169 : vector<8x64xf32>
    %171 = arith.addf %7, %170 : vector<8x64xf32>
    %c0_67 = arith.constant 0 : index
    %c0_68 = arith.constant 0 : index
    %c0_69 = arith.constant 0 : index
    %172 = vector.load %arg9[%c0_67, %c0_68, %c0_69] : memref<2x1x64xf32, #tpu.memory_space<vmem>>, vector<1x1x64xf32>
    %173 = vector.shape_cast %172 : vector<1x1x64xf32> to vector<1x64xf32>
    %174 = vector.broadcast %173 : vector<1x64xf32> to vector<8x64xf32>
    %175 = arith.addf %171, %174 : vector<8x64xf32>
    %c0_70 = arith.constant 0 : index
    %c0_71 = arith.constant 0 : index
    %c0_72 = arith.constant 0 : index
    %176 = vector.load %arg4[%c0_70, %c0_71, %c0_72] : memref<2x1x64xf32, #tpu.memory_space<vmem>>, vector<1x1x64xf32>
    %177 = vector.shape_cast %176 : vector<1x1x64xf32> to vector<1x64xf32>
    %c0_73 = arith.constant 0 : index
    %c0_74 = arith.constant 0 : index
    %c0_75 = arith.constant 0 : index
    %178 = vector.load %arg5[%c0_73, %c0_74, %c0_75] : memref<2x1x64xf32, #tpu.memory_space<vmem>>, vector<1x1x64xf32>
    %179 = vector.shape_cast %178 : vector<1x1x64xf32> to vector<1x64xf32>
    %cst_76 = arith.constant dense<0.000000e+00> : vector<8xf32>
    %180 = vector.multi_reduction <add>, %175, %cst_76 [1] : vector<8x64xf32> to vector<8xf32>
    %181 = vector.shape_cast %180 : vector<8xf32> to vector<8x1xf32>
    %cst_77 = arith.constant 6.400000e+01 : f32
    %182 = vector.broadcast %cst_77 : f32 to vector<8x1xf32>
    %183 = arith.divf %181, %182 : vector<8x1xf32>
    %184 = vector.broadcast %183 : vector<8x1xf32> to vector<8x64xf32>
    %185 = arith.subf %175, %184 : vector<8x64xf32>
    %186 = arith.mulf %185, %185 : vector<8x64xf32>
    %cst_78 = arith.constant dense<0.000000e+00> : vector<8xf32>
    %187 = vector.multi_reduction <add>, %186, %cst_78 [1] : vector<8x64xf32> to vector<8xf32>
    %188 = vector.shape_cast %187 : vector<8xf32> to vector<8x1xf32>
    %cst_79 = arith.constant 6.400000e+01 : f32
    %189 = vector.broadcast %cst_79 : f32 to vector<8x1xf32>
    %190 = arith.divf %188, %189 : vector<8x1xf32>
    %cst_80 = arith.constant 9.99999974E-6 : f32
    %191 = vector.broadcast %cst_80 : f32 to vector<8x1xf32>
    %192 = arith.addf %190, %191 : vector<8x1xf32>
    %193 = math.rsqrt %192 : vector<8x1xf32>
    %194 = vector.broadcast %193 : vector<8x1xf32> to vector<8x64xf32>
    %195 = arith.mulf %185, %194 : vector<8x64xf32>
    %196 = vector.broadcast %177 : vector<1x64xf32> to vector<8x64xf32>
    %197 = arith.mulf %195, %196 : vector<8x64xf32>
    %198 = vector.broadcast %179 : vector<1x64xf32> to vector<8x64xf32>
    %199 = arith.addf %197, %198 : vector<8x64xf32>
    %200 = arith.truncf %199 : vector<8x64xf32> to vector<8x64xbf16>
    %c0_81 = arith.constant 0 : index
    %c0_82 = arith.constant 0 : index
    %c0_83 = arith.constant 0 : index
    %201 = vector.load %arg10[%c0_81, %c0_82, %c0_83] : memref<2x64x128xbf16, #tpu.memory_space<vmem>>, vector<1x64x128xbf16>
    %202 = vector.shape_cast %201 : vector<1x64x128xbf16> to vector<64x128xbf16>
    %cst_84 = arith.constant dense<0.000000e+00> : vector<8x128xf32>
    %203 = tpu.matmul %200, %202, %cst_84 {dimension_numbers = #tpu.dot_dimension_numbers<[1], [0], [0], [1], [0, 0, 1, 1], [], []>} : vector<8x64xbf16>, vector<64x128xbf16>, vector<8x128xf32> -> vector<8x128xf32>
    %c0_85 = arith.constant 0 : index
    %c0_86 = arith.constant 0 : index
    %c0_87 = arith.constant 0 : index
    %204 = vector.load %arg11[%c0_85, %c0_86, %c0_87] : memref<2x1x128xf32, #tpu.memory_space<vmem>>, vector<1x1x128xf32>
    %205 = vector.shape_cast %204 : vector<1x1x128xf32> to vector<1x128xf32>
    %206 = vector.broadcast %205 : vector<1x128xf32> to vector<8x128xf32>
    %207 = arith.addf %203, %206 : vector<8x128xf32>
    %cst_88 = arith.constant 5.000000e-01 : f32
    %208 = vector.broadcast %cst_88 : f32 to vector<8x128xf32>
    %209 = arith.mulf %208, %207 : vector<8x128xf32>
    %cst_89 = arith.constant 4.471500e-02 : f32
    %210 = vector.broadcast %cst_89 : f32 to vector<8x128xf32>
    %211 = arith.mulf %210, %207 : vector<8x128xf32>
    %212 = arith.mulf %211, %207 : vector<8x128xf32>
    %213 = arith.mulf %212, %207 : vector<8x128xf32>
    %214 = arith.addf %207, %213 : vector<8x128xf32>
    %cst_90 = arith.constant 0.797884583 : f32
    %215 = vector.broadcast %cst_90 : f32 to vector<8x128xf32>
    %216 = arith.mulf %215, %214 : vector<8x128xf32>
    %217 = math.tanh %216 : vector<8x128xf32>
    %cst_91 = arith.constant 1.000000e+00 : f32
    %218 = vector.broadcast %cst_91 : f32 to vector<8x128xf32>
    %219 = arith.addf %218, %217 : vector<8x128xf32>
    %220 = arith.mulf %209, %219 : vector<8x128xf32>
    %221 = arith.truncf %220 : vector<8x128xf32> to vector<8x128xbf16>
    %c0_92 = arith.constant 0 : index
    %c0_93 = arith.constant 0 : index
    %c0_94 = arith.constant 0 : index
    %222 = vector.load %arg12[%c0_92, %c0_93, %c0_94] : memref<2x128x64xbf16, #tpu.memory_space<vmem>>, vector<1x128x64xbf16>
    %223 = vector.shape_cast %222 : vector<1x128x64xbf16> to vector<128x64xbf16>
    %cst_95 = arith.constant dense<0.000000e+00> : vector<8x64xf32>
    %224 = tpu.matmul %221, %223, %cst_95 {dimension_numbers = #tpu.dot_dimension_numbers<[1], [0], [0], [1], [0, 0, 1, 1], [], []>} : vector<8x128xbf16>, vector<128x64xbf16>, vector<8x64xf32> -> vector<8x64xf32>
    %c0_96 = arith.constant 0 : index
    %c0_97 = arith.constant 0 : index
    %c0_98 = arith.constant 0 : index
    %225 = vector.load %arg13[%c0_96, %c0_97, %c0_98] : memref<2x1x64xf32, #tpu.memory_space<vmem>>, vector<1x1x64xf32>
    %226 = vector.shape_cast %225 : vector<1x1x64xf32> to vector<1x64xf32>
    %227 = vector.broadcast %226 : vector<1x64xf32> to vector<8x64xf32>
    %228 = arith.addf %224, %227 : vector<8x64xf32>
    %229 = arith.addf %175, %228 : vector<8x64xf32>
    %c1 = arith.constant 1 : index
    %c0_99 = arith.constant 0 : index
    %c0_100 = arith.constant 0 : index
    %230 = vector.load %arg2[%c1, %c0_99, %c0_100] : memref<2x1x64xf32, #tpu.memory_space<vmem>>, vector<1x1x64xf32>
    %231 = vector.shape_cast %230 : vector<1x1x64xf32> to vector<1x64xf32>
    %c1_101 = arith.constant 1 : index
    %c0_102 = arith.constant 0 : index
    %c0_103 = arith.constant 0 : index
    %232 = vector.load %arg3[%c1_101, %c0_102, %c0_103] : memref<2x1x64xf32, #tpu.memory_space<vmem>>, vector<1x1x64xf32>
    %233 = vector.shape_cast %232 : vector<1x1x64xf32> to vector<1x64xf32>
    %cst_104 = arith.constant dense<0.000000e+00> : vector<8xf32>
    %234 = vector.multi_reduction <add>, %229, %cst_104 [1] : vector<8x64xf32> to vector<8xf32>
    %235 = vector.shape_cast %234 : vector<8xf32> to vector<8x1xf32>
    %cst_105 = arith.constant 6.400000e+01 : f32
    %236 = vector.broadcast %cst_105 : f32 to vector<8x1xf32>
    %237 = arith.divf %235, %236 : vector<8x1xf32>
    %238 = vector.broadcast %237 : vector<8x1xf32> to vector<8x64xf32>
    %239 = arith.subf %229, %238 : vector<8x64xf32>
    %240 = arith.mulf %239, %239 : vector<8x64xf32>
    %cst_106 = arith.constant dense<0.000000e+00> : vector<8xf32>
    %241 = vector.multi_reduction <add>, %240, %cst_106 [1] : vector<8x64xf32> to vector<8xf32>
    %242 = vector.shape_cast %241 : vector<8xf32> to vector<8x1xf32>
    %cst_107 = arith.constant 6.400000e+01 : f32
    %243 = vector.broadcast %cst_107 : f32 to vector<8x1xf32>
    %244 = arith.divf %242, %243 : vector<8x1xf32>
    %cst_108 = arith.constant 9.99999974E-6 : f32
    %245 = vector.broadcast %cst_108 : f32 to vector<8x1xf32>
    %246 = arith.addf %244, %245 : vector<8x1xf32>
    %247 = math.rsqrt %246 : vector<8x1xf32>
    %248 = vector.broadcast %247 : vector<8x1xf32> to vector<8x64xf32>
    %249 = arith.mulf %239, %248 : vector<8x64xf32>
    %250 = vector.broadcast %231 : vector<1x64xf32> to vector<8x64xf32>
    %251 = arith.mulf %249, %250 : vector<8x64xf32>
    %252 = vector.broadcast %233 : vector<1x64xf32> to vector<8x64xf32>
    %253 = arith.addf %251, %252 : vector<8x64xf32>
    %254 = arith.truncf %253 : vector<8x64xf32> to vector<8x64xbf16>
    %c1_109 = arith.constant 1 : index
    %c0_110 = arith.constant 0 : index
    %c0_111 = arith.constant 0 : index
    %255 = vector.load %arg6[%c1_109, %c0_110, %c0_111] : memref<2x64x128xbf16, #tpu.memory_space<vmem>>, vector<1x64x128xbf16>
    %256 = vector.shape_cast %255 : vector<1x64x128xbf16> to vector<64x128xbf16>
    %cst_112 = arith.constant dense<0.000000e+00> : vector<8x128xf32>
    %257 = tpu.matmul %254, %256, %cst_112 {dimension_numbers = #tpu.dot_dimension_numbers<[1], [0], [0], [1], [0, 0, 1, 1], [], []>} : vector<8x64xbf16>, vector<64x128xbf16>, vector<8x128xf32> -> vector<8x128xf32>
    %c1_113 = arith.constant 1 : index
    %c0_114 = arith.constant 0 : index
    %c0_115 = arith.constant 0 : index
    %258 = vector.load %arg7[%c1_113, %c0_114, %c0_115] : memref<2x1x128xf32, #tpu.memory_space<vmem>>, vector<1x1x128xf32>
    %259 = vector.shape_cast %258 : vector<1x1x128xf32> to vector<1x128xf32>
    %260 = vector.broadcast %259 : vector<1x128xf32> to vector<8x128xf32>
    %261 = arith.addf %257, %260 : vector<8x128xf32>
    %262 = vector.extract_strided_slice %261 {offsets = [0, 0], sizes = [8, 64], strides = [1, 1]} : vector<8x128xf32> to vector<8x64xf32>
    %263 = vector.extract_strided_slice %261 {offsets = [0, 64], sizes = [8, 32], strides = [1, 1]} : vector<8x128xf32> to vector<8x32xf32>
    %264 = vector.extract_strided_slice %261 {offsets = [0, 96], sizes = [8, 32], strides = [1, 1]} : vector<8x128xf32> to vector<8x32xf32>
    %265 = arith.mulf %262, %8 : vector<8x64xf32>
    %cst_116 = arith.constant dense<0.000000e+00> : vector<8x64xf32>
    %266 = tpu.matmul %262, %12, %cst_116 {dimension_numbers = #tpu.dot_dimension_numbers<[1], [0], [0], [1], [0, 0, 1, 1], [], []>} : vector<8x64xf32>, vector<64x64xf32>, vector<8x64xf32> -> vector<8x64xf32>
    %267 = arith.mulf %266, %9 : vector<8x64xf32>
    %268 = arith.addf %265, %267 : vector<8x64xf32>
    %269 = arith.mulf %263, %10 : vector<8x32xf32>
    %cst_117 = arith.constant dense<0.000000e+00> : vector<8x32xf32>
    %270 = tpu.matmul %263, %13, %cst_117 {dimension_numbers = #tpu.dot_dimension_numbers<[1], [0], [0], [1], [0, 0, 1, 1], [], []>} : vector<8x32xf32>, vector<32x32xf32>, vector<8x32xf32> -> vector<8x32xf32>
    %271 = arith.mulf %270, %11 : vector<8x32xf32>
    %272 = arith.addf %269, %271 : vector<8x32xf32>
    %c1_118 = arith.constant 1 : index
    %c0_119 = arith.constant 0 : index
    %c0_120 = arith.constant 0 : index
    %273 = vector.load %arg8[%c1_118, %c0_119, %c0_120] : memref<2x64x64xbf16, #tpu.memory_space<vmem>>, vector<1x64x64xbf16>
    %274 = vector.shape_cast %273 : vector<1x64x64xbf16> to vector<64x64xbf16>
    %cst_121 = arith.constant 0.000000e+00 : f32
    %275 = vector.broadcast %cst_121 : f32 to vector<8x64xf32>
    %276 = vector.extract_strided_slice %268 {offsets = [0, 0], sizes = [8, 16], strides = [1, 1]} : vector<8x64xf32> to vector<8x16xf32>
    %277 = arith.truncf %276 : vector<8x16xf32> to vector<8x16xbf16>
    %278 = vector.extract_strided_slice %272 {offsets = [0, 0], sizes = [8, 16], strides = [1, 1]} : vector<8x32xf32> to vector<8x16xf32>
    %279 = arith.truncf %278 : vector<8x16xf32> to vector<8x16xbf16>
    %280 = vector.extract_strided_slice %264 {offsets = [0, 0], sizes = [8, 16], strides = [1, 1]} : vector<8x32xf32> to vector<8x16xf32>
    %281 = arith.truncf %280 : vector<8x16xf32> to vector<8x16xbf16>
    %cst_122 = arith.constant dense<0.000000e+00> : vector<8x8xf32>
    %282 = tpu.matmul %277, %279, %cst_122 {dimension_numbers = #tpu.dot_dimension_numbers<[1], [1], [0], [0], [0, 0, 1, 0], [], []>} : vector<8x16xbf16>, vector<8x16xbf16>, vector<8x8xf32> -> vector<8x8xf32>
    %cst_123 = arith.constant 2.500000e-01 : f32
    %283 = vector.broadcast %cst_123 : f32 to vector<8x8xf32>
    %284 = arith.mulf %282, %283 : vector<8x8xf32>
    %cst_124 = arith.constant 0xFF800000 : f32
    %285 = vector.broadcast %cst_124 : f32 to vector<8x8xf32>
    %286 = arith.select %16, %284, %285 : vector<8x8xi1>, vector<8x8xf32>
    %cst_125 = arith.constant dense<0xFF800000> : vector<8xf32>
    %287 = vector.multi_reduction <maximumf>, %286, %cst_125 [1] : vector<8x8xf32> to vector<8xf32>
    %288 = vector.shape_cast %287 : vector<8xf32> to vector<8x1xf32>
    %289 = vector.broadcast %288 : vector<8x1xf32> to vector<8x8xf32>
    %290 = arith.subf %286, %289 : vector<8x8xf32>
    %291 = math.exp %290 : vector<8x8xf32>
    %cst_126 = arith.constant dense<0.000000e+00> : vector<8xf32>
    %292 = vector.multi_reduction <add>, %291, %cst_126 [1] : vector<8x8xf32> to vector<8xf32>
    %293 = vector.shape_cast %292 : vector<8xf32> to vector<8x1xf32>
    %294 = arith.truncf %291 : vector<8x8xf32> to vector<8x8xbf16>
    %cst_127 = arith.constant dense<0.000000e+00> : vector<8x16xf32>
    %295 = tpu.matmul %294, %281, %cst_127 {dimension_numbers = #tpu.dot_dimension_numbers<[1], [0], [0], [1], [0, 0, 1, 1], [], []>} : vector<8x8xbf16>, vector<8x16xbf16>, vector<8x16xf32> -> vector<8x16xf32>
    %296 = tpu.reciprocal %293 {approx = true} : vector<8x1xf32> -> vector<8x1xf32>
    %297 = vector.broadcast %296 : vector<8x1xf32> to vector<8x16xf32>
    %298 = arith.mulf %295, %297 : vector<8x16xf32>
    %299 = arith.truncf %298 : vector<8x16xf32> to vector<8x16xbf16>
    %300 = vector.extract_strided_slice %274 {offsets = [0, 0], sizes = [16, 64], strides = [1, 1]} : vector<64x64xbf16> to vector<16x64xbf16>
    %cst_128 = arith.constant dense<0.000000e+00> : vector<8x64xf32>
    %301 = tpu.matmul %299, %300, %cst_128 {dimension_numbers = #tpu.dot_dimension_numbers<[1], [0], [0], [1], [0, 0, 1, 1], [], []>} : vector<8x16xbf16>, vector<16x64xbf16>, vector<8x64xf32> -> vector<8x64xf32>
    %302 = arith.addf %275, %301 : vector<8x64xf32>
    %303 = vector.extract_strided_slice %268 {offsets = [0, 16], sizes = [8, 16], strides = [1, 1]} : vector<8x64xf32> to vector<8x16xf32>
    %304 = arith.truncf %303 : vector<8x16xf32> to vector<8x16xbf16>
    %305 = vector.extract_strided_slice %272 {offsets = [0, 0], sizes = [8, 16], strides = [1, 1]} : vector<8x32xf32> to vector<8x16xf32>
    %306 = arith.truncf %305 : vector<8x16xf32> to vector<8x16xbf16>
    %307 = vector.extract_strided_slice %264 {offsets = [0, 0], sizes = [8, 16], strides = [1, 1]} : vector<8x32xf32> to vector<8x16xf32>
    %308 = arith.truncf %307 : vector<8x16xf32> to vector<8x16xbf16>
    %cst_129 = arith.constant dense<0.000000e+00> : vector<8x8xf32>
    %309 = tpu.matmul %304, %306, %cst_129 {dimension_numbers = #tpu.dot_dimension_numbers<[1], [1], [0], [0], [0, 0, 1, 0], [], []>} : vector<8x16xbf16>, vector<8x16xbf16>, vector<8x8xf32> -> vector<8x8xf32>
    %cst_130 = arith.constant 2.500000e-01 : f32
    %310 = vector.broadcast %cst_130 : f32 to vector<8x8xf32>
    %311 = arith.mulf %309, %310 : vector<8x8xf32>
    %cst_131 = arith.constant 0xFF800000 : f32
    %312 = vector.broadcast %cst_131 : f32 to vector<8x8xf32>
    %313 = arith.select %16, %311, %312 : vector<8x8xi1>, vector<8x8xf32>
    %cst_132 = arith.constant dense<0xFF800000> : vector<8xf32>
    %314 = vector.multi_reduction <maximumf>, %313, %cst_132 [1] : vector<8x8xf32> to vector<8xf32>
    %315 = vector.shape_cast %314 : vector<8xf32> to vector<8x1xf32>
    %316 = vector.broadcast %315 : vector<8x1xf32> to vector<8x8xf32>
    %317 = arith.subf %313, %316 : vector<8x8xf32>
    %318 = math.exp %317 : vector<8x8xf32>
    %cst_133 = arith.constant dense<0.000000e+00> : vector<8xf32>
    %319 = vector.multi_reduction <add>, %318, %cst_133 [1] : vector<8x8xf32> to vector<8xf32>
    %320 = vector.shape_cast %319 : vector<8xf32> to vector<8x1xf32>
    %321 = arith.truncf %318 : vector<8x8xf32> to vector<8x8xbf16>
    %cst_134 = arith.constant dense<0.000000e+00> : vector<8x16xf32>
    %322 = tpu.matmul %321, %308, %cst_134 {dimension_numbers = #tpu.dot_dimension_numbers<[1], [0], [0], [1], [0, 0, 1, 1], [], []>} : vector<8x8xbf16>, vector<8x16xbf16>, vector<8x16xf32> -> vector<8x16xf32>
    %323 = tpu.reciprocal %320 {approx = true} : vector<8x1xf32> -> vector<8x1xf32>
    %324 = vector.broadcast %323 : vector<8x1xf32> to vector<8x16xf32>
    %325 = arith.mulf %322, %324 : vector<8x16xf32>
    %326 = arith.truncf %325 : vector<8x16xf32> to vector<8x16xbf16>
    %327 = vector.extract_strided_slice %274 {offsets = [16, 0], sizes = [16, 64], strides = [1, 1]} : vector<64x64xbf16> to vector<16x64xbf16>
    %cst_135 = arith.constant dense<0.000000e+00> : vector<8x64xf32>
    %328 = tpu.matmul %326, %327, %cst_135 {dimension_numbers = #tpu.dot_dimension_numbers<[1], [0], [0], [1], [0, 0, 1, 1], [], []>} : vector<8x16xbf16>, vector<16x64xbf16>, vector<8x64xf32> -> vector<8x64xf32>
    %329 = arith.addf %302, %328 : vector<8x64xf32>
    %330 = vector.extract_strided_slice %268 {offsets = [0, 32], sizes = [8, 16], strides = [1, 1]} : vector<8x64xf32> to vector<8x16xf32>
    %331 = arith.truncf %330 : vector<8x16xf32> to vector<8x16xbf16>
    %332 = vector.extract_strided_slice %272 {offsets = [0, 16], sizes = [8, 16], strides = [1, 1]} : vector<8x32xf32> to vector<8x16xf32>
    %333 = arith.truncf %332 : vector<8x16xf32> to vector<8x16xbf16>
    %334 = vector.extract_strided_slice %264 {offsets = [0, 16], sizes = [8, 16], strides = [1, 1]} : vector<8x32xf32> to vector<8x16xf32>
    %335 = arith.truncf %334 : vector<8x16xf32> to vector<8x16xbf16>
    %cst_136 = arith.constant dense<0.000000e+00> : vector<8x8xf32>
    %336 = tpu.matmul %331, %333, %cst_136 {dimension_numbers = #tpu.dot_dimension_numbers<[1], [1], [0], [0], [0, 0, 1, 0], [], []>} : vector<8x16xbf16>, vector<8x16xbf16>, vector<8x8xf32> -> vector<8x8xf32>
    %cst_137 = arith.constant 2.500000e-01 : f32
    %337 = vector.broadcast %cst_137 : f32 to vector<8x8xf32>
    %338 = arith.mulf %336, %337 : vector<8x8xf32>
    %cst_138 = arith.constant 0xFF800000 : f32
    %339 = vector.broadcast %cst_138 : f32 to vector<8x8xf32>
    %340 = arith.select %16, %338, %339 : vector<8x8xi1>, vector<8x8xf32>
    %cst_139 = arith.constant dense<0xFF800000> : vector<8xf32>
    %341 = vector.multi_reduction <maximumf>, %340, %cst_139 [1] : vector<8x8xf32> to vector<8xf32>
    %342 = vector.shape_cast %341 : vector<8xf32> to vector<8x1xf32>
    %343 = vector.broadcast %342 : vector<8x1xf32> to vector<8x8xf32>
    %344 = arith.subf %340, %343 : vector<8x8xf32>
    %345 = math.exp %344 : vector<8x8xf32>
    %cst_140 = arith.constant dense<0.000000e+00> : vector<8xf32>
    %346 = vector.multi_reduction <add>, %345, %cst_140 [1] : vector<8x8xf32> to vector<8xf32>
    %347 = vector.shape_cast %346 : vector<8xf32> to vector<8x1xf32>
    %348 = arith.truncf %345 : vector<8x8xf32> to vector<8x8xbf16>
    %cst_141 = arith.constant dense<0.000000e+00> : vector<8x16xf32>
    %349 = tpu.matmul %348, %335, %cst_141 {dimension_numbers = #tpu.dot_dimension_numbers<[1], [0], [0], [1], [0, 0, 1, 1], [], []>} : vector<8x8xbf16>, vector<8x16xbf16>, vector<8x16xf32> -> vector<8x16xf32>
    %350 = tpu.reciprocal %347 {approx = true} : vector<8x1xf32> -> vector<8x1xf32>
    %351 = vector.broadcast %350 : vector<8x1xf32> to vector<8x16xf32>
    %352 = arith.mulf %349, %351 : vector<8x16xf32>
    %353 = arith.truncf %352 : vector<8x16xf32> to vector<8x16xbf16>
    %354 = vector.extract_strided_slice %274 {offsets = [32, 0], sizes = [16, 64], strides = [1, 1]} : vector<64x64xbf16> to vector<16x64xbf16>
    %cst_142 = arith.constant dense<0.000000e+00> : vector<8x64xf32>
    %355 = tpu.matmul %353, %354, %cst_142 {dimension_numbers = #tpu.dot_dimension_numbers<[1], [0], [0], [1], [0, 0, 1, 1], [], []>} : vector<8x16xbf16>, vector<16x64xbf16>, vector<8x64xf32> -> vector<8x64xf32>
    %356 = arith.addf %329, %355 : vector<8x64xf32>
    %357 = vector.extract_strided_slice %268 {offsets = [0, 48], sizes = [8, 16], strides = [1, 1]} : vector<8x64xf32> to vector<8x16xf32>
    %358 = arith.truncf %357 : vector<8x16xf32> to vector<8x16xbf16>
    %359 = vector.extract_strided_slice %272 {offsets = [0, 16], sizes = [8, 16], strides = [1, 1]} : vector<8x32xf32> to vector<8x16xf32>
    %360 = arith.truncf %359 : vector<8x16xf32> to vector<8x16xbf16>
    %361 = vector.extract_strided_slice %264 {offsets = [0, 16], sizes = [8, 16], strides = [1, 1]} : vector<8x32xf32> to vector<8x16xf32>
    %362 = arith.truncf %361 : vector<8x16xf32> to vector<8x16xbf16>
    %cst_143 = arith.constant dense<0.000000e+00> : vector<8x8xf32>
    %363 = tpu.matmul %358, %360, %cst_143 {dimension_numbers = #tpu.dot_dimension_numbers<[1], [1], [0], [0], [0, 0, 1, 0], [], []>} : vector<8x16xbf16>, vector<8x16xbf16>, vector<8x8xf32> -> vector<8x8xf32>
    %cst_144 = arith.constant 2.500000e-01 : f32
    %364 = vector.broadcast %cst_144 : f32 to vector<8x8xf32>
    %365 = arith.mulf %363, %364 : vector<8x8xf32>
    %cst_145 = arith.constant 0xFF800000 : f32
    %366 = vector.broadcast %cst_145 : f32 to vector<8x8xf32>
    %367 = arith.select %16, %365, %366 : vector<8x8xi1>, vector<8x8xf32>
    %cst_146 = arith.constant dense<0xFF800000> : vector<8xf32>
    %368 = vector.multi_reduction <maximumf>, %367, %cst_146 [1] : vector<8x8xf32> to vector<8xf32>
    %369 = vector.shape_cast %368 : vector<8xf32> to vector<8x1xf32>
    %370 = vector.broadcast %369 : vector<8x1xf32> to vector<8x8xf32>
    %371 = arith.subf %367, %370 : vector<8x8xf32>
    %372 = math.exp %371 : vector<8x8xf32>
    %cst_147 = arith.constant dense<0.000000e+00> : vector<8xf32>
    %373 = vector.multi_reduction <add>, %372, %cst_147 [1] : vector<8x8xf32> to vector<8xf32>
    %374 = vector.shape_cast %373 : vector<8xf32> to vector<8x1xf32>
    %375 = arith.truncf %372 : vector<8x8xf32> to vector<8x8xbf16>
    %cst_148 = arith.constant dense<0.000000e+00> : vector<8x16xf32>
    %376 = tpu.matmul %375, %362, %cst_148 {dimension_numbers = #tpu.dot_dimension_numbers<[1], [0], [0], [1], [0, 0, 1, 1], [], []>} : vector<8x8xbf16>, vector<8x16xbf16>, vector<8x16xf32> -> vector<8x16xf32>
    %377 = tpu.reciprocal %374 {approx = true} : vector<8x1xf32> -> vector<8x1xf32>
    %378 = vector.broadcast %377 : vector<8x1xf32> to vector<8x16xf32>
    %379 = arith.mulf %376, %378 : vector<8x16xf32>
    %380 = arith.truncf %379 : vector<8x16xf32> to vector<8x16xbf16>
    %381 = vector.extract_strided_slice %274 {offsets = [48, 0], sizes = [16, 64], strides = [1, 1]} : vector<64x64xbf16> to vector<16x64xbf16>
    %cst_149 = arith.constant dense<0.000000e+00> : vector<8x64xf32>
    %382 = tpu.matmul %380, %381, %cst_149 {dimension_numbers = #tpu.dot_dimension_numbers<[1], [0], [0], [1], [0, 0, 1, 1], [], []>} : vector<8x16xbf16>, vector<16x64xbf16>, vector<8x64xf32> -> vector<8x64xf32>
    %383 = arith.addf %356, %382 : vector<8x64xf32>
    %384 = arith.addf %229, %383 : vector<8x64xf32>
    %c1_150 = arith.constant 1 : index
    %c0_151 = arith.constant 0 : index
    %c0_152 = arith.constant 0 : index
    %385 = vector.load %arg9[%c1_150, %c0_151, %c0_152] : memref<2x1x64xf32, #tpu.memory_space<vmem>>, vector<1x1x64xf32>
    %386 = vector.shape_cast %385 : vector<1x1x64xf32> to vector<1x64xf32>
    %387 = vector.broadcast %386 : vector<1x64xf32> to vector<8x64xf32>
    %388 = arith.addf %384, %387 : vector<8x64xf32>
    %c1_153 = arith.constant 1 : index
    %c0_154 = arith.constant 0 : index
    %c0_155 = arith.constant 0 : index
    %389 = vector.load %arg4[%c1_153, %c0_154, %c0_155] : memref<2x1x64xf32, #tpu.memory_space<vmem>>, vector<1x1x64xf32>
    %390 = vector.shape_cast %389 : vector<1x1x64xf32> to vector<1x64xf32>
    %c1_156 = arith.constant 1 : index
    %c0_157 = arith.constant 0 : index
    %c0_158 = arith.constant 0 : index
    %391 = vector.load %arg5[%c1_156, %c0_157, %c0_158] : memref<2x1x64xf32, #tpu.memory_space<vmem>>, vector<1x1x64xf32>
    %392 = vector.shape_cast %391 : vector<1x1x64xf32> to vector<1x64xf32>
    %cst_159 = arith.constant dense<0.000000e+00> : vector<8xf32>
    %393 = vector.multi_reduction <add>, %388, %cst_159 [1] : vector<8x64xf32> to vector<8xf32>
    %394 = vector.shape_cast %393 : vector<8xf32> to vector<8x1xf32>
    %cst_160 = arith.constant 6.400000e+01 : f32
    %395 = vector.broadcast %cst_160 : f32 to vector<8x1xf32>
    %396 = arith.divf %394, %395 : vector<8x1xf32>
    %397 = vector.broadcast %396 : vector<8x1xf32> to vector<8x64xf32>
    %398 = arith.subf %388, %397 : vector<8x64xf32>
    %399 = arith.mulf %398, %398 : vector<8x64xf32>
    %cst_161 = arith.constant dense<0.000000e+00> : vector<8xf32>
    %400 = vector.multi_reduction <add>, %399, %cst_161 [1] : vector<8x64xf32> to vector<8xf32>
    %401 = vector.shape_cast %400 : vector<8xf32> to vector<8x1xf32>
    %cst_162 = arith.constant 6.400000e+01 : f32
    %402 = vector.broadcast %cst_162 : f32 to vector<8x1xf32>
    %403 = arith.divf %401, %402 : vector<8x1xf32>
    %cst_163 = arith.constant 9.99999974E-6 : f32
    %404 = vector.broadcast %cst_163 : f32 to vector<8x1xf32>
    %405 = arith.addf %403, %404 : vector<8x1xf32>
    %406 = math.rsqrt %405 : vector<8x1xf32>
    %407 = vector.broadcast %406 : vector<8x1xf32> to vector<8x64xf32>
    %408 = arith.mulf %398, %407 : vector<8x64xf32>
    %409 = vector.broadcast %390 : vector<1x64xf32> to vector<8x64xf32>
    %410 = arith.mulf %408, %409 : vector<8x64xf32>
    %411 = vector.broadcast %392 : vector<1x64xf32> to vector<8x64xf32>
    %412 = arith.addf %410, %411 : vector<8x64xf32>
    %413 = arith.truncf %412 : vector<8x64xf32> to vector<8x64xbf16>
    %c1_164 = arith.constant 1 : index
    %c0_165 = arith.constant 0 : index
    %c0_166 = arith.constant 0 : index
    %414 = vector.load %arg10[%c1_164, %c0_165, %c0_166] : memref<2x64x128xbf16, #tpu.memory_space<vmem>>, vector<1x64x128xbf16>
    %415 = vector.shape_cast %414 : vector<1x64x128xbf16> to vector<64x128xbf16>
    %cst_167 = arith.constant dense<0.000000e+00> : vector<8x128xf32>
    %416 = tpu.matmul %413, %415, %cst_167 {dimension_numbers = #tpu.dot_dimension_numbers<[1], [0], [0], [1], [0, 0, 1, 1], [], []>} : vector<8x64xbf16>, vector<64x128xbf16>, vector<8x128xf32> -> vector<8x128xf32>
    %c1_168 = arith.constant 1 : index
    %c0_169 = arith.constant 0 : index
    %c0_170 = arith.constant 0 : index
    %417 = vector.load %arg11[%c1_168, %c0_169, %c0_170] : memref<2x1x128xf32, #tpu.memory_space<vmem>>, vector<1x1x128xf32>
    %418 = vector.shape_cast %417 : vector<1x1x128xf32> to vector<1x128xf32>
    %419 = vector.broadcast %418 : vector<1x128xf32> to vector<8x128xf32>
    %420 = arith.addf %416, %419 : vector<8x128xf32>
    %cst_171 = arith.constant 5.000000e-01 : f32
    %421 = vector.broadcast %cst_171 : f32 to vector<8x128xf32>
    %422 = arith.mulf %421, %420 : vector<8x128xf32>
    %cst_172 = arith.constant 4.471500e-02 : f32
    %423 = vector.broadcast %cst_172 : f32 to vector<8x128xf32>
    %424 = arith.mulf %423, %420 : vector<8x128xf32>
    %425 = arith.mulf %424, %420 : vector<8x128xf32>
    %426 = arith.mulf %425, %420 : vector<8x128xf32>
    %427 = arith.addf %420, %426 : vector<8x128xf32>
    %cst_173 = arith.constant 0.797884583 : f32
    %428 = vector.broadcast %cst_173 : f32 to vector<8x128xf32>
    %429 = arith.mulf %428, %427 : vector<8x128xf32>
    %430 = math.tanh %429 : vector<8x128xf32>
    %cst_174 = arith.constant 1.000000e+00 : f32
    %431 = vector.broadcast %cst_174 : f32 to vector<8x128xf32>
    %432 = arith.addf %431, %430 : vector<8x128xf32>
    %433 = arith.mulf %422, %432 : vector<8x128xf32>
    %434 = arith.truncf %433 : vector<8x128xf32> to vector<8x128xbf16>
    %c1_175 = arith.constant 1 : index
    %c0_176 = arith.constant 0 : index
    %c0_177 = arith.constant 0 : index
    %435 = vector.load %arg12[%c1_175, %c0_176, %c0_177] : memref<2x128x64xbf16, #tpu.memory_space<vmem>>, vector<1x128x64xbf16>
    %436 = vector.shape_cast %435 : vector<1x128x64xbf16> to vector<128x64xbf16>
    %cst_178 = arith.constant dense<0.000000e+00> : vector<8x64xf32>
    %437 = tpu.matmul %434, %436, %cst_178 {dimension_numbers = #tpu.dot_dimension_numbers<[1], [0], [0], [1], [0, 0, 1, 1], [], []>} : vector<8x128xbf16>, vector<128x64xbf16>, vector<8x64xf32> -> vector<8x64xf32>
    %c1_179 = arith.constant 1 : index
    %c0_180 = arith.constant 0 : index
    %c0_181 = arith.constant 0 : index
    %438 = vector.load %arg13[%c1_179, %c0_180, %c0_181] : memref<2x1x64xf32, #tpu.memory_space<vmem>>, vector<1x1x64xf32>
    %439 = vector.shape_cast %438 : vector<1x1x64xf32> to vector<1x64xf32>
    %440 = vector.broadcast %439 : vector<1x64xf32> to vector<8x64xf32>
    %441 = arith.addf %437, %440 : vector<8x64xf32>
    %442 = arith.addf %388, %441 : vector<8x64xf32>
    %c0_182 = arith.constant 0 : index
    %c0_183 = arith.constant 0 : index
    %443 = vector.load %arg14[%c0_182, %c0_183] : memref<1x64xf32, #tpu.memory_space<vmem>>, vector<1x64xf32>
    %c0_184 = arith.constant 0 : index
    %c0_185 = arith.constant 0 : index
    %444 = vector.load %arg15[%c0_184, %c0_185] : memref<1x64xf32, #tpu.memory_space<vmem>>, vector<1x64xf32>
    %cst_186 = arith.constant dense<0.000000e+00> : vector<8xf32>
    %445 = vector.multi_reduction <add>, %442, %cst_186 [1] : vector<8x64xf32> to vector<8xf32>
    %446 = vector.shape_cast %445 : vector<8xf32> to vector<8x1xf32>
    %cst_187 = arith.constant 6.400000e+01 : f32
    %447 = vector.broadcast %cst_187 : f32 to vector<8x1xf32>
    %448 = arith.divf %446, %447 : vector<8x1xf32>
    %449 = vector.broadcast %448 : vector<8x1xf32> to vector<8x64xf32>
    %450 = arith.subf %442, %449 : vector<8x64xf32>
    %451 = arith.mulf %450, %450 : vector<8x64xf32>
    %cst_188 = arith.constant dense<0.000000e+00> : vector<8xf32>
    %452 = vector.multi_reduction <add>, %451, %cst_188 [1] : vector<8x64xf32> to vector<8xf32>
    %453 = vector.shape_cast %452 : vector<8xf32> to vector<8x1xf32>
    %cst_189 = arith.constant 6.400000e+01 : f32
    %454 = vector.broadcast %cst_189 : f32 to vector<8x1xf32>
    %455 = arith.divf %453, %454 : vector<8x1xf32>
    %cst_190 = arith.constant 9.99999974E-6 : f32
    %456 = vector.broadcast %cst_190 : f32 to vector<8x1xf32>
    %457 = arith.addf %455, %456 : vector<8x1xf32>
    %458 = math.rsqrt %457 : vector<8x1xf32>
    %459 = vector.broadcast %458 : vector<8x1xf32> to vector<8x64xf32>
    %460 = arith.mulf %450, %459 : vector<8x64xf32>
    %461 = vector.broadcast %443 : vector<1x64xf32> to vector<8x64xf32>
    %462 = arith.mulf %460, %461 : vector<8x64xf32>
    %463 = vector.broadcast %444 : vector<1x64xf32> to vector<8x64xf32>
    %464 = arith.addf %462, %463 : vector<8x64xf32>
    %c0_191 = arith.constant 0 : index
    %c0_192 = arith.constant 0 : index
    %465 = vector.load %arg22[%c0_191, %c0_192] : memref<8x64xf32, #tpu.memory_space<vmem>>, vector<8x64xf32>
    tpu.vector_store %arg22[%c0_191, %c0_192], %464 {strides = array<i32>} : memref<8x64xf32, #tpu.memory_space<vmem>>, vector<8x64xf32>,
    return
  }
}

</mosaic_0001>

<llo_original>
// kernel: tpu_custom_call.1
$region0: #{tpu_custom_call.1}
  #allocation0 [shape = 'u32[]', space=smem, size = 0x4, offset = 0x4, fixed_abs, tag = 'smem constant byte address 0x4 - core index']
  #allocation1 [shape = 'u32[144,128]{1,0:T(1,128)}', space=vmem, size = 0x12000, scoped, tag = 'internal scratch']
  %s0 = inlined_call_operand.vmem [shape: s32[8,1], index: 0, kind: input, shape index: {}]
  %s1 = inlined_call_operand.vmem [shape: f32[128,64], index: 1, kind: input, shape index: {}]
  %s2 = inlined_call_operand.vmem [shape: f32[2,1,64], index: 2, kind: input, shape index: {}]
  %s3 = inlined_call_operand.vmem [shape: f32[2,1,64], index: 3, kind: input, shape index: {}]
  %s4 = inlined_call_operand.vmem [shape: f32[2,1,64], index: 4, kind: input, shape index: {}]
  %s5 = inlined_call_operand.vmem [shape: f32[2,1,64], index: 5, kind: input, shape index: {}]
  %s6 = inlined_call_operand.vmem [shape: bf16[2,64,128], index: 6, kind: input, shape index: {}]
  %s7 = inlined_call_operand.vmem [shape: f32[2,1,128], index: 7, kind: input, shape index: {}]
  %s8 = inlined_call_operand.vmem [shape: bf16[2,64,64], index: 8, kind: input, shape index: {}]
  %s9 = inlined_call_operand.vmem [shape: f32[2,1,64], index: 9, kind: input, shape index: {}]
  %s10 = inlined_call_operand.vmem [shape: bf16[2,64,128], index: 10, kind: input, shape index: {}]
  %s11 = inlined_call_operand.vmem [shape: f32[2,1,128], index: 11, kind: input, shape index: {}]
  %s12 = inlined_call_operand.vmem [shape: bf16[2,128,64], index: 12, kind: input, shape index: {}]
  %s13 = inlined_call_operand.vmem [shape: f32[2,1,64], index: 13, kind: input, shape index: {}]
  %s14 = inlined_call_operand.vmem [shape: f32[1,64], index: 14, kind: input, shape index: {}]
  %s15 = inlined_call_operand.vmem [shape: f32[1,64], index: 15, kind: input, shape index: {}]
  %s16 = inlined_call_operand.vmem [shape: f32[8,64], index: 16, kind: input, shape index: {}]
  %s17 = inlined_call_operand.vmem [shape: f32[8,64], index: 17, kind: input, shape index: {}]
  %s18 = inlined_call_operand.vmem [shape: f32[8,32], index: 18, kind: input, shape index: {}]
  %s19 = inlined_call_operand.vmem [shape: f32[8,32], index: 19, kind: input, shape index: {}]
  %s20 = inlined_call_operand.vmem [shape: f32[64,64], index: 20, kind: input, shape index: {}]
  %s21 = inlined_call_operand.vmem [shape: f32[32,32], index: 21, kind: input, shape index: {}]
  %s22 = inlined_call_operand.hbm [shape: f32[8,64], index: 22, kind: output, shape index: {}]
  %s23 = sld [smem:[#allocation0]]
  $region98: #{tpu_custom_call.1} parent=0
    _
  %s25 = ssub.s32 1, %s23
  %s26 = scalar_select 0, %s25, %s23
  $region1: #{tpu_custom_call.1} parent=0
    #allocation2 [shape = 'u8[4096]{0}', space=vmem, size = 0x1000, scoped, tag = 'output window, operand 0, single buffered']
    #allocation3 [shape = 's32[1]{0}', space=sflag, size = 0x4, scoped, tag = 'scoped memory for tpu_custom_call.1']
    %27 = vsyncpa [#allocation3], 0
    // Predicated region
    $region2: #{tpu_custom_call.1} parent=1 // pred_check
      _
    $region3: #{tpu_custom_call.1} parent=1 // pred_check_branch
      %29 = sbr.rel (0) target = $region5
    $region4: #{tpu_custom_call.1} parent=1 // pred_region
      _
    $region5: #{tpu_custom_call.1} parent=1 // pred_fallthru
      _
    // Predicated region
    $region6: #{tpu_custom_call.1} parent=1 // pred_check
      _
    $region7: #{tpu_custom_call.1} parent=1 // pred_check_branch
      %31 = sbr.rel (0) target = $region9
    $region8: #{tpu_custom_call.1} parent=1 // pred_region
      _
    $region9: #{tpu_custom_call.1} parent=1 // pred_fallthru
      _
    // Predicated region
    $region10: #{tpu_custom_call.1} parent=1 // pred_check
      _
    $region11: #{tpu_custom_call.1} parent=1 // pred_check_branch
      %33 = sbr.rel (0) target = $region13
    $region12: #{tpu_custom_call.1} parent=1 // pred_region
      _
    $region13: #{tpu_custom_call.1} parent=1 // pred_fallthru
      _
    // Predicated region
    $region14: #{tpu_custom_call.1} parent=1 // pred_check
      _
    $region15: #{tpu_custom_call.1} parent=1 // pred_check_branch
      %35 = sbr.rel (0) target = $region17
    $region16: #{tpu_custom_call.1} parent=1 // pred_region
      _
    $region17: #{tpu_custom_call.1} parent=1 // pred_fallthru
      _
    // Predicated region
    $region18: #{tpu_custom_call.1} parent=1 // pred_check
      _
    $region19: #{tpu_custom_call.1} parent=1 // pred_check_branch
      %37 = sbr.rel (0) target = $region21
    $region20: #{tpu_custom_call.1} parent=1 // pred_region
      _
    $region21: #{tpu_custom_call.1} parent=1 // pred_fallthru
      _
    // Predicated region
    $region22: #{tpu_custom_call.1} parent=1 // pred_check
      _
    $region23: #{tpu_custom_call.1} parent=1 // pred_check_branch
      %39 = sbr.rel (0) target = $region25
    $region24: #{tpu_custom_call.1} parent=1 // pred_region
      _
    $region25: #{tpu_custom_call.1} parent=1 // pred_fallthru
      _
    // Predicated region
    $region26: #{tpu_custom_call.1} parent=1 // pred_check
      _
    $region27: #{tpu_custom_call.1} parent=1 // pred_check_branch
      %41 = sbr.rel (0) target = $region29
    $region28: #{tpu_custom_call.1} parent=1 // pred_region
      _
    $region29: #{tpu_custom_call.1} parent=1 // pred_fallthru
      _
    // Predicated region
    $region30: #{tpu_custom_call.1} parent=1 // pred_check
      _
    $region31: #{tpu_custom_call.1} parent=1 // pred_check_branch
      %43 = sbr.rel (0) target = $region33
    $region32: #{tpu_custom_call.1} parent=1 // pred_region
      _
    $region33: #{tpu_custom_call.1} parent=1 // pred_fallthru
      _
    // Predicated region
    $region34: #{tpu_custom_call.1} parent=1 // pred_check
      _
    $region35: #{tpu_custom_call.1} parent=1 // pred_check_branch
      %45 = sbr.rel (0) target = $region37
    $region36: #{tpu_custom_call.1} parent=1 // pred_region
      _
    $region37: #{tpu_custom_call.1} parent=1 // pred_fallthru
      _
    // Predicated region
    $region38: #{tpu_custom_call.1} parent=1 // pred_check
      _
    $region39: #{tpu_custom_call.1} parent=1 // pred_check_branch
      %47 = sbr.rel (0) target = $region41
    $region40: #{tpu_custom_call.1} parent=1 // pred_region
      _
    $region41: #{tpu_custom_call.1} parent=1 // pred_fallthru
      _
    // Predicated region
    $region42: #{tpu_custom_call.1} parent=1 // pred_check
      _
    $region43: #{tpu_custom_call.1} parent=1 // pred_check_branch
      %49 = sbr.rel (0) target = $region45
    $region44: #{tpu_custom_call.1} parent=1 // pred_region
      _
    $region45: #{tpu_custom_call.1} parent=1 // pred_fallthru
      _
    // Predicated region
    $region46: #{tpu_custom_call.1} parent=1 // pred_check
      _
    $region47: #{tpu_custom_call.1} parent=1 // pred_check_branch
      %51 = sbr.rel (0) target = $region49
    $region48: #{tpu_custom_call.1} parent=1 // pred_region
      _
    $region49: #{tpu_custom_call.1} parent=1 // pred_fallthru
      _
    // Predicated region
    $region50: #{tpu_custom_call.1} parent=1 // pred_check
      _
    $region51: #{tpu_custom_call.1} parent=1 // pred_check_branch
      %53 = sbr.rel (0) target = $region53
    $region52: #{tpu_custom_call.1} parent=1 // pred_region
      _
    $region53: #{tpu_custom_call.1} parent=1 // pred_fallthru
      _
    // Predicated region
    $region54: #{tpu_custom_call.1} parent=1 // pred_check
      _
    $region55: #{tpu_custom_call.1} parent=1 // pred_check_branch
      %55 = sbr.rel (0) target = $region57
    $region56: #{tpu_custom_call.1} parent=1 // pred_region
      _
    $region57: #{tpu_custom_call.1} parent=1 // pred_fallthru
      _
    // Predicated region
    $region58: #{tpu_custom_call.1} parent=1 // pred_check
      _
    $region59: #{tpu_custom_call.1} parent=1 // pred_check_branch
      %57 = sbr.rel (0) target = $region61
    $region60: #{tpu_custom_call.1} parent=1 // pred_region
      _
    $region61: #{tpu_custom_call.1} parent=1 // pred_fallthru
      _
    // Predicated region
    $region62: #{tpu_custom_call.1} parent=1 // pred_check
      _
    $region63: #{tpu_custom_call.1} parent=1 // pred_check_branch
      %59 = sbr.rel (0) target = $region65
    $region64: #{tpu_custom_call.1} parent=1 // pred_region
      _
    $region65: #{tpu_custom_call.1} parent=1 // pred_fallthru
      _
    // Predicated region
    $region66: #{tpu_custom_call.1} parent=1 // pred_check
      _
    $region67: #{tpu_custom_call.1} parent=1 // pred_check_branch
      %61 = sbr.rel (0) target = $region69
    $region68: #{tpu_custom_call.1} parent=1 // pred_region
      _
    $region69: #{tpu_custom_call.1} parent=1 // pred_fallthru
      _
    // Predicated region
    $region70: #{tpu_custom_call.1} parent=1 // pred_check
      _
    $region71: #{tpu_custom_call.1} parent=1 // pred_check_branch
      %63 = sbr.rel (0) target = $region73
    $region72: #{tpu_custom_call.1} parent=1 // pred_region
      _
    $region73: #{tpu_custom_call.1} parent=1 // pred_fallthru
      _
    // Predicated region
    $region74: #{tpu_custom_call.1} parent=1 // pred_check
      _
    $region75: #{tpu_custom_call.1} parent=1 // pred_check_branch
      %65 = sbr.rel (0) target = $region77
    $region76: #{tpu_custom_call.1} parent=1 // pred_region
      _
    $region77: #{tpu_custom_call.1} parent=1 // pred_fallthru
      _
    // Predicated region
    $region78: #{tpu_custom_call.1} parent=1 // pred_check
      _
    $region79: #{tpu_custom_call.1} parent=1 // pred_check_branch
      %67 = sbr.rel (0) target = $region81
    $region80: #{tpu_custom_call.1} parent=1 // pred_region
      _
    $region81: #{tpu_custom_call.1} parent=1 // pred_fallthru
      _
    // Predicated region
    $region82: #{tpu_custom_call.1} parent=1 // pred_check
      _
    $region83: #{tpu_custom_call.1} parent=1 // pred_check_branch
      %69 = sbr.rel (0) target = $region85
    $region84: #{tpu_custom_call.1} parent=1 // pred_region
      _
    $region85: #{tpu_custom_call.1} parent=1 // pred_fallthru
      _
    // Predicated region
    $region86: #{tpu_custom_call.1} parent=1 // pred_check
      _
    $region87: #{tpu_custom_call.1} parent=1 // pred_check_branch
      %71 = sbr.rel (0) target = $region89
    $region88: #{tpu_custom_call.1} parent=1 // pred_region
      _
    $region89: #{tpu_custom_call.1} parent=1 // pred_fallthru
      _
    %v73 = vld [vmem:[%s0] sm:$0xff]
    %v74 = vlaneseq
    %v75 = vand.u32 %v74, 127
    %76 = vset.pattern.permute.xlu0 0
    %77 = vperm.xlu0 %76, %v73
    %v78 = vpop.permute.xlu0 %77
    %vm79 = vcmp.eq.s32.totalorder %v75, %v78
    %v80 = vsel %vm79, 1, 0
    %v81 = vcvt.s32.f32 %v80
    %v82 = vld [vmem:[%s1] sm:$0xff]
    %v83 = vld [vmem:[%s1 + $0x8] sm:$0xff]
    %v84 = vld [vmem:[%s1 + $0x10] sm:$0xff]
    %v85 = vld [vmem:[%s1 + $0x18] sm:$0xff]
    %v86 = vld [vmem:[%s1 + $0x20] sm:$0xff]
    %v87 = vld [vmem:[%s1 + $0x28] sm:$0xff]
    %v88 = vld [vmem:[%s1 + $0x30] sm:$0xff]
    %v89 = vld [vmem:[%s1 + $0x38] sm:$0xff]
    %v90 = vld [vmem:[%s1 + $0x40] sm:$0xff]
    %v91 = vld [vmem:[%s1 + $0x48] sm:$0xff]
    %v92 = vld [vmem:[%s1 + $0x50] sm:$0xff]
    %v93 = vld [vmem:[%s1 + $0x58] sm:$0xff]
    %v94 = vld [vmem:[%s1 + $0x60] sm:$0xff]
    %v95 = vld [vmem:[%s1 + $0x68] sm:$0xff]
    %v96 = vld [vmem:[%s1 + $0x70] sm:$0xff]
    %v97 = vld [vmem:[%s1 + $0x78] sm:$0xff]
    %98 = vmatprep.subr.mxu0 0.0
    %99 = vmatpush1.msra.mxu0 %v97
    %100 = vmatprep.subr.mxu0 0.0
    %101 = vmatpush1.msra.mxu0 %v96
    %102 = vmatprep.subr.mxu0 0.0
    %103 = vmatpush1.msra.mxu0 %v95
    %104 = vmatprep.subr.mxu0 0.0
    %105 = vmatpush1.msra.mxu0 %v94
    %106 = vmatprep.subr.mxu0 0.0
    %107 = vmatpush1.msra.mxu0 %v93
    %108 = vmatprep.subr.mxu0 0.0
    %109 = vmatpush1.msra.mxu0 %v92
    %110 = vmatprep.subr.mxu0 0.0
    %111 = vmatpush1.msra.mxu0 %v91
    %112 = vmatprep.subr.mxu0 0.0
    %113 = vmatpush1.msra.mxu0 %v90
    %114 = vmatprep.subr.mxu0 0.0
    %115 = vmatpush1.msra.mxu0 %v89
    %116 = vmatprep.subr.mxu0 0.0
    %117 = vmatpush1.msra.mxu0 %v88
    %118 = vmatprep.subr.mxu0 0.0
    %119 = vmatpush1.msra.mxu0 %v87
    %120 = vmatprep.subr.mxu0 0.0
    %121 = vmatpush1.msra.mxu0 %v86
    %122 = vmatprep.subr.mxu0 0.0
    %123 = vmatpush1.msra.mxu0 %v85
    %124 = vmatprep.subr.mxu0 0.0
    %125 = vmatpush1.msra.mxu0 %v84
    %126 = vmatprep.subr.mxu0 0.0
    %127 = vmatpush1.msra.mxu0 %v83
    %128 = vmatprep.subr.mxu0 0.0
    %129 = vmatpush1.msra.mxu0 %v82
    %130 = vmatprep.subr.mxu0 0.0
    %131 = vmatpush2.msra.mxu0 0.0
    %132 = vmatprep.subr.mxu0 0.0
    %133 = vmatpush2.msra.mxu0 0.0
    %134 = vmatprep.subr.mxu0 0.0
    %135 = vmatpush2.msra.mxu0 0.0
    %136 = vmatprep.subr.mxu0 0.0
    %137 = vmatpush2.msra.mxu0 0.0
    %138 = vmatprep.subr.mxu0 0.0
    %139 = vmatpush2.msra.mxu0 0.0
    %140 = vmatprep.subr.mxu0 0.0
    %141 = vmatpush2.msra.mxu0 0.0
    %142 = vmatprep.subr.mxu0 0.0
    %143 = vmatpush2.msra.mxu0 0.0
    %144 = vmatprep.subr.mxu0 0.0
    %145 = vmatpush2.msra.mxu0 0.0
    %146 = vmatprep.subr.mxu0 0.0
    %147 = vmatpush2.msra.mxu0 0.0
    %148 = vmatprep.subr.mxu0 0.0
    %149 = vmatpush2.msra.mxu0 0.0
    %150 = vmatprep.subr.mxu0 0.0
    %151 = vmatpush2.msra.mxu0 0.0
    %152 = vmatprep.subr.mxu0 0.0
    %153 = vmatpush2.msra.mxu0 0.0
    %154 = vmatprep.subr.mxu0 0.0
    %155 = vmatpush2.msra.mxu0 0.0
    %156 = vmatprep.subr.mxu0 0.0
    %157 = vmatpush2.msra.mxu0 0.0
    %158 = vmatprep.subr.mxu0 0.0
    %159 = vmatpush2.msra.mxu0 0.0
    %160 = vmatprep.subr.mxu0 0.0
    %161 = vmatpush2.msra.mxu0 0.0
    %162 = vmatprep.mubr.f32.mxu0 0.0
    %163 = vmatmul.mubr.f32.gmra.mxu0 %v81
    %v164 = vpop.f32.mrf.mxu0
    %v165 = vadd.f32 0.0, %v164
    %v166 = vpop.f32.mrf.mxu0
    %167 = vdwg.mxu0
    %v168 = vld [vmem:[%s16] sm:$0xff]
    %v169 = vld [vmem:[%s17] sm:$0xff]
    %v170 = vld [vmem:[%s18] sm:$0xff]
    %v171 = vld [vmem:[%s19] sm:$0xff]
    %v172 = vld [vmem:[%s20] sm:$0xff]
    %v173 = vld [vmem:[%s20 + $0x8] sm:$0xff]
    %v174 = vld [vmem:[%s20 + $0x10] sm:$0xff]
    %v175 = vld [vmem:[%s20 + $0x18] sm:$0xff]
    %v176 = vld [vmem:[%s20 + $0x20] sm:$0xff]
    %v177 = vld [vmem:[%s20 + $0x28] sm:$0xff]
    %v178 = vld [vmem:[%s20 + $0x30] sm:$0xff]
    %v179 = vld [vmem:[%s20 + $0x38] sm:$0xff]
    %v180 = vld [vmem:[%s21] sm:$0xff]
    %v181 = vld [vmem:[%s21 + $0x8] sm:$0xff]
    %v182 = vld [vmem:[%s21 + $0x10] sm:$0xff]
    %v183 = vld [vmem:[%s21 + $0x18] sm:$0xff]
    %v184 = vlaneseq
    %v185 = vshrl.u32 %v184, 7
    %vm186 = vcmp.ge.s32.totalorder %v185, %v75
    %v187 = vld [vmem:[%s2] sm:$0x1]
    %v188 = vld [vmem:[%s3] sm:$0x1]
    %vm189 = vcmask 523264
    %v190 = vsel %vm189, %v165, 0.0
    %191 = vadd.xlane.f32.xlu0 %v190
    %v192 = vpop.xlane.xlu0 %191
    %v193 = vrcp.pop 64.0
    %v194 = vmul.f32 %v192, %v193
    %v195 = vsub.f32 %v165, %v194
    %v196 = vmul.f32 %v195, %v195
    %v197 = vsel %vm189, %v196, 0.0
    %198 = vadd.xlane.f32.xlu0 %v197
    %v199 = vpop.xlane.xlu0 %198
    %v200 = vmul.f32 %v199, %v193
    %v201 = vadd.f32 %v200, 1e-05
    %v202 = vrsqrt.pop %v201
    %v203 = vmul.f32 %v195, %v202
    %v205 = vlaneseq
    %v206 = vshrl.u32 %v205, 7
    %v207 = vsub.s32 0, %v206
    %v208 = vrot.slane %v187, %v207
    %v210 = vmul.f32 %v203, %v208
    %v212 = vlaneseq
    %v213 = vshrl.u32 %v212, 7
    %v214 = vsub.s32 0, %v213
    %v215 = vrot.slane %v188, %v214
    %v217 = vadd.f32 %v210, %v215
    %v218 = vpack.c.bf16 %v217, %v217
    %v219 = vld [vmem:[%s6] sm:$0xf]
    %v220 = vld [vmem:[%s6 + $0x4] sm:$0xf]
    %v221 = vld [vmem:[%s6 + $0x8] sm:$0xf]
    %v222 = vld [vmem:[%s6 + $0xc] sm:$0xf]
    %v223 = vld [vmem:[%s6 + $0x10] sm:$0xf]
    %v224 = vld [vmem:[%s6 + $0x14] sm:$0xf]
    %v225 = vld [vmem:[%s6 + $0x18] sm:$0xf]
    %v226 = vld [vmem:[%s6 + $0x1c] sm:$0xf]
    %v227 = vld [vmem:[%s7] sm:$0x1]
    %v229 = vlaneseq
    %v230 = vshrl.u32 %v229, 7
    %v231 = vsub.s32 0, %v230
    %v232 = vrot.slane %v227, %v231
    %v242 = vunpack.c.l.b16 %v219
    %v243 = vunpack.c.l.b16 %v220
    %v244 = vunpack.c.l.b16 %v221
    %v245 = vunpack.c.l.b16 %v222
    %v246 = vunpack.c.l.b16 %v223
    %v247 = vunpack.c.l.b16 %v224
    %v248 = vunpack.c.l.b16 %v225
    %v249 = vunpack.c.l.b16 %v226
    %v250 = vpack.c.b16 %v243, %v242
    %v251 = vpack.c.b16 %v245, %v244
    %v252 = vpack.c.b16 %v247, %v246
    %v253 = vpack.c.b16 %v249, %v248
    %v259 = vsel %vm189, %v218, 0
    %261 = vmatprep.subr.bf16.mxu0 0
    %262 = vmatpush1.bf16.msra.mxu0 0
    %263 = vmatprep.subr.bf16.mxu0 0
    %264 = vmatpush1.bf16.msra.mxu0 0
    %265 = vmatprep.subr.bf16.mxu0 0
    %266 = vmatpush1.bf16.msra.mxu0 0
    %267 = vmatprep.subr.bf16.mxu0 0
    %268 = vmatpush1.bf16.msra.mxu0 0
    %269 = vmatprep.subr.bf16.mxu0 0
    %270 = vmatpush1.bf16.msra.mxu0 %v253
    %271 = vmatprep.subr.bf16.mxu0 0
    %272 = vmatpush1.bf16.msra.mxu0 %v252
    %273 = vmatprep.subr.bf16.mxu0 0
    %274 = vmatpush1.bf16.msra.mxu0 %v251
    %275 = vmatprep.subr.bf16.mxu0 0
    %276 = vmatpush1.bf16.msra.mxu0 %v250
    %277 = vmatprep.subr.bf16.mxu0 0
    %278 = vmatpush2.bf16.msra.mxu0 0
    %279 = vmatprep.subr.bf16.mxu0 0
    %280 = vmatpush2.bf16.msra.mxu0 0
    %281 = vmatprep.subr.bf16.mxu0 0
    %282 = vmatpush2.bf16.msra.mxu0 0
    %283 = vmatprep.subr.bf16.mxu0 0
    %284 = vmatpush2.bf16.msra.mxu0 0
    %285 = vmatprep.subr.bf16.mxu0 0
    %286 = vmatpush2.bf16.msra.mxu0 0
    %287 = vmatprep.subr.bf16.mxu0 0
    %288 = vmatpush2.bf16.msra.mxu0 0
    %289 = vmatprep.subr.bf16.mxu0 0
    %290 = vmatpush2.bf16.msra.mxu0 0
    %291 = vmatprep.subr.bf16.mxu0 0
    %292 = vmatpush2.bf16.msra.mxu0 0
    %293 = vmatprep.mubr.bf16.mxu0 0
    %294 = vmatmul.mubr.bf16.gmra.mxu0 %v259
    %v295 = vpop.f32.mrf.mxu0
    %v296 = vadd.f32 %v232, %v295
    %v297 = vpop.f32.mrf.mxu0
    %v298 = vpop.f32.mrf.mxu0
    %v299 = vpop.f32.mrf.mxu0
    %300 = vdwg.mxu0
    %v301 = vmul.f32 %v296, %v168
    %v303 = vsel %vm189, %v296, 0
    %305 = vmatprep.subr.mxu0 0.0
    %306 = vmatpush1.msra.mxu0 0.0
    %307 = vmatprep.subr.mxu0 0.0
    %308 = vmatpush1.msra.mxu0 0.0
    %309 = vmatprep.subr.mxu0 0.0
    %310 = vmatpush1.msra.mxu0 0.0
    %311 = vmatprep.subr.mxu0 0.0
    %312 = vmatpush1.msra.mxu0 0.0
    %313 = vmatprep.subr.mxu0 0.0
    %314 = vmatpush1.msra.mxu0 0.0
    %315 = vmatprep.subr.mxu0 0.0
    %316 = vmatpush1.msra.mxu0 0.0
    %317 = vmatprep.subr.mxu0 0.0
    %318 = vmatpush1.msra.mxu0 0.0
    %319 = vmatprep.subr.mxu0 0.0
    %320 = vmatpush1.msra.mxu0 0.0
    %321 = vmatprep.subr.mxu0 0.0
    %322 = vmatpush1.msra.mxu0 %v179
    %323 = vmatprep.subr.mxu0 0.0
    %324 = vmatpush1.msra.mxu0 %v178
    %325 = vmatprep.subr.mxu0 0.0
    %326 = vmatpush1.msra.mxu0 %v177
    %327 = vmatprep.subr.mxu0 0.0
    %328 = vmatpush1.msra.mxu0 %v176
    %329 = vmatprep.subr.mxu0 0.0
    %330 = vmatpush1.msra.mxu0 %v175
    %331 = vmatprep.subr.mxu0 0.0
    %332 = vmatpush1.msra.mxu0 %v174
    %333 = vmatprep.subr.mxu0 0.0
    %334 = vmatpush1.msra.mxu0 %v173
    %335 = vmatprep.subr.mxu0 0.0
    %336 = vmatpush1.msra.mxu0 %v172
    %337 = vmatprep.subr.mxu0 0.0
    %338 = vmatpush2.msra.mxu0 0.0
    %339 = vmatprep.subr.mxu0 0.0
    %340 = vmatpush2.msra.mxu0 0.0
    %341 = vmatprep.subr.mxu0 0.0
    %342 = vmatpush2.msra.mxu0 0.0
    %343 = vmatprep.subr.mxu0 0.0
    %344 = vmatpush2.msra.mxu0 0.0
    %345 = vmatprep.subr.mxu0 0.0
    %346 = vmatpush2.msra.mxu0 0.0
    %347 = vmatprep.subr.mxu0 0.0
    %348 = vmatpush2.msra.mxu0 0.0
    %349 = vmatprep.subr.mxu0 0.0
    %350 = vmatpush2.msra.mxu0 0.0
    %351 = vmatprep.subr.mxu0 0.0
    %352 = vmatpush2.msra.mxu0 0.0
    %353 = vmatprep.subr.mxu0 0.0
    %354 = vmatpush2.msra.mxu0 0.0
    %355 = vmatprep.subr.mxu0 0.0
    %356 = vmatpush2.msra.mxu0 0.0
    %357 = vmatprep.subr.mxu0 0.0
    %358 = vmatpush2.msra.mxu0 0.0
    %359 = vmatprep.subr.mxu0 0.0
    %360 = vmatpush2.msra.mxu0 0.0
    %361 = vmatprep.subr.mxu0 0.0
    %362 = vmatpush2.msra.mxu0 0.0
    %363 = vmatprep.subr.mxu0 0.0
    %364 = vmatpush2.msra.mxu0 0.0
    %365 = vmatprep.subr.mxu0 0.0
    %366 = vmatpush2.msra.mxu0 0.0
    %367 = vmatprep.subr.mxu0 0.0
    %368 = vmatpush2.msra.mxu0 0.0
    %369 = vmatprep.mubr.f32.mxu0 0.0
    %370 = vmatmul.mubr.f32.gmra.mxu0 %v303
    %v371 = vpop.f32.mrf.mxu0
    %v372 = vadd.f32 0.0, %v371
    %v373 = vpop.f32.mrf.mxu0
    %374 = vdwg.mxu0
    %v375 = vmul.f32 %v372, %v169
    %v376 = vadd.f32 %v301, %v375
    %378 = vrot.lane.b32.xlu0 %v170, 64
    %v379 = vpop.permute.xlu0 %378
    %v381 = vmul.f32 %v296, %v379
    %382 = vrot.lane.b32.xlu0 %v296, 64
    %v383 = vpop.permute.xlu0 %382
    %vm384 = vcmask 261120
    %v385 = vsel %vm384, %v383, 0
    %387 = vmatprep.subr.mxu0 0.0
    %388 = vmatpush1.msra.mxu0 0.0
    %389 = vmatprep.subr.mxu0 0.0
    %390 = vmatpush1.msra.mxu0 0.0
    %391 = vmatprep.subr.mxu0 0.0
    %392 = vmatpush1.msra.mxu0 0.0
    %393 = vmatprep.subr.mxu0 0.0
    %394 = vmatpush1.msra.mxu0 0.0
    %395 = vmatprep.subr.mxu0 0.0
    %396 = vmatpush1.msra.mxu0 0.0
    %397 = vmatprep.subr.mxu0 0.0
    %398 = vmatpush1.msra.mxu0 0.0
    %399 = vmatprep.subr.mxu0 0.0
    %400 = vmatpush1.msra.mxu0 0.0
    %401 = vmatprep.subr.mxu0 0.0
    %402 = vmatpush1.msra.mxu0 0.0
    %403 = vmatprep.subr.mxu0 0.0
    %404 = vmatpush1.msra.mxu0 0.0
    %405 = vmatprep.subr.mxu0 0.0
    %406 = vmatpush1.msra.mxu0 0.0
    %407 = vmatprep.subr.mxu0 0.0
    %408 = vmatpush1.msra.mxu0 0.0
    %409 = vmatprep.subr.mxu0 0.0
    %410 = vmatpush1.msra.mxu0 0.0
    %411 = vmatprep.subr.mxu0 0.0
    %412 = vmatpush1.msra.mxu0 %v183
    %413 = vmatprep.subr.mxu0 0.0
    %414 = vmatpush1.msra.mxu0 %v182
    %415 = vmatprep.subr.mxu0 0.0
    %416 = vmatpush1.msra.mxu0 %v181
    %417 = vmatprep.subr.mxu0 0.0
    %418 = vmatpush1.msra.mxu0 %v180
    %419 = vmatprep.subr.mxu0 0.0
    %420 = vmatpush2.msra.mxu0 0.0
    %421 = vmatprep.subr.mxu0 0.0
    %422 = vmatpush2.msra.mxu0 0.0
    %423 = vmatprep.subr.mxu0 0.0
    %424 = vmatpush2.msra.mxu0 0.0
    %425 = vmatprep.subr.mxu0 0.0
    %426 = vmatpush2.msra.mxu0 0.0
    %427 = vmatprep.subr.mxu0 0.0
    %428 = vmatpush2.msra.mxu0 0.0
    %429 = vmatprep.subr.mxu0 0.0
    %430 = vmatpush2.msra.mxu0 0.0
    %431 = vmatprep.subr.mxu0 0.0
    %432 = vmatpush2.msra.mxu0 0.0
    %433 = vmatprep.subr.mxu0 0.0
    %434 = vmatpush2.msra.mxu0 0.0
    %435 = vmatprep.subr.mxu0 0.0
    %436 = vmatpush2.msra.mxu0 0.0
    %437 = vmatprep.subr.mxu0 0.0
    %438 = vmatpush2.msra.mxu0 0.0
    %439 = vmatprep.subr.mxu0 0.0
    %440 = vmatpush2.msra.mxu0 0.0
    %441 = vmatprep.subr.mxu0 0.0
    %442 = vmatpush2.msra.mxu0 0.0
    %443 = vmatprep.subr.mxu0 0.0
    %444 = vmatpush2.msra.mxu0 0.0
    %445 = vmatprep.subr.mxu0 0.0
    %446 = vmatpush2.msra.mxu0 0.0
    %447 = vmatprep.subr.mxu0 0.0
    %448 = vmatpush2.msra.mxu0 0.0
    %449 = vmatprep.subr.mxu0 0.0
    %450 = vmatpush2.msra.mxu0 0.0
    %451 = vmatprep.mubr.f32.mxu0 0.0
    %452 = vmatmul.mubr.f32.gmra.mxu0 %v385
    %v453 = vpop.f32.mrf.mxu0
    %v454 = vadd.f32 0.0, %v453
    %v455 = vpop.f32.mrf.mxu0
    %456 = vdwg.mxu0
    %v457 = vmul.f32 %v454, %v171
    %459 = vrot.lane.b32.xlu0 %v457, 64
    %v460 = vpop.permute.xlu0 %459
    %v462 = vadd.f32 %v381, %v460
    %v463 = vld [vmem:[%s8] sm:$0xf]
    %v464 = vld [vmem:[%s8 + $0x4] sm:$0xf]
    %v465 = vld [vmem:[%s8 + $0x8] sm:$0xf]
    %v466 = vld [vmem:[%s8 + $0xc] sm:$0xf]
    %v467 = vld [vmem:[%s8 + $0x10] sm:$0xf]
    %v468 = vld [vmem:[%s8 + $0x14] sm:$0xf]
    %v469 = vld [vmem:[%s8 + $0x18] sm:$0xf]
    %v470 = vld [vmem:[%s8 + $0x1c] sm:$0xf]
    %v471 = vpack.c.bf16 %v376, %v376
    %v472 = vpack.c.bf16 %v462, %v462
    %v473 = vpack.c.bf16 %v296, %v296
    %475 = vrot.lane.b32.xlu0 %v472, 64
    %v476 = vpop.permute.xlu0 %475
    %vm477 = vcmask 130048
    %v479 = vsel %vm477, %v471, 0
    %v482 = vsel %vm477, %v476, 0
    %484 = vmatprep.subr.bf16.mxu0 0
    %485 = vmatpush1.bf16.xpose.msra.mxu0 0
    %486 = vmatprep.subr.bf16.mxu0 0
    %487 = vmatpush1.bf16.xpose.msra.mxu0 0
    %488 = vmatprep.subr.bf16.mxu0 0
    %489 = vmatpush1.bf16.xpose.msra.mxu0 0
    %490 = vmatprep.subr.bf16.mxu0 0
    %491 = vmatpush1.bf16.xpose.msra.mxu0 0
    %492 = vmatprep.subr.bf16.mxu0 0
    %493 = vmatpush1.bf16.xpose.msra.mxu0 0
    %494 = vmatprep.subr.bf16.mxu0 0
    %495 = vmatpush1.bf16.xpose.msra.mxu0 0
    %496 = vmatprep.subr.bf16.mxu0 0
    %497 = vmatpush1.bf16.xpose.msra.mxu0 0
    %498 = vmatprep.subr.bf16.mxu0 0
    %499 = vmatpush1.bf16.xpose.msra.mxu0 %v482
    %500 = vmatprep.subr.bf16.mxu0 0
    %501 = vmatpush2.bf16.xpose.msra.mxu0 0
    %502 = vmatprep.subr.bf16.mxu0 0
    %503 = vmatpush2.bf16.xpose.msra.mxu0 0
    %504 = vmatprep.subr.bf16.mxu0 0
    %505 = vmatpush2.bf16.xpose.msra.mxu0 0
    %506 = vmatprep.subr.bf16.mxu0 0
    %507 = vmatpush2.bf16.xpose.msra.mxu0 0
    %508 = vmatprep.subr.bf16.mxu0 0
    %509 = vmatpush2.bf16.xpose.msra.mxu0 0
    %510 = vmatprep.subr.bf16.mxu0 0
    %511 = vmatpush2.bf16.xpose.msra.mxu0 0
    %512 = vmatprep.subr.bf16.mxu0 0
    %513 = vmatpush2.bf16.xpose.msra.mxu0 0
    %514 = vmatprep.subr.bf16.mxu0 0
    %515 = vmatpush2.bf16.xpose.msra.mxu0 0
    %516 = vmatprep.mubr.bf16.mxu0 0
    %517 = vmatmul.mubr.bf16.gmra.mxu0 %v479
    %v518 = vpop.f32.mrf.mxu0
    %v519 = vadd.f32 0.0, %v518
    %v520 = vpop.f32.mrf.mxu0
    %v521 = vpop.f32.mrf.mxu0
    %v522 = vpop.f32.mrf.mxu0
    %523 = vdwg.mxu0
    %v524 = vmul.f32 %v519, 0.25
    %v525 = vsel %vm186, %v524, -inf
    %vm526 = vcmask 64512
    %v527 = vsel %vm526, %v525, -inf
    %528 = vmax.xlane.f32.xlu0 %v527
    %v529 = vpop.xlane.xlu0 %528
    %v530 = vsub.f32 %v525, %v529
    %v531 = vmul.f32 %v530, 1.442695
    %v532 = vpow.pop %v531
    %v533 = vsel %vm526, %v532, 0.0
    %534 = vadd.xlane.f32.xlu0 %v533
    %v535 = vpop.xlane.xlu0 %534
    %v536 = vpack.c.bf16 %v532, %v532
    %538 = vrot.lane.b32.xlu0 %v473, 32
    %v539 = vpop.permute.xlu0 %538
    %v541 = vsel %vm526, %v536, 0
    %vm543 = vcmask 1043456
    %v545 = vsel %vm543, %v539, 0
    %547 = vmatprep.subr.bf16.mxu0 0
    %548 = vmatpush1.bf16.msra.mxu0 0
    %549 = vmatprep.subr.bf16.mxu0 0
    %550 = vmatpush1.bf16.msra.mxu0 0
    %551 = vmatprep.subr.bf16.mxu0 0
    %552 = vmatpush1.bf16.msra.mxu0 0
    %553 = vmatprep.subr.bf16.mxu0 0
    %554 = vmatpush1.bf16.msra.mxu0 0
    %555 = vmatprep.subr.bf16.mxu0 0
    %556 = vmatpush1.bf16.msra.mxu0 0
    %557 = vmatprep.subr.bf16.mxu0 0
    %558 = vmatpush1.bf16.msra.mxu0 0
    %559 = vmatprep.subr.bf16.mxu0 0
    %560 = vmatpush1.bf16.msra.mxu0 0
    %561 = vmatprep.subr.bf16.mxu0 0
    %562 = vmatpush1.bf16.msra.mxu0 %v545
    %563 = vmatprep.subr.bf16.mxu0 0
    %564 = vmatpush2.bf16.msra.mxu0 0
    %565 = vmatprep.subr.bf16.mxu0 0
    %566 = vmatpush2.bf16.msra.mxu0 0
    %567 = vmatprep.subr.bf16.mxu0 0
    %568 = vmatpush2.bf16.msra.mxu0 0
    %569 = vmatprep.subr.bf16.mxu0 0
    %570 = vmatpush2.bf16.msra.mxu0 0
    %571 = vmatprep.subr.bf16.mxu0 0
    %572 = vmatpush2.bf16.msra.mxu0 0
    %573 = vmatprep.subr.bf16.mxu0 0
    %574 = vmatpush2.bf16.msra.mxu0 0
    %575 = vmatprep.subr.bf16.mxu0 0
    %576 = vmatpush2.bf16.msra.mxu0 0
    %577 = vmatprep.subr.bf16.mxu0 0
    %578 = vmatpush2.bf16.msra.mxu0 0
    %579 = vmatprep.mubr.bf16.mxu0 0
    %580 = vmatmul.mubr.bf16.gmra.mxu0 %v541
    %v581 = vpop.f32.mrf.mxu0
    %v582 = vadd.f32 0.0, %v581
    %v583 = vpop.f32.mrf.mxu0
    %v584 = vpop.f32.mrf.mxu0
    %v585 = vpop.f32.mrf.mxu0
    %586 = vdwg.mxu0
    %v587 = vrcp.pop %v535
    %v588 = vmul.f32 %v582, %v587
    %v589 = vpack.c.bf16 %v588, %v588
    %591 = vrot.lane.b32.xlu0 %v471, 112
    %v592 = vpop.permute.xlu0 %591
    %v594 = vsel %vm477, %v592, 0
    %596 = vmatprep.subr.bf16.mxu0 0
    %597 = vmatpush1.bf16.xpose.msra.mxu0 0
    %598 = vmatprep.subr.bf16.mxu0 0
    %599 = vmatpush1.bf16.xpose.msra.mxu0 0
    %600 = vmatprep.subr.bf16.mxu0 0
    %601 = vmatpush1.bf16.xpose.msra.mxu0 0
    %602 = vmatprep.subr.bf16.mxu0 0
    %603 = vmatpush1.bf16.xpose.msra.mxu0 0
    %604 = vmatprep.subr.bf16.mxu0 0
    %605 = vmatpush1.bf16.xpose.msra.mxu0 0
    %606 = vmatprep.subr.bf16.mxu0 0
    %607 = vmatpush1.bf16.xpose.msra.mxu0 0
    %608 = vmatprep.subr.bf16.mxu0 0
    %609 = vmatpush1.bf16.xpose.msra.mxu0 0
    %610 = vmatprep.subr.bf16.mxu0 0
    %611 = vmatpush1.bf16.xpose.msra.mxu0 %v482
    %612 = vmatprep.subr.bf16.mxu0 0
    %613 = vmatpush2.bf16.xpose.msra.mxu0 0
    %614 = vmatprep.subr.bf16.mxu0 0
    %615 = vmatpush2.bf16.xpose.msra.mxu0 0
    %616 = vmatprep.subr.bf16.mxu0 0
    %617 = vmatpush2.bf16.xpose.msra.mxu0 0
    %618 = vmatprep.subr.bf16.mxu0 0
    %619 = vmatpush2.bf16.xpose.msra.mxu0 0
    %620 = vmatprep.subr.bf16.mxu0 0
    %621 = vmatpush2.bf16.xpose.msra.mxu0 0
    %622 = vmatprep.subr.bf16.mxu0 0
    %623 = vmatpush2.bf16.xpose.msra.mxu0 0
    %624 = vmatprep.subr.bf16.mxu0 0
    %625 = vmatpush2.bf16.xpose.msra.mxu0 0
    %626 = vmatprep.subr.bf16.mxu0 0
    %627 = vmatpush2.bf16.xpose.msra.mxu0 0
    %628 = vmatprep.mubr.bf16.mxu0 0
    %629 = vmatmul.mubr.bf16.gmra.mxu0 %v594
    %v630 = vpop.f32.mrf.mxu0
    %v631 = vadd.f32 0.0, %v630
    %v632 = vpop.f32.mrf.mxu0
    %v633 = vpop.f32.mrf.mxu0
    %v634 = vpop.f32.mrf.mxu0
    %635 = vdwg.mxu0
    %v636 = vmul.f32 %v631, 0.25
    %v637 = vsel %vm186, %v636, -inf
    %v638 = vsel %vm526, %v637, -inf
    %639 = vmax.xlane.f32.xlu0 %v638
    %v640 = vpop.xlane.xlu0 %639
    %v641 = vsub.f32 %v637, %v640
    %v642 = vmul.f32 %v641, 1.442695
    %v643 = vpow.pop %v642
    %v644 = vsel %vm526, %v643, 0.0
    %645 = vadd.xlane.f32.xlu0 %v644
    %v646 = vpop.xlane.xlu0 %645
    %v647 = vpack.c.bf16 %v643, %v643
    %v649 = vsel %vm526, %v647, 0
    %651 = vmatprep.subr.bf16.mxu0 0
    %652 = vmatpush1.bf16.msra.mxu0 0
    %653 = vmatprep.subr.bf16.mxu0 0
    %654 = vmatpush1.bf16.msra.mxu0 0
    %655 = vmatprep.subr.bf16.mxu0 0
    %656 = vmatpush1.bf16.msra.mxu0 0
    %657 = vmatprep.subr.bf16.mxu0 0
    %658 = vmatpush1.bf16.msra.mxu0 0
    %659 = vmatprep.subr.bf16.mxu0 0
    %660 = vmatpush1.bf16.msra.mxu0 0
    %661 = vmatprep.subr.bf16.mxu0 0
    %662 = vmatpush1.bf16.msra.mxu0 0
    %663 = vmatprep.subr.bf16.mxu0 0
    %664 = vmatpush1.bf16.msra.mxu0 0
    %665 = vmatprep.subr.bf16.mxu0 0
    %666 = vmatpush1.bf16.msra.mxu0 %v545
    %667 = vmatprep.subr.bf16.mxu0 0
    %668 = vmatpush2.bf16.msra.mxu0 0
    %669 = vmatprep.subr.bf16.mxu0 0
    %670 = vmatpush2.bf16.msra.mxu0 0
    %671 = vmatprep.subr.bf16.mxu0 0
    %672 = vmatpush2.bf16.msra.mxu0 0
    %673 = vmatprep.subr.bf16.mxu0 0
    %674 = vmatpush2.bf16.msra.mxu0 0
    %675 = vmatprep.subr.bf16.mxu0 0
    %676 = vmatpush2.bf16.msra.mxu0 0
    %677 = vmatprep.subr.bf16.mxu0 0
    %678 = vmatpush2.bf16.msra.mxu0 0
    %679 = vmatprep.subr.bf16.mxu0 0
    %680 = vmatpush2.bf16.msra.mxu0 0
    %681 = vmatprep.subr.bf16.mxu0 0
    %682 = vmatpush2.bf16.msra.mxu0 0
    %683 = vmatprep.mubr.bf16.mxu0 0
    %684 = vmatmul.mubr.bf16.gmra.mxu0 %v649
    %v685 = vpop.f32.mrf.mxu0
    %v686 = vadd.f32 0.0, %v685
    %v687 = vpop.f32.mrf.mxu0
    %v688 = vpop.f32.mrf.mxu0
    %v689 = vpop.f32.mrf.mxu0
    %690 = vdwg.mxu0
    %v691 = vrcp.pop %v646
    %v692 = vmul.f32 %v686, %v691
    %v693 = vpack.c.bf16 %v692, %v692
    %v696 = vunpack.c.l.b16 %v465
    %v697 = vunpack.c.l.b16 %v466
    %v698 = vpack.c.b16 %v697, %v696
    %v701 = vsel %vm477, %v693, 0
    %703 = vmatprep.subr.bf16.mxu0 0
    %704 = vmatpush1.bf16.msra.mxu0 0
    %705 = vmatprep.subr.bf16.mxu0 0
    %706 = vmatpush1.bf16.msra.mxu0 0
    %707 = vmatprep.subr.bf16.mxu0 0
    %708 = vmatpush1.bf16.msra.mxu0 0
    %709 = vmatprep.subr.bf16.mxu0 0
    %710 = vmatpush1.bf16.msra.mxu0 0
    %711 = vmatprep.subr.bf16.mxu0 0
    %712 = vmatpush1.bf16.msra.mxu0 0
    %713 = vmatprep.subr.bf16.mxu0 0
    %714 = vmatpush1.bf16.msra.mxu0 0
    %715 = vmatprep.subr.bf16.mxu0 0
    %716 = vmatpush1.bf16.msra.mxu0 0
    %717 = vmatprep.subr.bf16.mxu0 0
    %718 = vmatpush1.bf16.msra.mxu0 %v698
    %719 = vmatprep.subr.bf16.mxu0 0
    %720 = vmatpush2.bf16.msra.mxu0 0
    %721 = vmatprep.subr.bf16.mxu0 0
    %722 = vmatpush2.bf16.msra.mxu0 0
    %723 = vmatprep.subr.bf16.mxu0 0
    %724 = vmatpush2.bf16.msra.mxu0 0
    %725 = vmatprep.subr.bf16.mxu0 0
    %726 = vmatpush2.bf16.msra.mxu0 0
    %727 = vmatprep.subr.bf16.mxu0 0
    %728 = vmatpush2.bf16.msra.mxu0 0
    %729 = vmatprep.subr.bf16.mxu0 0
    %730 = vmatpush2.bf16.msra.mxu0 0
    %731 = vmatprep.subr.bf16.mxu0 0
    %732 = vmatpush2.bf16.msra.mxu0 0
    %733 = vmatprep.subr.bf16.mxu0 0
    %734 = vmatpush2.bf16.msra.mxu0 0
    %735 = vmatprep.mubr.bf16.mxu0 0
    %736 = vmatmul.mubr.bf16.gmra.mxu0 %v701
    %v737 = vpop.f32.mrf.mxu0
    %v738 = vadd.f32 0.0, %v737
    %v739 = vpop.f32.mrf.mxu0
    %v740 = vpop.f32.mrf.mxu0
    %v741 = vpop.f32.mrf.mxu0
    %742 = vdwg.mxu0
    %v745 = vunpack.c.l.b16 %v463
    %v746 = vunpack.c.l.b16 %v464
    %v747 = vpack.c.b16 %v746, %v745
    %v750 = vsel %vm477, %v589, 0
    %752 = vmatprep.subr.bf16.mxu0 0
    %753 = vmatpush1.bf16.msra.mxu0 0
    %754 = vmatprep.subr.bf16.mxu0 0
    %755 = vmatpush1.bf16.msra.mxu0 0
    %756 = vmatprep.subr.bf16.mxu0 0
    %757 = vmatpush1.bf16.msra.mxu0 0
    %758 = vmatprep.subr.bf16.mxu0 0
    %759 = vmatpush1.bf16.msra.mxu0 0
    %760 = vmatprep.subr.bf16.mxu0 0
    %761 = vmatpush1.bf16.msra.mxu0 0
    %762 = vmatprep.subr.bf16.mxu0 0
    %763 = vmatpush1.bf16.msra.mxu0 0
    %764 = vmatprep.subr.bf16.mxu0 0
    %765 = vmatpush1.bf16.msra.mxu0 0
    %766 = vmatprep.subr.bf16.mxu0 0
    %767 = vmatpush1.bf16.msra.mxu0 %v747
    %768 = vmatprep.subr.bf16.mxu0 0
    %769 = vmatpush2.bf16.msra.mxu0 0
    %770 = vmatprep.subr.bf16.mxu0 0
    %771 = vmatpush2.bf16.msra.mxu0 0
    %772 = vmatprep.subr.bf16.mxu0 0
    %773 = vmatpush2.bf16.msra.mxu0 0
    %774 = vmatprep.subr.bf16.mxu0 0
    %775 = vmatpush2.bf16.msra.mxu0 0
    %776 = vmatprep.subr.bf16.mxu0 0
    %777 = vmatpush2.bf16.msra.mxu0 0
    %778 = vmatprep.subr.bf16.mxu0 0
    %779 = vmatpush2.bf16.msra.mxu0 0
    %780 = vmatprep.subr.bf16.mxu0 0
    %781 = vmatpush2.bf16.msra.mxu0 0
    %782 = vmatprep.subr.bf16.mxu0 0
    %783 = vmatpush2.bf16.msra.mxu0 0
    %784 = vmatprep.mubr.bf16.mxu0 0
    %785 = vmatmul.mubr.bf16.gmra.mxu0 %v750
    %v786 = vpop.f32.mrf.mxu0
    %v787 = vadd.f32 %v738, %v786
    %v788 = vpop.f32.mrf.mxu0
    %v789 = vpop.f32.mrf.mxu0
    %v790 = vpop.f32.mrf.mxu0
    %791 = vdwg.mxu0
    %792 = vrot.lane.b32.xlu0 %v471, 96
    %v793 = vpop.permute.xlu0 %792
    %794 = vrot.lane.b32.xlu0 %v472, 48
    %v795 = vpop.permute.xlu0 %794
    %v797 = vsel %vm477, %v793, 0
    %v800 = vsel %vm477, %v795, 0
    %802 = vmatprep.subr.bf16.mxu0 0
    %803 = vmatpush1.bf16.xpose.msra.mxu0 0
    %804 = vmatprep.subr.bf16.mxu0 0
    %805 = vmatpush1.bf16.xpose.msra.mxu0 0
    %806 = vmatprep.subr.bf16.mxu0 0
    %807 = vmatpush1.bf16.xpose.msra.mxu0 0
    %808 = vmatprep.subr.bf16.mxu0 0
    %809 = vmatpush1.bf16.xpose.msra.mxu0 0
    %810 = vmatprep.subr.bf16.mxu0 0
    %811 = vmatpush1.bf16.xpose.msra.mxu0 0
    %812 = vmatprep.subr.bf16.mxu0 0
    %813 = vmatpush1.bf16.xpose.msra.mxu0 0
    %814 = vmatprep.subr.bf16.mxu0 0
    %815 = vmatpush1.bf16.xpose.msra.mxu0 0
    %816 = vmatprep.subr.bf16.mxu0 0
    %817 = vmatpush1.bf16.xpose.msra.mxu0 %v800
    %818 = vmatprep.subr.bf16.mxu0 0
    %819 = vmatpush2.bf16.xpose.msra.mxu0 0
    %820 = vmatprep.subr.bf16.mxu0 0
    %821 = vmatpush2.bf16.xpose.msra.mxu0 0
    %822 = vmatprep.subr.bf16.mxu0 0
    %823 = vmatpush2.bf16.xpose.msra.mxu0 0
    %824 = vmatprep.subr.bf16.mxu0 0
    %825 = vmatpush2.bf16.xpose.msra.mxu0 0
    %826 = vmatprep.subr.bf16.mxu0 0
    %827 = vmatpush2.bf16.xpose.msra.mxu0 0
    %828 = vmatprep.subr.bf16.mxu0 0
    %829 = vmatpush2.bf16.xpose.msra.mxu0 0
    %830 = vmatprep.subr.bf16.mxu0 0
    %831 = vmatpush2.bf16.xpose.msra.mxu0 0
    %832 = vmatprep.subr.bf16.mxu0 0
    %833 = vmatpush2.bf16.xpose.msra.mxu0 0
    %834 = vmatprep.mubr.bf16.mxu0 0
    %835 = vmatmul.mubr.bf16.gmra.mxu0 %v797
    %v836 = vpop.f32.mrf.mxu0
    %v837 = vadd.f32 0.0, %v836
    %v838 = vpop.f32.mrf.mxu0
    %v839 = vpop.f32.mrf.mxu0
    %v840 = vpop.f32.mrf.mxu0
    %841 = vdwg.mxu0
    %v842 = vmul.f32 %v837, 0.25
    %v843 = vsel %vm186, %v842, -inf
    %v844 = vsel %vm526, %v843, -inf
    %845 = vmax.xlane.f32.xlu0 %v844
    %v846 = vpop.xlane.xlu0 %845
    %v847 = vsub.f32 %v843, %v846
    %v848 = vmul.f32 %v847, 1.442695
    %v849 = vpow.pop %v848
    %v850 = vsel %vm526, %v849, 0.0
    %851 = vadd.xlane.f32.xlu0 %v850
    %v852 = vpop.xlane.xlu0 %851
    %v853 = vpack.c.bf16 %v849, %v849
    %854 = vrot.lane.b32.xlu0 %v473, 16
    %v855 = vpop.permute.xlu0 %854
    %v857 = vsel %vm526, %v853, 0
    %v860 = vsel %vm543, %v855, 0
    %862 = vmatprep.subr.bf16.mxu0 0
    %863 = vmatpush1.bf16.msra.mxu0 0
    %864 = vmatprep.subr.bf16.mxu0 0
    %865 = vmatpush1.bf16.msra.mxu0 0
    %866 = vmatprep.subr.bf16.mxu0 0
    %867 = vmatpush1.bf16.msra.mxu0 0
    %868 = vmatprep.subr.bf16.mxu0 0
    %869 = vmatpush1.bf16.msra.mxu0 0
    %870 = vmatprep.subr.bf16.mxu0 0
    %871 = vmatpush1.bf16.msra.mxu0 0
    %872 = vmatprep.subr.bf16.mxu0 0
    %873 = vmatpush1.bf16.msra.mxu0 0
    %874 = vmatprep.subr.bf16.mxu0 0
    %875 = vmatpush1.bf16.msra.mxu0 0
    %876 = vmatprep.subr.bf16.mxu0 0
    %877 = vmatpush1.bf16.msra.mxu0 %v860
    %878 = vmatprep.subr.bf16.mxu0 0
    %879 = vmatpush2.bf16.msra.mxu0 0
    %880 = vmatprep.subr.bf16.mxu0 0
    %881 = vmatpush2.bf16.msra.mxu0 0
    %882 = vmatprep.subr.bf16.mxu0 0
    %883 = vmatpush2.bf16.msra.mxu0 0
    %884 = vmatprep.subr.bf16.mxu0 0
    %885 = vmatpush2.bf16.msra.mxu0 0
    %886 = vmatprep.subr.bf16.mxu0 0
    %887 = vmatpush2.bf16.msra.mxu0 0
    %888 = vmatprep.subr.bf16.mxu0 0
    %889 = vmatpush2.bf16.msra.mxu0 0
    %890 = vmatprep.subr.bf16.mxu0 0
    %891 = vmatpush2.bf16.msra.mxu0 0
    %892 = vmatprep.subr.bf16.mxu0 0
    %893 = vmatpush2.bf16.msra.mxu0 0
    %894 = vmatprep.mubr.bf16.mxu0 0
    %895 = vmatmul.mubr.bf16.gmra.mxu0 %v857
    %v896 = vpop.f32.mrf.mxu0
    %v897 = vadd.f32 0.0, %v896
    %v898 = vpop.f32.mrf.mxu0
    %v899 = vpop.f32.mrf.mxu0
    %v900 = vpop.f32.mrf.mxu0
    %901 = vdwg.mxu0
    %v902 = vrcp.pop %v852
    %v903 = vmul.f32 %v897, %v902
    %v904 = vpack.c.bf16 %v903, %v903
    %v907 = vunpack.c.l.b16 %v467
    %v908 = vunpack.c.l.b16 %v468
    %v909 = vpack.c.b16 %v908, %v907
    %v912 = vsel %vm477, %v904, 0
    %914 = vmatprep.subr.bf16.mxu0 0
    %915 = vmatpush1.bf16.msra.mxu0 0
    %916 = vmatprep.subr.bf16.mxu0 0
    %917 = vmatpush1.bf16.msra.mxu0 0
    %918 = vmatprep.subr.bf16.mxu0 0
    %919 = vmatpush1.bf16.msra.mxu0 0
    %920 = vmatprep.subr.bf16.mxu0 0
    %921 = vmatpush1.bf16.msra.mxu0 0
    %922 = vmatprep.subr.bf16.mxu0 0
    %923 = vmatpush1.bf16.msra.mxu0 0
    %924 = vmatprep.subr.bf16.mxu0 0
    %925 = vmatpush1.bf16.msra.mxu0 0
    %926 = vmatprep.subr.bf16.mxu0 0
    %927 = vmatpush1.bf16.msra.mxu0 0
    %928 = vmatprep.subr.bf16.mxu0 0
    %929 = vmatpush1.bf16.msra.mxu0 %v909
    %930 = vmatprep.subr.bf16.mxu0 0
    %931 = vmatpush2.bf16.msra.mxu0 0
    %932 = vmatprep.subr.bf16.mxu0 0
    %933 = vmatpush2.bf16.msra.mxu0 0
    %934 = vmatprep.subr.bf16.mxu0 0
    %935 = vmatpush2.bf16.msra.mxu0 0
    %936 = vmatprep.subr.bf16.mxu0 0
    %937 = vmatpush2.bf16.msra.mxu0 0
    %938 = vmatprep.subr.bf16.mxu0 0
    %939 = vmatpush2.bf16.msra.mxu0 0
    %940 = vmatprep.subr.bf16.mxu0 0
    %941 = vmatpush2.bf16.msra.mxu0 0
    %942 = vmatprep.subr.bf16.mxu0 0
    %943 = vmatpush2.bf16.msra.mxu0 0
    %944 = vmatprep.subr.bf16.mxu0 0
    %945 = vmatpush2.bf16.msra.mxu0 0
    %946 = vmatprep.mubr.bf16.mxu0 0
    %947 = vmatmul.mubr.bf16.gmra.mxu0 %v912
    %v948 = vpop.f32.mrf.mxu0
    %v949 = vadd.f32 0.0, %v948
    %v950 = vpop.f32.mrf.mxu0
    %v951 = vpop.f32.mrf.mxu0
    %v952 = vpop.f32.mrf.mxu0
    %953 = vdwg.mxu0
    %v954 = vadd.f32 %v787, %v949
    %955 = vrot.lane.b32.xlu0 %v471, 80
    %v956 = vpop.permute.xlu0 %955
    %v958 = vsel %vm477, %v956, 0
    %960 = vmatprep.subr.bf16.mxu0 0
    %961 = vmatpush1.bf16.xpose.msra.mxu0 0
    %962 = vmatprep.subr.bf16.mxu0 0
    %963 = vmatpush1.bf16.xpose.msra.mxu0 0
    %964 = vmatprep.subr.bf16.mxu0 0
    %965 = vmatpush1.bf16.xpose.msra.mxu0 0
    %966 = vmatprep.subr.bf16.mxu0 0
    %967 = vmatpush1.bf16.xpose.msra.mxu0 0
    %968 = vmatprep.subr.bf16.mxu0 0
    %969 = vmatpush1.bf16.xpose.msra.mxu0 0
    %970 = vmatprep.subr.bf16.mxu0 0
    %971 = vmatpush1.bf16.xpose.msra.mxu0 0
    %972 = vmatprep.subr.bf16.mxu0 0
    %973 = vmatpush1.bf16.xpose.msra.mxu0 0
    %974 = vmatprep.subr.bf16.mxu0 0
    %975 = vmatpush1.bf16.xpose.msra.mxu0 %v800
    %976 = vmatprep.subr.bf16.mxu0 0
    %977 = vmatpush2.bf16.xpose.msra.mxu0 0
    %978 = vmatprep.subr.bf16.mxu0 0
    %979 = vmatpush2.bf16.xpose.msra.mxu0 0
    %980 = vmatprep.subr.bf16.mxu0 0
    %981 = vmatpush2.bf16.xpose.msra.mxu0 0
    %982 = vmatprep.subr.bf16.mxu0 0
    %983 = vmatpush2.bf16.xpose.msra.mxu0 0
    %984 = vmatprep.subr.bf16.mxu0 0
    %985 = vmatpush2.bf16.xpose.msra.mxu0 0
    %986 = vmatprep.subr.bf16.mxu0 0
    %987 = vmatpush2.bf16.xpose.msra.mxu0 0
    %988 = vmatprep.subr.bf16.mxu0 0
    %989 = vmatpush2.bf16.xpose.msra.mxu0 0
    %990 = vmatprep.subr.bf16.mxu0 0
    %991 = vmatpush2.bf16.xpose.msra.mxu0 0
    %992 = vmatprep.mubr.bf16.mxu0 0
    %993 = vmatmul.mubr.bf16.gmra.mxu0 %v958
    %v994 = vpop.f32.mrf.mxu0
    %v995 = vadd.f32 0.0, %v994
    %v996 = vpop.f32.mrf.mxu0
    %v997 = vpop.f32.mrf.mxu0
    %v998 = vpop.f32.mrf.mxu0
    %999 = vdwg.mxu0
    %v1000 = vmul.f32 %v995, 0.25
    %v1001 = vsel %vm186, %v1000, -inf
    %v1002 = vsel %vm526, %v1001, -inf
    %1003 = vmax.xlane.f32.xlu0 %v1002
    %v1004 = vpop.xlane.xlu0 %1003
    %v1005 = vsub.f32 %v1001, %v1004
    %v1006 = vmul.f32 %v1005, 1.442695
    %v1007 = vpow.pop %v1006
    %v1008 = vsel %vm526, %v1007, 0.0
    %1009 = vadd.xlane.f32.xlu0 %v1008
    %v1010 = vpop.xlane.xlu0 %1009
    %v1011 = vpack.c.bf16 %v1007, %v1007
    %v1013 = vsel %vm526, %v1011, 0
    %1015 = vmatprep.subr.bf16.mxu0 0
    %1016 = vmatpush1.bf16.msra.mxu0 0
    %1017 = vmatprep.subr.bf16.mxu0 0
    %1018 = vmatpush1.bf16.msra.mxu0 0
    %1019 = vmatprep.subr.bf16.mxu0 0
    %1020 = vmatpush1.bf16.msra.mxu0 0
    %1021 = vmatprep.subr.bf16.mxu0 0
    %1022 = vmatpush1.bf16.msra.mxu0 0
    %1023 = vmatprep.subr.bf16.mxu0 0
    %1024 = vmatpush1.bf16.msra.mxu0 0
    %1025 = vmatprep.subr.bf16.mxu0 0
    %1026 = vmatpush1.bf16.msra.mxu0 0
    %1027 = vmatprep.subr.bf16.mxu0 0
    %1028 = vmatpush1.bf16.msra.mxu0 0
    %1029 = vmatprep.subr.bf16.mxu0 0
    %1030 = vmatpush1.bf16.msra.mxu0 %v860
    %1031 = vmatprep.subr.bf16.mxu0 0
    %1032 = vmatpush2.bf16.msra.mxu0 0
    %1033 = vmatprep.subr.bf16.mxu0 0
    %1034 = vmatpush2.bf16.msra.mxu0 0
    %1035 = vmatprep.subr.bf16.mxu0 0
    %1036 = vmatpush2.bf16.msra.mxu0 0
    %1037 = vmatprep.subr.bf16.mxu0 0
    %1038 = vmatpush2.bf16.msra.mxu0 0
    %1039 = vmatprep.subr.bf16.mxu0 0
    %1040 = vmatpush2.bf16.msra.mxu0 0
    %1041 = vmatprep.subr.bf16.mxu0 0
    %1042 = vmatpush2.bf16.msra.mxu0 0
    %1043 = vmatprep.subr.bf16.mxu0 0
    %1044 = vmatpush2.bf16.msra.mxu0 0
    %1045 = vmatprep.subr.bf16.mxu0 0
    %1046 = vmatpush2.bf16.msra.mxu0 0
    %1047 = vmatprep.mubr.bf16.mxu0 0
    %1048 = vmatmul.mubr.bf16.gmra.mxu0 %v1013
    %v1049 = vpop.f32.mrf.mxu0
    %v1050 = vadd.f32 0.0, %v1049
    %v1051 = vpop.f32.mrf.mxu0
    %v1052 = vpop.f32.mrf.mxu0
    %v1053 = vpop.f32.mrf.mxu0
    %1054 = vdwg.mxu0
    %v1055 = vrcp.pop %v1010
    %v1056 = vmul.f32 %v1050, %v1055
    %v1057 = vpack.c.bf16 %v1056, %v1056
    %v1060 = vunpack.c.l.b16 %v469
    %v1061 = vunpack.c.l.b16 %v470
    %v1062 = vpack.c.b16 %v1061, %v1060
    %v1065 = vsel %vm477, %v1057, 0
    %1067 = vmatprep.subr.bf16.mxu0 0
    %1068 = vmatpush1.bf16.msra.mxu0 0
    %1069 = vmatprep.subr.bf16.mxu0 0
    %1070 = vmatpush1.bf16.msra.mxu0 0
    %1071 = vmatprep.subr.bf16.mxu0 0
    %1072 = vmatpush1.bf16.msra.mxu0 0
    %1073 = vmatprep.subr.bf16.mxu0 0
    %1074 = vmatpush1.bf16.msra.mxu0 0
    %1075 = vmatprep.subr.bf16.mxu0 0
    %1076 = vmatpush1.bf16.msra.mxu0 0
    %1077 = vmatprep.subr.bf16.mxu0 0
    %1078 = vmatpush1.bf16.msra.mxu0 0
    %1079 = vmatprep.subr.bf16.mxu0 0
    %1080 = vmatpush1.bf16.msra.mxu0 0
    %1081 = vmatprep.subr.bf16.mxu0 0
    %1082 = vmatpush1.bf16.msra.mxu0 %v1062
    %1083 = vmatprep.subr.bf16.mxu0 0
    %1084 = vmatpush2.bf16.msra.mxu0 0
    %1085 = vmatprep.subr.bf16.mxu0 0
    %1086 = vmatpush2.bf16.msra.mxu0 0
    %1087 = vmatprep.subr.bf16.mxu0 0
    %1088 = vmatpush2.bf16.msra.mxu0 0
    %1089 = vmatprep.subr.bf16.mxu0 0
    %1090 = vmatpush2.bf16.msra.mxu0 0
    %1091 = vmatprep.subr.bf16.mxu0 0
    %1092 = vmatpush2.bf16.msra.mxu0 0
    %1093 = vmatprep.subr.bf16.mxu0 0
    %1094 = vmatpush2.bf16.msra.mxu0 0
    %1095 = vmatprep.subr.bf16.mxu0 0
    %1096 = vmatpush2.bf16.msra.mxu0 0
    %1097 = vmatprep.subr.bf16.mxu0 0
    %1098 = vmatpush2.bf16.msra.mxu0 0
    %1099 = vmatprep.mubr.bf16.mxu0 0
    %1100 = vmatmul.mubr.bf16.gmra.mxu0 %v1065
    %v1101 = vpop.f32.mrf.mxu0
    %v1102 = vadd.f32 0.0, %v1101
    %v1103 = vpop.f32.mrf.mxu0
    %v1104 = vpop.f32.mrf.mxu0
    %v1105 = vpop.f32.mrf.mxu0
    %1106 = vdwg.mxu0
    %v1107 = vadd.f32 %v954, %v1102
    %v1108 = vadd.f32 %v165, %v1107
    %v1109 = vld [vmem:[%s9] sm:$0x1]
    %v1111 = vlaneseq
    %v1112 = vshrl.u32 %v1111, 7
    %v1113 = vsub.s32 0, %v1112
    %v1114 = vrot.slane %v1109, %v1113
    %v1116 = vadd.f32 %v1108, %v1114
    %v1117 = vld [vmem:[%s4] sm:$0x1]
    %v1118 = vld [vmem:[%s5] sm:$0x1]
    %v1119 = vsel %vm189, %v1116, 0.0
    %1120 = vadd.xlane.f32.xlu0 %v1119
    %v1121 = vpop.xlane.xlu0 %1120
    %v1122 = vmul.f32 %v1121, %v193
    %v1123 = vsub.f32 %v1116, %v1122
    %v1124 = vmul.f32 %v1123, %v1123
    %v1125 = vsel %vm189, %v1124, 0.0
    %1126 = vadd.xlane.f32.xlu0 %v1125
    %v1127 = vpop.xlane.xlu0 %1126
    %v1128 = vmul.f32 %v1127, %v193
    %v1129 = vadd.f32 %v1128, 1e-05
    %v1130 = vrsqrt.pop %v1129
    %v1131 = vmul.f32 %v1123, %v1130
    %v1133 = vlaneseq
    %v1134 = vshrl.u32 %v1133, 7
    %v1135 = vsub.s32 0, %v1134
    %v1136 = vrot.slane %v1117, %v1135
    %v1138 = vmul.f32 %v1131, %v1136
    %v1140 = vlaneseq
    %v1141 = vshrl.u32 %v1140, 7
    %v1142 = vsub.s32 0, %v1141
    %v1143 = vrot.slane %v1118, %v1142
    %v1145 = vadd.f32 %v1138, %v1143
    %v1146 = vpack.c.bf16 %v1145, %v1145
    %v1147 = vld [vmem:[%s10] sm:$0xf]
    %v1148 = vld [vmem:[%s10 + $0x4] sm:$0xf]
    %v1149 = vld [vmem:[%s10 + $0x8] sm:$0xf]
    %v1150 = vld [vmem:[%s10 + $0xc] sm:$0xf]
    %v1151 = vld [vmem:[%s10 + $0x10] sm:$0xf]
    %v1152 = vld [vmem:[%s10 + $0x14] sm:$0xf]
    %v1153 = vld [vmem:[%s10 + $0x18] sm:$0xf]
    %v1154 = vld [vmem:[%s10 + $0x1c] sm:$0xf]
    %v1155 = vld [vmem:[%s11] sm:$0x1]
    %v1157 = vlaneseq
    %v1158 = vshrl.u32 %v1157, 7
    %v1159 = vsub.s32 0, %v1158
    %v1160 = vrot.slane %v1155, %v1159
    %v1170 = vunpack.c.l.b16 %v1147
    %v1171 = vunpack.c.l.b16 %v1148
    %v1172 = vunpack.c.l.b16 %v1149
    %v1173 = vunpack.c.l.b16 %v1150
    %v1174 = vunpack.c.l.b16 %v1151
    %v1175 = vunpack.c.l.b16 %v1152
    %v1176 = vunpack.c.l.b16 %v1153
    %v1177 = vunpack.c.l.b16 %v1154
    %v1178 = vpack.c.b16 %v1171, %v1170
    %v1179 = vpack.c.b16 %v1173, %v1172
    %v1180 = vpack.c.b16 %v1175, %v1174
    %v1181 = vpack.c.b16 %v1177, %v1176
    %v1187 = vsel %vm189, %v1146, 0
    %1189 = vmatprep.subr.bf16.mxu0 0
    %1190 = vmatpush1.bf16.msra.mxu0 0
    %1191 = vmatprep.subr.bf16.mxu0 0
    %1192 = vmatpush1.bf16.msra.mxu0 0
    %1193 = vmatprep.subr.bf16.mxu0 0
    %1194 = vmatpush1.bf16.msra.mxu0 0
    %1195 = vmatprep.subr.bf16.mxu0 0
    %1196 = vmatpush1.bf16.msra.mxu0 0
    %1197 = vmatprep.subr.bf16.mxu0 0
    %1198 = vmatpush1.bf16.msra.mxu0 %v1181
    %1199 = vmatprep.subr.bf16.mxu0 0
    %1200 = vmatpush1.bf16.msra.mxu0 %v1180
    %1201 = vmatprep.subr.bf16.mxu0 0
    %1202 = vmatpush1.bf16.msra.mxu0 %v1179
    %1203 = vmatprep.subr.bf16.mxu0 0
    %1204 = vmatpush1.bf16.msra.mxu0 %v1178
    %1205 = vmatprep.subr.bf16.mxu0 0
    %1206 = vmatpush2.bf16.msra.mxu0 0
    %1207 = vmatprep.subr.bf16.mxu0 0
    %1208 = vmatpush2.bf16.msra.mxu0 0
    %1209 = vmatprep.subr.bf16.mxu0 0
    %1210 = vmatpush2.bf16.msra.mxu0 0
    %1211 = vmatprep.subr.bf16.mxu0 0
    %1212 = vmatpush2.bf16.msra.mxu0 0
    %1213 = vmatprep.subr.bf16.mxu0 0
    %1214 = vmatpush2.bf16.msra.mxu0 0
    %1215 = vmatprep.subr.bf16.mxu0 0
    %1216 = vmatpush2.bf16.msra.mxu0 0
    %1217 = vmatprep.subr.bf16.mxu0 0
    %1218 = vmatpush2.bf16.msra.mxu0 0
    %1219 = vmatprep.subr.bf16.mxu0 0
    %1220 = vmatpush2.bf16.msra.mxu0 0
    %1221 = vmatprep.mubr.bf16.mxu0 0
    %1222 = vmatmul.mubr.bf16.gmra.mxu0 %v1187
    %v1223 = vpop.f32.mrf.mxu0
    %v1224 = vadd.f32 %v1160, %v1223
    %v1225 = vpop.f32.mrf.mxu0
    %v1226 = vpop.f32.mrf.mxu0
    %v1227 = vpop.f32.mrf.mxu0
    %1228 = vdwg.mxu0
    %v1229 = vmul.f32 %v1224, 0.5
    %v1230 = vmul.f32 %v1224, 0.044715
    %v1231 = vmul.f32 %v1230, %v1224
    %v1232 = vmul.f32 %v1231, %v1224
    %v1233 = vadd.f32 %v1224, %v1232
    %v1234 = vmul.f32 %v1233, 0.7978846
    %v1235 = vtanh.pop %v1234
    %v1236 = vadd.f32 %v1235, 1.0
    %v1237 = vmul.f32 %v1229, %v1236
    %v1238 = vpack.c.bf16 %v1237, %v1237
    %v1239 = vld [vmem:[%s12] sm:$0xf]
    %v1240 = vld [vmem:[%s12 + $0x4] sm:$0xf]
    %v1241 = vld [vmem:[%s12 + $0x8] sm:$0xf]
    %v1242 = vld [vmem:[%s12 + $0xc] sm:$0xf]
    %v1243 = vld [vmem:[%s12 + $0x10] sm:$0xf]
    %v1244 = vld [vmem:[%s12 + $0x14] sm:$0xf]
    %v1245 = vld [vmem:[%s12 + $0x18] sm:$0xf]
    %v1246 = vld [vmem:[%s12 + $0x1c] sm:$0xf]
    %v1247 = vld [vmem:[%s12 + $0x20] sm:$0xf]
    %v1248 = vld [vmem:[%s12 + $0x24] sm:$0xf]
    %v1249 = vld [vmem:[%s12 + $0x28] sm:$0xf]
    %v1250 = vld [vmem:[%s12 + $0x2c] sm:$0xf]
    %v1251 = vld [vmem:[%s12 + $0x30] sm:$0xf]
    %v1252 = vld [vmem:[%s12 + $0x34] sm:$0xf]
    %v1253 = vld [vmem:[%s12 + $0x38] sm:$0xf]
    %v1254 = vld [vmem:[%s12 + $0x3c] sm:$0xf]
    %v1255 = vld [vmem:[%s13] sm:$0x1]
    %v1257 = vlaneseq
    %v1258 = vshrl.u32 %v1257, 7
    %v1259 = vsub.s32 0, %v1258
    %v1260 = vrot.slane %v1255, %v1259
    %v1278 = vunpack.c.l.b16 %v1239
    %v1279 = vunpack.c.l.b16 %v1240
    %v1280 = vunpack.c.l.b16 %v1241
    %v1281 = vunpack.c.l.b16 %v1242
    %v1282 = vunpack.c.l.b16 %v1243
    %v1283 = vunpack.c.l.b16 %v1244
    %v1284 = vunpack.c.l.b16 %v1245
    %v1285 = vunpack.c.l.b16 %v1246
    %v1286 = vunpack.c.l.b16 %v1247
    %v1287 = vunpack.c.l.b16 %v1248
    %v1288 = vunpack.c.l.b16 %v1249
    %v1289 = vunpack.c.l.b16 %v1250
    %v1290 = vunpack.c.l.b16 %v1251
    %v1291 = vunpack.c.l.b16 %v1252
    %v1292 = vunpack.c.l.b16 %v1253
    %v1293 = vunpack.c.l.b16 %v1254
    %v1294 = vpack.c.b16 %v1279, %v1278
    %v1295 = vpack.c.b16 %v1281, %v1280
    %v1296 = vpack.c.b16 %v1283, %v1282
    %v1297 = vpack.c.b16 %v1285, %v1284
    %v1298 = vpack.c.b16 %v1287, %v1286
    %v1299 = vpack.c.b16 %v1289, %v1288
    %v1300 = vpack.c.b16 %v1291, %v1290
    %v1301 = vpack.c.b16 %v1293, %v1292
    %1310 = vmatprep.subr.bf16.mxu0 0
    %1311 = vmatpush1.bf16.msra.mxu0 %v1301
    %1312 = vmatprep.subr.bf16.mxu0 0
    %1313 = vmatpush1.bf16.msra.mxu0 %v1300
    %1314 = vmatprep.subr.bf16.mxu0 0
    %1315 = vmatpush1.bf16.msra.mxu0 %v1299
    %1316 = vmatprep.subr.bf16.mxu0 0
    %1317 = vmatpush1.bf16.msra.mxu0 %v1298
    %1318 = vmatprep.subr.bf16.mxu0 0
    %1319 = vmatpush1.bf16.msra.mxu0 %v1297
    %1320 = vmatprep.subr.bf16.mxu0 0
    %1321 = vmatpush1.bf16.msra.mxu0 %v1296
    %1322 = vmatprep.subr.bf16.mxu0 0
    %1323 = vmatpush1.bf16.msra.mxu0 %v1295
    %1324 = vmatprep.subr.bf16.mxu0 0
    %1325 = vmatpush1.bf16.msra.mxu0 %v1294
    %1326 = vmatprep.subr.bf16.mxu0 0
    %1327 = vmatpush2.bf16.msra.mxu0 0
    %1328 = vmatprep.subr.bf16.mxu0 0
    %1329 = vmatpush2.bf16.msra.mxu0 0
    %1330 = vmatprep.subr.bf16.mxu0 0
    %1331 = vmatpush2.bf16.msra.mxu0 0
    %1332 = vmatprep.subr.bf16.mxu0 0
    %1333 = vmatpush2.bf16.msra.mxu0 0
    %1334 = vmatprep.subr.bf16.mxu0 0
    %1335 = vmatpush2.bf16.msra.mxu0 0
    %1336 = vmatprep.subr.bf16.mxu0 0
    %1337 = vmatpush2.bf16.msra.mxu0 0
    %1338 = vmatprep.subr.bf16.mxu0 0
    %1339 = vmatpush2.bf16.msra.mxu0 0
    %1340 = vmatprep.subr.bf16.mxu0 0
    %1341 = vmatpush2.bf16.msra.mxu0 0
    %1342 = vmatprep.mubr.bf16.mxu0 0
    %1343 = vmatmul.mubr.bf16.gmra.mxu0 %v1238
    %v1344 = vpop.f32.mrf.mxu0
    %v1345 = vadd.f32 %v1260, %v1344
    %v1346 = vpop.f32.mrf.mxu0
    %v1347 = vpop.f32.mrf.mxu0
    %v1348 = vpop.f32.mrf.mxu0
    %1349 = vdwg.mxu0
    %v1350 = vadd.f32 %v1116, %v1345
    %s1351 = scalar_lea.vmem %s2, 1
    %v1352 = vld [vmem:[%s1351] sm:$0x1]
    %s1353 = scalar_lea.vmem %s3, 1
    %v1354 = vld [vmem:[%s1353] sm:$0x1]
    %v1355 = vsel %vm189, %v1350, 0.0
    %1356 = vadd.xlane.f32.xlu0 %v1355
    %v1357 = vpop.xlane.xlu0 %1356
    %v1358 = vmul.f32 %v1357, %v193
    %v1359 = vsub.f32 %v1350, %v1358
    %v1360 = vmul.f32 %v1359, %v1359
    %v1361 = vsel %vm189, %v1360, 0.0
    %1362 = vadd.xlane.f32.xlu0 %v1361
    %v1363 = vpop.xlane.xlu0 %1362
    %v1364 = vmul.f32 %v1363, %v193
    %v1365 = vadd.f32 %v1364, 1e-05
    %v1366 = vrsqrt.pop %v1365
    %v1367 = vmul.f32 %v1359, %v1366
    %v1369 = vlaneseq
    %v1370 = vshrl.u32 %v1369, 7
    %v1371 = vsub.s32 0, %v1370
    %v1372 = vrot.slane %v1352, %v1371
    %v1374 = vmul.f32 %v1367, %v1372
    %v1376 = vlaneseq
    %v1377 = vshrl.u32 %v1376, 7
    %v1378 = vsub.s32 0, %v1377
    %v1379 = vrot.slane %v1354, %v1378
    %v1381 = vadd.f32 %v1374, %v1379
    %v1382 = vpack.c.bf16 %v1381, %v1381
    %s1383 = scalar_lea.vmem %s6, 32
    %v1384 = vld [vmem:[%s1383] sm:$0xf]
    %v1385 = vld [vmem:[%s1383 + $0x4] sm:$0xf]
    %v1386 = vld [vmem:[%s1383 + $0x8] sm:$0xf]
    %v1387 = vld [vmem:[%s1383 + $0xc] sm:$0xf]
    %v1388 = vld [vmem:[%s1383 + $0x10] sm:$0xf]
    %v1389 = vld [vmem:[%s1383 + $0x14] sm:$0xf]
    %v1390 = vld [vmem:[%s1383 + $0x18] sm:$0xf]
    %v1391 = vld [vmem:[%s1383 + $0x1c] sm:$0xf]
    %s1392 = scalar_lea.vmem %s7, 1
    %v1393 = vld [vmem:[%s1392] sm:$0x1]
    %v1395 = vlaneseq
    %v1396 = vshrl.u32 %v1395, 7
    %v1397 = vsub.s32 0, %v1396
    %v1398 = vrot.slane %v1393, %v1397
    %v1408 = vunpack.c.l.b16 %v1384
    %v1409 = vunpack.c.l.b16 %v1385
    %v1410 = vunpack.c.l.b16 %v1386
    %v1411 = vunpack.c.l.b16 %v1387
    %v1412 = vunpack.c.l.b16 %v1388
    %v1413 = vunpack.c.l.b16 %v1389
    %v1414 = vunpack.c.l.b16 %v1390
    %v1415 = vunpack.c.l.b16 %v1391
    %v1416 = vpack.c.b16 %v1409, %v1408
    %v1417 = vpack.c.b16 %v1411, %v1410
    %v1418 = vpack.c.b16 %v1413, %v1412
    %v1419 = vpack.c.b16 %v1415, %v1414
    %v1425 = vsel %vm189, %v1382, 0
    %1427 = vmatprep.subr.bf16.mxu0 0
    %1428 = vmatpush1.bf16.msra.mxu0 0
    %1429 = vmatprep.subr.bf16.mxu0 0
    %1430 = vmatpush1.bf16.msra.mxu0 0
    %1431 = vmatprep.subr.bf16.mxu0 0
    %1432 = vmatpush1.bf16.msra.mxu0 0
    %1433 = vmatprep.subr.bf16.mxu0 0
    %1434 = vmatpush1.bf16.msra.mxu0 0
    %1435 = vmatprep.subr.bf16.mxu0 0
    %1436 = vmatpush1.bf16.msra.mxu0 %v1419
    %1437 = vmatprep.subr.bf16.mxu0 0
    %1438 = vmatpush1.bf16.msra.mxu0 %v1418
    %1439 = vmatprep.subr.bf16.mxu0 0
    %1440 = vmatpush1.bf16.msra.mxu0 %v1417
    %1441 = vmatprep.subr.bf16.mxu0 0
    %1442 = vmatpush1.bf16.msra.mxu0 %v1416
    %1443 = vmatprep.subr.bf16.mxu0 0
    %1444 = vmatpush2.bf16.msra.mxu0 0
    %1445 = vmatprep.subr.bf16.mxu0 0
    %1446 = vmatpush2.bf16.msra.mxu0 0
    %1447 = vmatprep.subr.bf16.mxu0 0
    %1448 = vmatpush2.bf16.msra.mxu0 0
    %1449 = vmatprep.subr.bf16.mxu0 0
    %1450 = vmatpush2.bf16.msra.mxu0 0
    %1451 = vmatprep.subr.bf16.mxu0 0
    %1452 = vmatpush2.bf16.msra.mxu0 0
    %1453 = vmatprep.subr.bf16.mxu0 0
    %1454 = vmatpush2.bf16.msra.mxu0 0
    %1455 = vmatprep.subr.bf16.mxu0 0
    %1456 = vmatpush2.bf16.msra.mxu0 0
    %1457 = vmatprep.subr.bf16.mxu0 0
    %1458 = vmatpush2.bf16.msra.mxu0 0
    %1459 = vmatprep.mubr.bf16.mxu0 0
    %1460 = vmatmul.mubr.bf16.gmra.mxu0 %v1425
    %v1461 = vpop.f32.mrf.mxu0
    %v1462 = vadd.f32 %v1398, %v1461
    %v1463 = vpop.f32.mrf.mxu0
    %v1464 = vpop.f32.mrf.mxu0
    %v1465 = vpop.f32.mrf.mxu0
    %1466 = vdwg.mxu0
    %v1467 = vmul.f32 %v1462, %v168
    %v1469 = vsel %vm189, %v1462, 0
    %1471 = vmatprep.subr.mxu0 0.0
    %1472 = vmatpush1.msra.mxu0 0.0
    %1473 = vmatprep.subr.mxu0 0.0
    %1474 = vmatpush1.msra.mxu0 0.0
    %1475 = vmatprep.subr.mxu0 0.0
    %1476 = vmatpush1.msra.mxu0 0.0
    %1477 = vmatprep.subr.mxu0 0.0
    %1478 = vmatpush1.msra.mxu0 0.0
    %1479 = vmatprep.subr.mxu0 0.0
    %1480 = vmatpush1.msra.mxu0 0.0
    %1481 = vmatprep.subr.mxu0 0.0
    %1482 = vmatpush1.msra.mxu0 0.0
    %1483 = vmatprep.subr.mxu0 0.0
    %1484 = vmatpush1.msra.mxu0 0.0
    %1485 = vmatprep.subr.mxu0 0.0
    %1486 = vmatpush1.msra.mxu0 0.0
    %1487 = vmatprep.subr.mxu0 0.0
    %1488 = vmatpush1.msra.mxu0 %v179
    %1489 = vmatprep.subr.mxu0 0.0
    %1490 = vmatpush1.msra.mxu0 %v178
    %1491 = vmatprep.subr.mxu0 0.0
    %1492 = vmatpush1.msra.mxu0 %v177
    %1493 = vmatprep.subr.mxu0 0.0
    %1494 = vmatpush1.msra.mxu0 %v176
    %1495 = vmatprep.subr.mxu0 0.0
    %1496 = vmatpush1.msra.mxu0 %v175
    %1497 = vmatprep.subr.mxu0 0.0
    %1498 = vmatpush1.msra.mxu0 %v174
    %1499 = vmatprep.subr.mxu0 0.0
    %1500 = vmatpush1.msra.mxu0 %v173
    %1501 = vmatprep.subr.mxu0 0.0
    %1502 = vmatpush1.msra.mxu0 %v172
    %1503 = vmatprep.subr.mxu0 0.0
    %1504 = vmatpush2.msra.mxu0 0.0
    %1505 = vmatprep.subr.mxu0 0.0
    %1506 = vmatpush2.msra.mxu0 0.0
    %1507 = vmatprep.subr.mxu0 0.0
    %1508 = vmatpush2.msra.mxu0 0.0
    %1509 = vmatprep.subr.mxu0 0.0
    %1510 = vmatpush2.msra.mxu0 0.0
    %1511 = vmatprep.subr.mxu0 0.0
    %1512 = vmatpush2.msra.mxu0 0.0
    %1513 = vmatprep.subr.mxu0 0.0
    %1514 = vmatpush2.msra.mxu0 0.0
    %1515 = vmatprep.subr.mxu0 0.0
    %1516 = vmatpush2.msra.mxu0 0.0
    %1517 = vmatprep.subr.mxu0 0.0
    %1518 = vmatpush2.msra.mxu0 0.0
    %1519 = vmatprep.subr.mxu0 0.0
    %1520 = vmatpush2.msra.mxu0 0.0
    %1521 = vmatprep.subr.mxu0 0.0
    %1522 = vmatpush2.msra.mxu0 0.0
    %1523 = vmatprep.subr.mxu0 0.0
    %1524 = vmatpush2.msra.mxu0 0.0
    %1525 = vmatprep.subr.mxu0 0.0
    %1526 = vmatpush2.msra.mxu0 0.0
    %1527 = vmatprep.subr.mxu0 0.0
    %1528 = vmatpush2.msra.mxu0 0.0
    %1529 = vmatprep.subr.mxu0 0.0
    %1530 = vmatpush2.msra.mxu0 0.0
    %1531 = vmatprep.subr.mxu0 0.0
    %1532 = vmatpush2.msra.mxu0 0.0
    %1533 = vmatprep.subr.mxu0 0.0
    %1534 = vmatpush2.msra.mxu0 0.0
    %1535 = vmatprep.mubr.f32.mxu0 0.0
    %1536 = vmatmul.mubr.f32.gmra.mxu0 %v1469
    %v1537 = vpop.f32.mrf.mxu0
    %v1538 = vadd.f32 0.0, %v1537
    %v1539 = vpop.f32.mrf.mxu0
    %1540 = vdwg.mxu0
    %v1541 = vmul.f32 %v1538, %v169
    %v1542 = vadd.f32 %v1467, %v1541
    %v1543 = vmul.f32 %v1462, %v379
    %1544 = vrot.lane.b32.xlu0 %v1462, 64
    %v1545 = vpop.permute.xlu0 %1544
    %v1546 = vsel %vm384, %v1545, 0
    %1548 = vmatprep.subr.mxu0 0.0
    %1549 = vmatpush1.msra.mxu0 0.0
    %1550 = vmatprep.subr.mxu0 0.0
    %1551 = vmatpush1.msra.mxu0 0.0
    %1552 = vmatprep.subr.mxu0 0.0
    %1553 = vmatpush1.msra.mxu0 0.0
    %1554 = vmatprep.subr.mxu0 0.0
    %1555 = vmatpush1.msra.mxu0 0.0
    %1556 = vmatprep.subr.mxu0 0.0
    %1557 = vmatpush1.msra.mxu0 0.0
    %1558 = vmatprep.subr.mxu0 0.0
    %1559 = vmatpush1.msra.mxu0 0.0
    %1560 = vmatprep.subr.mxu0 0.0
    %1561 = vmatpush1.msra.mxu0 0.0
    %1562 = vmatprep.subr.mxu0 0.0
    %1563 = vmatpush1.msra.mxu0 0.0
    %1564 = vmatprep.subr.mxu0 0.0
    %1565 = vmatpush1.msra.mxu0 0.0
    %1566 = vmatprep.subr.mxu0 0.0
    %1567 = vmatpush1.msra.mxu0 0.0
    %1568 = vmatprep.subr.mxu0 0.0
    %1569 = vmatpush1.msra.mxu0 0.0
    %1570 = vmatprep.subr.mxu0 0.0
    %1571 = vmatpush1.msra.mxu0 0.0
    %1572 = vmatprep.subr.mxu0 0.0
    %1573 = vmatpush1.msra.mxu0 %v183
    %1574 = vmatprep.subr.mxu0 0.0
    %1575 = vmatpush1.msra.mxu0 %v182
    %1576 = vmatprep.subr.mxu0 0.0
    %1577 = vmatpush1.msra.mxu0 %v181
    %1578 = vmatprep.subr.mxu0 0.0
    %1579 = vmatpush1.msra.mxu0 %v180
    %1580 = vmatprep.subr.mxu0 0.0
    %1581 = vmatpush2.msra.mxu0 0.0
    %1582 = vmatprep.subr.mxu0 0.0
    %1583 = vmatpush2.msra.mxu0 0.0
    %1584 = vmatprep.subr.mxu0 0.0
    %1585 = vmatpush2.msra.mxu0 0.0
    %1586 = vmatprep.subr.mxu0 0.0
    %1587 = vmatpush2.msra.mxu0 0.0
    %1588 = vmatprep.subr.mxu0 0.0
    %1589 = vmatpush2.msra.mxu0 0.0
    %1590 = vmatprep.subr.mxu0 0.0
    %1591 = vmatpush2.msra.mxu0 0.0
    %1592 = vmatprep.subr.mxu0 0.0
    %1593 = vmatpush2.msra.mxu0 0.0
    %1594 = vmatprep.subr.mxu0 0.0
    %1595 = vmatpush2.msra.mxu0 0.0
    %1596 = vmatprep.subr.mxu0 0.0
    %1597 = vmatpush2.msra.mxu0 0.0
    %1598 = vmatprep.subr.mxu0 0.0
    %1599 = vmatpush2.msra.mxu0 0.0
    %1600 = vmatprep.subr.mxu0 0.0
    %1601 = vmatpush2.msra.mxu0 0.0
    %1602 = vmatprep.subr.mxu0 0.0
    %1603 = vmatpush2.msra.mxu0 0.0
    %1604 = vmatprep.subr.mxu0 0.0
    %1605 = vmatpush2.msra.mxu0 0.0
    %1606 = vmatprep.subr.mxu0 0.0
    %1607 = vmatpush2.msra.mxu0 0.0
    %1608 = vmatprep.subr.mxu0 0.0
    %1609 = vmatpush2.msra.mxu0 0.0
    %1610 = vmatprep.subr.mxu0 0.0
    %1611 = vmatpush2.msra.mxu0 0.0
    %1612 = vmatprep.mubr.f32.mxu0 0.0
    %1613 = vmatmul.mubr.f32.gmra.mxu0 %v1546
    %v1614 = vpop.f32.mrf.mxu0
    %v1615 = vadd.f32 0.0, %v1614
    %v1616 = vpop.f32.mrf.mxu0
    %1617 = vdwg.mxu0
    %v1618 = vmul.f32 %v1615, %v171
    %1620 = vrot.lane.b32.xlu0 %v1618, 64
    %v1621 = vpop.permute.xlu0 %1620
    %v1623 = vadd.f32 %v1543, %v1621
    %s1624 = scalar_lea.vmem %s8, 32
    %v1625 = vld [vmem:[%s1624] sm:$0xf]
    %v1626 = vld [vmem:[%s1624 + $0x4] sm:$0xf]
    %v1627 = vld [vmem:[%s1624 + $0x8] sm:$0xf]
    %v1628 = vld [vmem:[%s1624 + $0xc] sm:$0xf]
    %v1629 = vld [vmem:[%s1624 + $0x10] sm:$0xf]
    %v1630 = vld [vmem:[%s1624 + $0x14] sm:$0xf]
    %v1631 = vld [vmem:[%s1624 + $0x18] sm:$0xf]
    %v1632 = vld [vmem:[%s1624 + $0x1c] sm:$0xf]
    %v1633 = vpack.c.bf16 %v1542, %v1542
    %v1634 = vpack.c.bf16 %v1623, %v1623
    %v1635 = vpack.c.bf16 %v1462, %v1462
    %1637 = vrot.lane.b32.xlu0 %v1634, 64
    %v1638 = vpop.permute.xlu0 %1637
    %v1640 = vsel %vm477, %v1633, 0
    %v1643 = vsel %vm477, %v1638, 0
    %1645 = vmatprep.subr.bf16.mxu0 0
    %1646 = vmatpush1.bf16.xpose.msra.mxu0 0
    %1647 = vmatprep.subr.bf16.mxu0 0
    %1648 = vmatpush1.bf16.xpose.msra.mxu0 0
    %1649 = vmatprep.subr.bf16.mxu0 0
    %1650 = vmatpush1.bf16.xpose.msra.mxu0 0
    %1651 = vmatprep.subr.bf16.mxu0 0
    %1652 = vmatpush1.bf16.xpose.msra.mxu0 0
    %1653 = vmatprep.subr.bf16.mxu0 0
    %1654 = vmatpush1.bf16.xpose.msra.mxu0 0
    %1655 = vmatprep.subr.bf16.mxu0 0
    %1656 = vmatpush1.bf16.xpose.msra.mxu0 0
    %1657 = vmatprep.subr.bf16.mxu0 0
    %1658 = vmatpush1.bf16.xpose.msra.mxu0 0
    %1659 = vmatprep.subr.bf16.mxu0 0
    %1660 = vmatpush1.bf16.xpose.msra.mxu0 %v1643
    %1661 = vmatprep.subr.bf16.mxu0 0
    %1662 = vmatpush2.bf16.xpose.msra.mxu0 0
    %1663 = vmatprep.subr.bf16.mxu0 0
    %1664 = vmatpush2.bf16.xpose.msra.mxu0 0
    %1665 = vmatprep.subr.bf16.mxu0 0
    %1666 = vmatpush2.bf16.xpose.msra.mxu0 0
    %1667 = vmatprep.subr.bf16.mxu0 0
    %1668 = vmatpush2.bf16.xpose.msra.mxu0 0
    %1669 = vmatprep.subr.bf16.mxu0 0
    %1670 = vmatpush2.bf16.xpose.msra.mxu0 0
    %1671 = vmatprep.subr.bf16.mxu0 0
    %1672 = vmatpush2.bf16.xpose.msra.mxu0 0
    %1673 = vmatprep.subr.bf16.mxu0 0
    %1674 = vmatpush2.bf16.xpose.msra.mxu0 0
    %1675 = vmatprep.subr.bf16.mxu0 0
    %1676 = vmatpush2.bf16.xpose.msra.mxu0 0
    %1677 = vmatprep.mubr.bf16.mxu0 0
    %1678 = vmatmul.mubr.bf16.gmra.mxu0 %v1640
    %v1679 = vpop.f32.mrf.mxu0
    %v1680 = vadd.f32 0.0, %v1679
    %v1681 = vpop.f32.mrf.mxu0
    %v1682 = vpop.f32.mrf.mxu0
    %v1683 = vpop.f32.mrf.mxu0
    %1684 = vdwg.mxu0
    %v1685 = vmul.f32 %v1680, 0.25
    %v1686 = vsel %vm186, %v1685, -inf
    %v1687 = vsel %vm526, %v1686, -inf
    %1688 = vmax.xlane.f32.xlu0 %v1687
    %v1689 = vpop.xlane.xlu0 %1688
    %v1690 = vsub.f32 %v1686, %v1689
    %v1691 = vmul.f32 %v1690, 1.442695
    %v1692 = vpow.pop %v1691
    %v1693 = vsel %vm526, %v1692, 0.0
    %1694 = vadd.xlane.f32.xlu0 %v1693
    %v1695 = vpop.xlane.xlu0 %1694
    %v1696 = vpack.c.bf16 %v1692, %v1692
    %1698 = vrot.lane.b32.xlu0 %v1635, 32
    %v1699 = vpop.permute.xlu0 %1698
    %v1701 = vsel %vm526, %v1696, 0
    %v1704 = vsel %vm543, %v1699, 0
    %1706 = vmatprep.subr.bf16.mxu0 0
    %1707 = vmatpush1.bf16.msra.mxu0 0
    %1708 = vmatprep.subr.bf16.mxu0 0
    %1709 = vmatpush1.bf16.msra.mxu0 0
    %1710 = vmatprep.subr.bf16.mxu0 0
    %1711 = vmatpush1.bf16.msra.mxu0 0
    %1712 = vmatprep.subr.bf16.mxu0 0
    %1713 = vmatpush1.bf16.msra.mxu0 0
    %1714 = vmatprep.subr.bf16.mxu0 0
    %1715 = vmatpush1.bf16.msra.mxu0 0
    %1716 = vmatprep.subr.bf16.mxu0 0
    %1717 = vmatpush1.bf16.msra.mxu0 0
    %1718 = vmatprep.subr.bf16.mxu0 0
    %1719 = vmatpush1.bf16.msra.mxu0 0
    %1720 = vmatprep.subr.bf16.mxu0 0
    %1721 = vmatpush1.bf16.msra.mxu0 %v1704
    %1722 = vmatprep.subr.bf16.mxu0 0
    %1723 = vmatpush2.bf16.msra.mxu0 0
    %1724 = vmatprep.subr.bf16.mxu0 0
    %1725 = vmatpush2.bf16.msra.mxu0 0
    %1726 = vmatprep.subr.bf16.mxu0 0
    %1727 = vmatpush2.bf16.msra.mxu0 0
    %1728 = vmatprep.subr.bf16.mxu0 0
    %1729 = vmatpush2.bf16.msra.mxu0 0
    %1730 = vmatprep.subr.bf16.mxu0 0
    %1731 = vmatpush2.bf16.msra.mxu0 0
    %1732 = vmatprep.subr.bf16.mxu0 0
    %1733 = vmatpush2.bf16.msra.mxu0 0
    %1734 = vmatprep.subr.bf16.mxu0 0
    %1735 = vmatpush2.bf16.msra.mxu0 0
    %1736 = vmatprep.subr.bf16.mxu0 0
    %1737 = vmatpush2.bf16.msra.mxu0 0
    %1738 = vmatprep.mubr.bf16.mxu0 0
    %1739 = vmatmul.mubr.bf16.gmra.mxu0 %v1701
    %v1740 = vpop.f32.mrf.mxu0
    %v1741 = vadd.f32 0.0, %v1740
    %v1742 = vpop.f32.mrf.mxu0
    %v1743 = vpop.f32.mrf.mxu0
    %v1744 = vpop.f32.mrf.mxu0
    %1745 = vdwg.mxu0
    %v1746 = vrcp.pop %v1695
    %v1747 = vmul.f32 %v1741, %v1746
    %v1748 = vpack.c.bf16 %v1747, %v1747
    %1750 = vrot.lane.b32.xlu0 %v1633, 112
    %v1751 = vpop.permute.xlu0 %1750
    %v1753 = vsel %vm477, %v1751, 0
    %1755 = vmatprep.subr.bf16.mxu0 0
    %1756 = vmatpush1.bf16.xpose.msra.mxu0 0
    %1757 = vmatprep.subr.bf16.mxu0 0
    %1758 = vmatpush1.bf16.xpose.msra.mxu0 0
    %1759 = vmatprep.subr.bf16.mxu0 0
    %1760 = vmatpush1.bf16.xpose.msra.mxu0 0
    %1761 = vmatprep.subr.bf16.mxu0 0
    %1762 = vmatpush1.bf16.xpose.msra.mxu0 0
    %1763 = vmatprep.subr.bf16.mxu0 0
    %1764 = vmatpush1.bf16.xpose.msra.mxu0 0
    %1765 = vmatprep.subr.bf16.mxu0 0
    %1766 = vmatpush1.bf16.xpose.msra.mxu0 0
    %1767 = vmatprep.subr.bf16.mxu0 0
    %1768 = vmatpush1.bf16.xpose.msra.mxu0 0
    %1769 = vmatprep.subr.bf16.mxu0 0
    %1770 = vmatpush1.bf16.xpose.msra.mxu0 %v1643
    %1771 = vmatprep.subr.bf16.mxu0 0
    %1772 = vmatpush2.bf16.xpose.msra.mxu0 0
    %1773 = vmatprep.subr.bf16.mxu0 0
    %1774 = vmatpush2.bf16.xpose.msra.mxu0 0
    %1775 = vmatprep.subr.bf16.mxu0 0
    %1776 = vmatpush2.bf16.xpose.msra.mxu0 0
    %1777 = vmatprep.subr.bf16.mxu0 0
    %1778 = vmatpush2.bf16.xpose.msra.mxu0 0
    %1779 = vmatprep.subr.bf16.mxu0 0
    %1780 = vmatpush2.bf16.xpose.msra.mxu0 0
    %1781 = vmatprep.subr.bf16.mxu0 0
    %1782 = vmatpush2.bf16.xpose.msra.mxu0 0
    %1783 = vmatprep.subr.bf16.mxu0 0
    %1784 = vmatpush2.bf16.xpose.msra.mxu0 0
    %1785 = vmatprep.subr.bf16.mxu0 0
    %1786 = vmatpush2.bf16.xpose.msra.mxu0 0
    %1787 = vmatprep.mubr.bf16.mxu0 0
    %1788 = vmatmul.mubr.bf16.gmra.mxu0 %v1753
    %v1789 = vpop.f32.mrf.mxu0
    %v1790 = vadd.f32 0.0, %v1789
    %v1791 = vpop.f32.mrf.mxu0
    %v1792 = vpop.f32.mrf.mxu0
    %v1793 = vpop.f32.mrf.mxu0
    %1794 = vdwg.mxu0
    %v1795 = vmul.f32 %v1790, 0.25
    %v1796 = vsel %vm186, %v1795, -inf
    %v1797 = vsel %vm526, %v1796, -inf
    %1798 = vmax.xlane.f32.xlu0 %v1797
    %v1799 = vpop.xlane.xlu0 %1798
    %v1800 = vsub.f32 %v1796, %v1799
    %v1801 = vmul.f32 %v1800, 1.442695
    %v1802 = vpow.pop %v1801
    %v1803 = vsel %vm526, %v1802, 0.0
    %1804 = vadd.xlane.f32.xlu0 %v1803
    %v1805 = vpop.xlane.xlu0 %1804
    %v1806 = vpack.c.bf16 %v1802, %v1802
    %v1808 = vsel %vm526, %v1806, 0
    %1810 = vmatprep.subr.bf16.mxu0 0
    %1811 = vmatpush1.bf16.msra.mxu0 0
    %1812 = vmatprep.subr.bf16.mxu0 0
    %1813 = vmatpush1.bf16.msra.mxu0 0
    %1814 = vmatprep.subr.bf16.mxu0 0
    %1815 = vmatpush1.bf16.msra.mxu0 0
    %1816 = vmatprep.subr.bf16.mxu0 0
    %1817 = vmatpush1.bf16.msra.mxu0 0
    %1818 = vmatprep.subr.bf16.mxu0 0
    %1819 = vmatpush1.bf16.msra.mxu0 0
    %1820 = vmatprep.subr.bf16.mxu0 0
    %1821 = vmatpush1.bf16.msra.mxu0 0
    %1822 = vmatprep.subr.bf16.mxu0 0
    %1823 = vmatpush1.bf16.msra.mxu0 0
    %1824 = vmatprep.subr.bf16.mxu0 0
    %1825 = vmatpush1.bf16.msra.mxu0 %v1704
    %1826 = vmatprep.subr.bf16.mxu0 0
    %1827 = vmatpush2.bf16.msra.mxu0 0
    %1828 = vmatprep.subr.bf16.mxu0 0
    %1829 = vmatpush2.bf16.msra.mxu0 0
    %1830 = vmatprep.subr.bf16.mxu0 0
    %1831 = vmatpush2.bf16.msra.mxu0 0
    %1832 = vmatprep.subr.bf16.mxu0 0
    %1833 = vmatpush2.bf16.msra.mxu0 0
    %1834 = vmatprep.subr.bf16.mxu0 0
    %1835 = vmatpush2.bf16.msra.mxu0 0
    %1836 = vmatprep.subr.bf16.mxu0 0
    %1837 = vmatpush2.bf16.msra.mxu0 0
    %1838 = vmatprep.subr.bf16.mxu0 0
    %1839 = vmatpush2.bf16.msra.mxu0 0
    %1840 = vmatprep.subr.bf16.mxu0 0
    %1841 = vmatpush2.bf16.msra.mxu0 0
    %1842 = vmatprep.mubr.bf16.mxu0 0
    %1843 = vmatmul.mubr.bf16.gmra.mxu0 %v1808
    %v1844 = vpop.f32.mrf.mxu0
    %v1845 = vadd.f32 0.0, %v1844
    %v1846 = vpop.f32.mrf.mxu0
    %v1847 = vpop.f32.mrf.mxu0
    %v1848 = vpop.f32.mrf.mxu0
    %1849 = vdwg.mxu0
    %v1850 = vrcp.pop %v1805
    %v1851 = vmul.f32 %v1845, %v1850
    %v1852 = vpack.c.bf16 %v1851, %v1851
    %v1855 = vunpack.c.l.b16 %v1627
    %v1856 = vunpack.c.l.b16 %v1628
    %v1857 = vpack.c.b16 %v1856, %v1855
    %v1860 = vsel %vm477, %v1852, 0
    %1862 = vmatprep.subr.bf16.mxu0 0
    %1863 = vmatpush1.bf16.msra.mxu0 0
    %1864 = vmatprep.subr.bf16.mxu0 0
    %1865 = vmatpush1.bf16.msra.mxu0 0
    %1866 = vmatprep.subr.bf16.mxu0 0
    %1867 = vmatpush1.bf16.msra.mxu0 0
    %1868 = vmatprep.subr.bf16.mxu0 0
    %1869 = vmatpush1.bf16.msra.mxu0 0
    %1870 = vmatprep.subr.bf16.mxu0 0
    %1871 = vmatpush1.bf16.msra.mxu0 0
    %1872 = vmatprep.subr.bf16.mxu0 0
    %1873 = vmatpush1.bf16.msra.mxu0 0
    %1874 = vmatprep.subr.bf16.mxu0 0
    %1875 = vmatpush1.bf16.msra.mxu0 0
    %1876 = vmatprep.subr.bf16.mxu0 0
    %1877 = vmatpush1.bf16.msra.mxu0 %v1857
    %1878 = vmatprep.subr.bf16.mxu0 0
    %1879 = vmatpush2.bf16.msra.mxu0 0
    %1880 = vmatprep.subr.bf16.mxu0 0
    %1881 = vmatpush2.bf16.msra.mxu0 0
    %1882 = vmatprep.subr.bf16.mxu0 0
    %1883 = vmatpush2.bf16.msra.mxu0 0
    %1884 = vmatprep.subr.bf16.mxu0 0
    %1885 = vmatpush2.bf16.msra.mxu0 0
    %1886 = vmatprep.subr.bf16.mxu0 0
    %1887 = vmatpush2.bf16.msra.mxu0 0
    %1888 = vmatprep.subr.bf16.mxu0 0
    %1889 = vmatpush2.bf16.msra.mxu0 0
    %1890 = vmatprep.subr.bf16.mxu0 0
    %1891 = vmatpush2.bf16.msra.mxu0 0
    %1892 = vmatprep.subr.bf16.mxu0 0
    %1893 = vmatpush2.bf16.msra.mxu0 0
    %1894 = vmatprep.mubr.bf16.mxu0 0
    %1895 = vmatmul.mubr.bf16.gmra.mxu0 %v1860
    %v1896 = vpop.f32.mrf.mxu0
    %v1897 = vadd.f32 0.0, %v1896
    %v1898 = vpop.f32.mrf.mxu0
    %v1899 = vpop.f32.mrf.mxu0
    %v1900 = vpop.f32.mrf.mxu0
    %1901 = vdwg.mxu0
    %v1904 = vunpack.c.l.b16 %v1625
    %v1905 = vunpack.c.l.b16 %v1626
    %v1906 = vpack.c.b16 %v1905, %v1904
    %v1909 = vsel %vm477, %v1748, 0
    %1911 = vmatprep.subr.bf16.mxu0 0
    %1912 = vmatpush1.bf16.msra.mxu0 0
    %1913 = vmatprep.subr.bf16.mxu0 0
    %1914 = vmatpush1.bf16.msra.mxu0 0
    %1915 = vmatprep.subr.bf16.mxu0 0
    %1916 = vmatpush1.bf16.msra.mxu0 0
    %1917 = vmatprep.subr.bf16.mxu0 0
    %1918 = vmatpush1.bf16.msra.mxu0 0
    %1919 = vmatprep.subr.bf16.mxu0 0
    %1920 = vmatpush1.bf16.msra.mxu0 0
    %1921 = vmatprep.subr.bf16.mxu0 0
    %1922 = vmatpush1.bf16.msra.mxu0 0
    %1923 = vmatprep.subr.bf16.mxu0 0
    %1924 = vmatpush1.bf16.msra.mxu0 0
    %1925 = vmatprep.subr.bf16.mxu0 0
    %1926 = vmatpush1.bf16.msra.mxu0 %v1906
    %1927 = vmatprep.subr.bf16.mxu0 0
    %1928 = vmatpush2.bf16.msra.mxu0 0
    %1929 = vmatprep.subr.bf16.mxu0 0
    %1930 = vmatpush2.bf16.msra.mxu0 0
    %1931 = vmatprep.subr.bf16.mxu0 0
    %1932 = vmatpush2.bf16.msra.mxu0 0
    %1933 = vmatprep.subr.bf16.mxu0 0
    %1934 = vmatpush2.bf16.msra.mxu0 0
    %1935 = vmatprep.subr.bf16.mxu0 0
    %1936 = vmatpush2.bf16.msra.mxu0 0
    %1937 = vmatprep.subr.bf16.mxu0 0
    %1938 = vmatpush2.bf16.msra.mxu0 0
    %1939 = vmatprep.subr.bf16.mxu0 0
    %1940 = vmatpush2.bf16.msra.mxu0 0
    %1941 = vmatprep.subr.bf16.mxu0 0
    %1942 = vmatpush2.bf16.msra.mxu0 0
    %1943 = vmatprep.mubr.bf16.mxu0 0
    %1944 = vmatmul.mubr.bf16.gmra.mxu0 %v1909
    %v1945 = vpop.f32.mrf.mxu0
    %v1946 = vadd.f32 %v1897, %v1945
    %v1947 = vpop.f32.mrf.mxu0
    %v1948 = vpop.f32.mrf.mxu0
    %v1949 = vpop.f32.mrf.mxu0
    %1950 = vdwg.mxu0
    %1951 = vrot.lane.b32.xlu0 %v1633, 96
    %v1952 = vpop.permute.xlu0 %1951
    %1953 = vrot.lane.b32.xlu0 %v1634, 48
    %v1954 = vpop.permute.xlu0 %1953
    %v1956 = vsel %vm477, %v1952, 0
    %v1959 = vsel %vm477, %v1954, 0
    %1961 = vmatprep.subr.bf16.mxu0 0
    %1962 = vmatpush1.bf16.xpose.msra.mxu0 0
    %1963 = vmatprep.subr.bf16.mxu0 0
    %1964 = vmatpush1.bf16.xpose.msra.mxu0 0
    %1965 = vmatprep.subr.bf16.mxu0 0
    %1966 = vmatpush1.bf16.xpose.msra.mxu0 0
    %1967 = vmatprep.subr.bf16.mxu0 0
    %1968 = vmatpush1.bf16.xpose.msra.mxu0 0
    %1969 = vmatprep.subr.bf16.mxu0 0
    %1970 = vmatpush1.bf16.xpose.msra.mxu0 0
    %1971 = vmatprep.subr.bf16.mxu0 0
    %1972 = vmatpush1.bf16.xpose.msra.mxu0 0
    %1973 = vmatprep.subr.bf16.mxu0 0
    %1974 = vmatpush1.bf16.xpose.msra.mxu0 0
    %1975 = vmatprep.subr.bf16.mxu0 0
    %1976 = vmatpush1.bf16.xpose.msra.mxu0 %v1959
    %1977 = vmatprep.subr.bf16.mxu0 0
    %1978 = vmatpush2.bf16.xpose.msra.mxu0 0
    %1979 = vmatprep.subr.bf16.mxu0 0
    %1980 = vmatpush2.bf16.xpose.msra.mxu0 0
    %1981 = vmatprep.subr.bf16.mxu0 0
    %1982 = vmatpush2.bf16.xpose.msra.mxu0 0
    %1983 = vmatprep.subr.bf16.mxu0 0
    %1984 = vmatpush2.bf16.xpose.msra.mxu0 0
    %1985 = vmatprep.subr.bf16.mxu0 0
    %1986 = vmatpush2.bf16.xpose.msra.mxu0 0
    %1987 = vmatprep.subr.bf16.mxu0 0
    %1988 = vmatpush2.bf16.xpose.msra.mxu0 0
    %1989 = vmatprep.subr.bf16.mxu0 0
    %1990 = vmatpush2.bf16.xpose.msra.mxu0 0
    %1991 = vmatprep.subr.bf16.mxu0 0
    %1992 = vmatpush2.bf16.xpose.msra.mxu0 0
    %1993 = vmatprep.mubr.bf16.mxu0 0
    %1994 = vmatmul.mubr.bf16.gmra.mxu0 %v1956
    %v1995 = vpop.f32.mrf.mxu0
    %v1996 = vadd.f32 0.0, %v1995
    %v1997 = vpop.f32.mrf.mxu0
    %v1998 = vpop.f32.mrf.mxu0
    %v1999 = vpop.f32.mrf.mxu0
    %2000 = vdwg.mxu0
    %v2001 = vmul.f32 %v1996, 0.25
    %v2002 = vsel %vm186, %v2001, -inf
    %v2003 = vsel %vm526, %v2002, -inf
    %2004 = vmax.xlane.f32.xlu0 %v2003
    %v2005 = vpop.xlane.xlu0 %2004
    %v2006 = vsub.f32 %v2002, %v2005
    %v2007 = vmul.f32 %v2006, 1.442695
    %v2008 = vpow.pop %v2007
    %v2009 = vsel %vm526, %v2008, 0.0
    %2010 = vadd.xlane.f32.xlu0 %v2009
    %v2011 = vpop.xlane.xlu0 %2010
    %v2012 = vpack.c.bf16 %v2008, %v2008
    %2013 = vrot.lane.b32.xlu0 %v1635, 16
    %v2014 = vpop.permute.xlu0 %2013
    %v2016 = vsel %vm526, %v2012, 0
    %v2019 = vsel %vm543, %v2014, 0
    %2021 = vmatprep.subr.bf16.mxu0 0
    %2022 = vmatpush1.bf16.msra.mxu0 0
    %2023 = vmatprep.subr.bf16.mxu0 0
    %2024 = vmatpush1.bf16.msra.mxu0 0
    %2025 = vmatprep.subr.bf16.mxu0 0
    %2026 = vmatpush1.bf16.msra.mxu0 0
    %2027 = vmatprep.subr.bf16.mxu0 0
    %2028 = vmatpush1.bf16.msra.mxu0 0
    %2029 = vmatprep.subr.bf16.mxu0 0
    %2030 = vmatpush1.bf16.msra.mxu0 0
    %2031 = vmatprep.subr.bf16.mxu0 0
    %2032 = vmatpush1.bf16.msra.mxu0 0
    %2033 = vmatprep.subr.bf16.mxu0 0
    %2034 = vmatpush1.bf16.msra.mxu0 0
    %2035 = vmatprep.subr.bf16.mxu0 0
    %2036 = vmatpush1.bf16.msra.mxu0 %v2019
    %2037 = vmatprep.subr.bf16.mxu0 0
    %2038 = vmatpush2.bf16.msra.mxu0 0
    %2039 = vmatprep.subr.bf16.mxu0 0
    %2040 = vmatpush2.bf16.msra.mxu0 0
    %2041 = vmatprep.subr.bf16.mxu0 0
    %2042 = vmatpush2.bf16.msra.mxu0 0
    %2043 = vmatprep.subr.bf16.mxu0 0
    %2044 = vmatpush2.bf16.msra.mxu0 0
    %2045 = vmatprep.subr.bf16.mxu0 0
    %2046 = vmatpush2.bf16.msra.mxu0 0
    %2047 = vmatprep.subr.bf16.mxu0 0
    %2048 = vmatpush2.bf16.msra.mxu0 0
    %2049 = vmatprep.subr.bf16.mxu0 0
    %2050 = vmatpush2.bf16.msra.mxu0 0
    %2051 = vmatprep.subr.bf16.mxu0 0
    %2052 = vmatpush2.bf16.msra.mxu0 0
    %2053 = vmatprep.mubr.bf16.mxu0 0
    %2054 = vmatmul.mubr.bf16.gmra.mxu0 %v2016
    %v2055 = vpop.f32.mrf.mxu0
    %v2056 = vadd.f32 0.0, %v2055
    %v2057 = vpop.f32.mrf.mxu0
    %v2058 = vpop.f32.mrf.mxu0
    %v2059 = vpop.f32.mrf.mxu0
    %2060 = vdwg.mxu0
    %v2061 = vrcp.pop %v2011
    %v2062 = vmul.f32 %v2056, %v2061
    %v2063 = vpack.c.bf16 %v2062, %v2062
    %v2066 = vunpack.c.l.b16 %v1629
    %v2067 = vunpack.c.l.b16 %v1630
    %v2068 = vpack.c.b16 %v2067, %v2066
    %v2071 = vsel %vm477, %v2063, 0
    %2073 = vmatprep.subr.bf16.mxu0 0
    %2074 = vmatpush1.bf16.msra.mxu0 0
    %2075 = vmatprep.subr.bf16.mxu0 0
    %2076 = vmatpush1.bf16.msra.mxu0 0
    %2077 = vmatprep.subr.bf16.mxu0 0
    %2078 = vmatpush1.bf16.msra.mxu0 0
    %2079 = vmatprep.subr.bf16.mxu0 0
    %2080 = vmatpush1.bf16.msra.mxu0 0
    %2081 = vmatprep.subr.bf16.mxu0 0
    %2082 = vmatpush1.bf16.msra.mxu0 0
    %2083 = vmatprep.subr.bf16.mxu0 0
    %2084 = vmatpush1.bf16.msra.mxu0 0
    %2085 = vmatprep.subr.bf16.mxu0 0
    %2086 = vmatpush1.bf16.msra.mxu0 0
    %2087 = vmatprep.subr.bf16.mxu0 0
    %2088 = vmatpush1.bf16.msra.mxu0 %v2068
    %2089 = vmatprep.subr.bf16.mxu0 0
    %2090 = vmatpush2.bf16.msra.mxu0 0
    %2091 = vmatprep.subr.bf16.mxu0 0
    %2092 = vmatpush2.bf16.msra.mxu0 0
    %2093 = vmatprep.subr.bf16.mxu0 0
    %2094 = vmatpush2.bf16.msra.mxu0 0
    %2095 = vmatprep.subr.bf16.mxu0 0
    %2096 = vmatpush2.bf16.msra.mxu0 0
    %2097 = vmatprep.subr.bf16.mxu0 0
    %2098 = vmatpush2.bf16.msra.mxu0 0
    %2099 = vmatprep.subr.bf16.mxu0 0
    %2100 = vmatpush2.bf16.msra.mxu0 0
    %2101 = vmatprep.subr.bf16.mxu0 0
    %2102 = vmatpush2.bf16.msra.mxu0 0
    %2103 = vmatprep.subr.bf16.mxu0 0
    %2104 = vmatpush2.bf16.msra.mxu0 0
    %2105 = vmatprep.mubr.bf16.mxu0 0
    %2106 = vmatmul.mubr.bf16.gmra.mxu0 %v2071
    %v2107 = vpop.f32.mrf.mxu0
    %v2108 = vadd.f32 0.0, %v2107
    %v2109 = vpop.f32.mrf.mxu0
    %v2110 = vpop.f32.mrf.mxu0
    %v2111 = vpop.f32.mrf.mxu0
    %2112 = vdwg.mxu0
    %v2113 = vadd.f32 %v1946, %v2108
    %2114 = vrot.lane.b32.xlu0 %v1633, 80
    %v2115 = vpop.permute.xlu0 %2114
    %v2117 = vsel %vm477, %v2115, 0
    %2119 = vmatprep.subr.bf16.mxu0 0
    %2120 = vmatpush1.bf16.xpose.msra.mxu0 0
    %2121 = vmatprep.subr.bf16.mxu0 0
    %2122 = vmatpush1.bf16.xpose.msra.mxu0 0
    %2123 = vmatprep.subr.bf16.mxu0 0
    %2124 = vmatpush1.bf16.xpose.msra.mxu0 0
    %2125 = vmatprep.subr.bf16.mxu0 0
    %2126 = vmatpush1.bf16.xpose.msra.mxu0 0
    %2127 = vmatprep.subr.bf16.mxu0 0
    %2128 = vmatpush1.bf16.xpose.msra.mxu0 0
    %2129 = vmatprep.subr.bf16.mxu0 0
    %2130 = vmatpush1.bf16.xpose.msra.mxu0 0
    %2131 = vmatprep.subr.bf16.mxu0 0
    %2132 = vmatpush1.bf16.xpose.msra.mxu0 0
    %2133 = vmatprep.subr.bf16.mxu0 0
    %2134 = vmatpush1.bf16.xpose.msra.mxu0 %v1959
    %2135 = vmatprep.subr.bf16.mxu0 0
    %2136 = vmatpush2.bf16.xpose.msra.mxu0 0
    %2137 = vmatprep.subr.bf16.mxu0 0
    %2138 = vmatpush2.bf16.xpose.msra.mxu0 0
    %2139 = vmatprep.subr.bf16.mxu0 0
    %2140 = vmatpush2.bf16.xpose.msra.mxu0 0
    %2141 = vmatprep.subr.bf16.mxu0 0
    %2142 = vmatpush2.bf16.xpose.msra.mxu0 0
    %2143 = vmatprep.subr.bf16.mxu0 0
    %2144 = vmatpush2.bf16.xpose.msra.mxu0 0
    %2145 = vmatprep.subr.bf16.mxu0 0
    %2146 = vmatpush2.bf16.xpose.msra.mxu0 0
    %2147 = vmatprep.subr.bf16.mxu0 0
    %2148 = vmatpush2.bf16.xpose.msra.mxu0 0
    %2149 = vmatprep.subr.bf16.mxu0 0
    %2150 = vmatpush2.bf16.xpose.msra.mxu0 0
    %2151 = vmatprep.mubr.bf16.mxu0 0
    %2152 = vmatmul.mubr.bf16.gmra.mxu0 %v2117
    %v2153 = vpop.f32.mrf.mxu0
    %v2154 = vadd.f32 0.0, %v2153
    %v2155 = vpop.f32.mrf.mxu0
    %v2156 = vpop.f32.mrf.mxu0
    %v2157 = vpop.f32.mrf.mxu0
    %2158 = vdwg.mxu0
    %v2159 = vmul.f32 %v2154, 0.25
    %v2160 = vsel %vm186, %v2159, -inf
    %v2161 = vsel %vm526, %v2160, -inf
    %2162 = vmax.xlane.f32.xlu0 %v2161
    %v2163 = vpop.xlane.xlu0 %2162
    %v2164 = vsub.f32 %v2160, %v2163
    %v2165 = vmul.f32 %v2164, 1.442695
    %v2166 = vpow.pop %v2165
    %v2167 = vsel %vm526, %v2166, 0.0
    %2168 = vadd.xlane.f32.xlu0 %v2167
    %v2169 = vpop.xlane.xlu0 %2168
    %v2170 = vpack.c.bf16 %v2166, %v2166
    %v2172 = vsel %vm526, %v2170, 0
    %2174 = vmatprep.subr.bf16.mxu0 0
    %2175 = vmatpush1.bf16.msra.mxu0 0
    %2176 = vmatprep.subr.bf16.mxu0 0
    %2177 = vmatpush1.bf16.msra.mxu0 0
    %2178 = vmatprep.subr.bf16.mxu0 0
    %2179 = vmatpush1.bf16.msra.mxu0 0
    %2180 = vmatprep.subr.bf16.mxu0 0
    %2181 = vmatpush1.bf16.msra.mxu0 0
    %2182 = vmatprep.subr.bf16.mxu0 0
    %2183 = vmatpush1.bf16.msra.mxu0 0
    %2184 = vmatprep.subr.bf16.mxu0 0
    %2185 = vmatpush1.bf16.msra.mxu0 0
    %2186 = vmatprep.subr.bf16.mxu0 0
    %2187 = vmatpush1.bf16.msra.mxu0 0
    %2188 = vmatprep.subr.bf16.mxu0 0
    %2189 = vmatpush1.bf16.msra.mxu0 %v2019
    %2190 = vmatprep.subr.bf16.mxu0 0
    %2191 = vmatpush2.bf16.msra.mxu0 0
    %2192 = vmatprep.subr.bf16.mxu0 0
    %2193 = vmatpush2.bf16.msra.mxu0 0
    %2194 = vmatprep.subr.bf16.mxu0 0
    %2195 = vmatpush2.bf16.msra.mxu0 0
    %2196 = vmatprep.subr.bf16.mxu0 0
    %2197 = vmatpush2.bf16.msra.mxu0 0
    %2198 = vmatprep.subr.bf16.mxu0 0
    %2199 = vmatpush2.bf16.msra.mxu0 0
    %2200 = vmatprep.subr.bf16.mxu0 0
    %2201 = vmatpush2.bf16.msra.mxu0 0
    %2202 = vmatprep.subr.bf16.mxu0 0
    %2203 = vmatpush2.bf16.msra.mxu0 0
    %2204 = vmatprep.subr.bf16.mxu0 0
    %2205 = vmatpush2.bf16.msra.mxu0 0
    %2206 = vmatprep.mubr.bf16.mxu0 0
    %2207 = vmatmul.mubr.bf16.gmra.mxu0 %v2172
    %v2208 = vpop.f32.mrf.mxu0
    %v2209 = vadd.f32 0.0, %v2208
    %v2210 = vpop.f32.mrf.mxu0
    %v2211 = vpop.f32.mrf.mxu0
    %v2212 = vpop.f32.mrf.mxu0
    %2213 = vdwg.mxu0
    %v2214 = vrcp.pop %v2169
    %v2215 = vmul.f32 %v2209, %v2214
    %v2216 = vpack.c.bf16 %v2215, %v2215
    %v2219 = vunpack.c.l.b16 %v1631
    %v2220 = vunpack.c.l.b16 %v1632
    %v2221 = vpack.c.b16 %v2220, %v2219
    %v2224 = vsel %vm477, %v2216, 0
    %2226 = vmatprep.subr.bf16.mxu0 0
    %2227 = vmatpush1.bf16.msra.mxu0 0
    %2228 = vmatprep.subr.bf16.mxu0 0
    %2229 = vmatpush1.bf16.msra.mxu0 0
    %2230 = vmatprep.subr.bf16.mxu0 0
    %2231 = vmatpush1.bf16.msra.mxu0 0
    %2232 = vmatprep.subr.bf16.mxu0 0
    %2233 = vmatpush1.bf16.msra.mxu0 0
    %2234 = vmatprep.subr.bf16.mxu0 0
    %2235 = vmatpush1.bf16.msra.mxu0 0
    %2236 = vmatprep.subr.bf16.mxu0 0
    %2237 = vmatpush1.bf16.msra.mxu0 0
    %2238 = vmatprep.subr.bf16.mxu0 0
    %2239 = vmatpush1.bf16.msra.mxu0 0
    %2240 = vmatprep.subr.bf16.mxu0 0
    %2241 = vmatpush1.bf16.msra.mxu0 %v2221
    %2242 = vmatprep.subr.bf16.mxu0 0
    %2243 = vmatpush2.bf16.msra.mxu0 0
    %2244 = vmatprep.subr.bf16.mxu0 0
    %2245 = vmatpush2.bf16.msra.mxu0 0
    %2246 = vmatprep.subr.bf16.mxu0 0
    %2247 = vmatpush2.bf16.msra.mxu0 0
    %2248 = vmatprep.subr.bf16.mxu0 0
    %2249 = vmatpush2.bf16.msra.mxu0 0
    %2250 = vmatprep.subr.bf16.mxu0 0
    %2251 = vmatpush2.bf16.msra.mxu0 0
    %2252 = vmatprep.subr.bf16.mxu0 0
    %2253 = vmatpush2.bf16.msra.mxu0 0
    %2254 = vmatprep.subr.bf16.mxu0 0
    %2255 = vmatpush2.bf16.msra.mxu0 0
    %2256 = vmatprep.subr.bf16.mxu0 0
    %2257 = vmatpush2.bf16.msra.mxu0 0
    %2258 = vmatprep.mubr.bf16.mxu0 0
    %2259 = vmatmul.mubr.bf16.gmra.mxu0 %v2224
    %v2260 = vpop.f32.mrf.mxu0
    %v2261 = vadd.f32 0.0, %v2260
    %v2262 = vpop.f32.mrf.mxu0
    %v2263 = vpop.f32.mrf.mxu0
    %v2264 = vpop.f32.mrf.mxu0
    %2265 = vdwg.mxu0
    %v2266 = vadd.f32 %v2113, %v2261
    %v2267 = vadd.f32 %v1350, %v2266
    %s2268 = scalar_lea.vmem %s9, 1
    %v2269 = vld [vmem:[%s2268] sm:$0x1]
    %v2271 = vlaneseq
    %v2272 = vshrl.u32 %v2271, 7
    %v2273 = vsub.s32 0, %v2272
    %v2274 = vrot.slane %v2269, %v2273
    %v2276 = vadd.f32 %v2267, %v2274
    %s2277 = scalar_lea.vmem %s4, 1
    %v2278 = vld [vmem:[%s2277] sm:$0x1]
    %s2279 = scalar_lea.vmem %s5, 1
    %v2280 = vld [vmem:[%s2279] sm:$0x1]
    %v2281 = vsel %vm189, %v2276, 0.0
    %2282 = vadd.xlane.f32.xlu0 %v2281
    %v2283 = vpop.xlane.xlu0 %2282
    %v2284 = vmul.f32 %v2283, %v193
    %v2285 = vsub.f32 %v2276, %v2284
    %v2286 = vmul.f32 %v2285, %v2285
    %v2287 = vsel %vm189, %v2286, 0.0
    %2288 = vadd.xlane.f32.xlu0 %v2287
    %v2289 = vpop.xlane.xlu0 %2288
    %v2290 = vmul.f32 %v2289, %v193
    %v2291 = vadd.f32 %v2290, 1e-05
    %v2292 = vrsqrt.pop %v2291
    %v2293 = vmul.f32 %v2285, %v2292
    %v2295 = vlaneseq
    %v2296 = vshrl.u32 %v2295, 7
    %v2297 = vsub.s32 0, %v2296
    %v2298 = vrot.slane %v2278, %v2297
    %v2300 = vmul.f32 %v2293, %v2298
    %v2302 = vlaneseq
    %v2303 = vshrl.u32 %v2302, 7
    %v2304 = vsub.s32 0, %v2303
    %v2305 = vrot.slane %v2280, %v2304
    %v2307 = vadd.f32 %v2300, %v2305
    %v2308 = vpack.c.bf16 %v2307, %v2307
    %s2309 = scalar_lea.vmem %s10, 32
    %v2310 = vld [vmem:[%s2309] sm:$0xf]
    %v2311 = vld [vmem:[%s2309 + $0x4] sm:$0xf]
    %v2312 = vld [vmem:[%s2309 + $0x8] sm:$0xf]
    %v2313 = vld [vmem:[%s2309 + $0xc] sm:$0xf]
    %v2314 = vld [vmem:[%s2309 + $0x10] sm:$0xf]
    %v2315 = vld [vmem:[%s2309 + $0x14] sm:$0xf]
    %v2316 = vld [vmem:[%s2309 + $0x18] sm:$0xf]
    %v2317 = vld [vmem:[%s2309 + $0x1c] sm:$0xf]
    %s2318 = scalar_lea.vmem %s11, 1
    %v2319 = vld [vmem:[%s2318] sm:$0x1]
    %v2321 = vlaneseq
    %v2322 = vshrl.u32 %v2321, 7
    %v2323 = vsub.s32 0, %v2322
    %v2324 = vrot.slane %v2319, %v2323
    %v2334 = vunpack.c.l.b16 %v2310
    %v2335 = vunpack.c.l.b16 %v2311
    %v2336 = vunpack.c.l.b16 %v2312
    %v2337 = vunpack.c.l.b16 %v2313
    %v2338 = vunpack.c.l.b16 %v2314
    %v2339 = vunpack.c.l.b16 %v2315
    %v2340 = vunpack.c.l.b16 %v2316
    %v2341 = vunpack.c.l.b16 %v2317
    %v2342 = vpack.c.b16 %v2335, %v2334
    %v2343 = vpack.c.b16 %v2337, %v2336
    %v2344 = vpack.c.b16 %v2339, %v2338
    %v2345 = vpack.c.b16 %v2341, %v2340
    %v2351 = vsel %vm189, %v2308, 0
    %2353 = vmatprep.subr.bf16.mxu0 0
    %2354 = vmatpush1.bf16.msra.mxu0 0
    %2355 = vmatprep.subr.bf16.mxu0 0
    %2356 = vmatpush1.bf16.msra.mxu0 0
    %2357 = vmatprep.subr.bf16.mxu0 0
    %2358 = vmatpush1.bf16.msra.mxu0 0
    %2359 = vmatprep.subr.bf16.mxu0 0
    %2360 = vmatpush1.bf16.msra.mxu0 0
    %2361 = vmatprep.subr.bf16.mxu0 0
    %2362 = vmatpush1.bf16.msra.mxu0 %v2345
    %2363 = vmatprep.subr.bf16.mxu0 0
    %2364 = vmatpush1.bf16.msra.mxu0 %v2344
    %2365 = vmatprep.subr.bf16.mxu0 0
    %2366 = vmatpush1.bf16.msra.mxu0 %v2343
    %2367 = vmatprep.subr.bf16.mxu0 0
    %2368 = vmatpush1.bf16.msra.mxu0 %v2342
    %2369 = vmatprep.subr.bf16.mxu0 0
    %2370 = vmatpush2.bf16.msra.mxu0 0
    %2371 = vmatprep.subr.bf16.mxu0 0
    %2372 = vmatpush2.bf16.msra.mxu0 0
    %2373 = vmatprep.subr.bf16.mxu0 0
    %2374 = vmatpush2.bf16.msra.mxu0 0
    %2375 = vmatprep.subr.bf16.mxu0 0
    %2376 = vmatpush2.bf16.msra.mxu0 0
    %2377 = vmatprep.subr.bf16.mxu0 0
    %2378 = vmatpush2.bf16.msra.mxu0 0
    %2379 = vmatprep.subr.bf16.mxu0 0
    %2380 = vmatpush2.bf16.msra.mxu0 0
    %2381 = vmatprep.subr.bf16.mxu0 0
    %2382 = vmatpush2.bf16.msra.mxu0 0
    %2383 = vmatprep.subr.bf16.mxu0 0
    %2384 = vmatpush2.bf16.msra.mxu0 0
    %2385 = vmatprep.mubr.bf16.mxu0 0
    %2386 = vmatmul.mubr.bf16.gmra.mxu0 %v2351
    %v2387 = vpop.f32.mrf.mxu0
    %v2388 = vadd.f32 %v2324, %v2387
    %v2389 = vpop.f32.mrf.mxu0
    %v2390 = vpop.f32.mrf.mxu0
    %v2391 = vpop.f32.mrf.mxu0
    %2392 = vdwg.mxu0
    %v2393 = vmul.f32 %v2388, 0.5
    %v2394 = vmul.f32 %v2388, 0.044715
    %v2395 = vmul.f32 %v2394, %v2388
    %v2396 = vmul.f32 %v2395, %v2388
    %v2397 = vadd.f32 %v2388, %v2396
    %v2398 = vmul.f32 %v2397, 0.7978846
    %v2399 = vtanh.pop %v2398
    %v2400 = vadd.f32 %v2399, 1.0
    %v2401 = vmul.f32 %v2393, %v2400
    %v2402 = vpack.c.bf16 %v2401, %v2401
    %s2403 = scalar_lea.vmem %s12, 64
    %v2404 = vld [vmem:[%s2403] sm:$0xf]
    %v2405 = vld [vmem:[%s2403 + $0x4] sm:$0xf]
    %v2406 = vld [vmem:[%s2403 + $0x8] sm:$0xf]
    %v2407 = vld [vmem:[%s2403 + $0xc] sm:$0xf]
    %v2408 = vld [vmem:[%s2403 + $0x10] sm:$0xf]
    %v2409 = vld [vmem:[%s2403 + $0x14] sm:$0xf]
    %v2410 = vld [vmem:[%s2403 + $0x18] sm:$0xf]
    %v2411 = vld [vmem:[%s2403 + $0x1c] sm:$0xf]
    %v2412 = vld [vmem:[%s2403 + $0x20] sm:$0xf]
    %v2413 = vld [vmem:[%s2403 + $0x24] sm:$0xf]
    %v2414 = vld [vmem:[%s2403 + $0x28] sm:$0xf]
    %v2415 = vld [vmem:[%s2403 + $0x2c] sm:$0xf]
    %v2416 = vld [vmem:[%s2403 + $0x30] sm:$0xf]
    %v2417 = vld [vmem:[%s2403 + $0x34] sm:$0xf]
    %v2418 = vld [vmem:[%s2403 + $0x38] sm:$0xf]
    %v2419 = vld [vmem:[%s2403 + $0x3c] sm:$0xf]
    %s2420 = scalar_lea.vmem %s13, 1
    %v2421 = vld [vmem:[%s2420] sm:$0x1]
    %v2423 = vlaneseq
    %v2424 = vshrl.u32 %v2423, 7
    %v2425 = vsub.s32 0, %v2424
    %v2426 = vrot.slane %v2421, %v2425
    %v2444 = vunpack.c.l.b16 %v2404
    %v2445 = vunpack.c.l.b16 %v2405
    %v2446 = vunpack.c.l.b16 %v2406
    %v2447 = vunpack.c.l.b16 %v2407
    %v2448 = vunpack.c.l.b16 %v2408
    %v2449 = vunpack.c.l.b16 %v2409
    %v2450 = vunpack.c.l.b16 %v2410
    %v2451 = vunpack.c.l.b16 %v2411
    %v2452 = vunpack.c.l.b16 %v2412
    %v2453 = vunpack.c.l.b16 %v2413
    %v2454 = vunpack.c.l.b16 %v2414
    %v2455 = vunpack.c.l.b16 %v2415
    %v2456 = vunpack.c.l.b16 %v2416
    %v2457 = vunpack.c.l.b16 %v2417
    %v2458 = vunpack.c.l.b16 %v2418
    %v2459 = vunpack.c.l.b16 %v2419
    %v2460 = vpack.c.b16 %v2445, %v2444
    %v2461 = vpack.c.b16 %v2447, %v2446
    %v2462 = vpack.c.b16 %v2449, %v2448
    %v2463 = vpack.c.b16 %v2451, %v2450
    %v2464 = vpack.c.b16 %v2453, %v2452
    %v2465 = vpack.c.b16 %v2455, %v2454
    %v2466 = vpack.c.b16 %v2457, %v2456
    %v2467 = vpack.c.b16 %v2459, %v2458
    %2476 = vmatprep.subr.bf16.mxu0 0
    %2477 = vmatpush1.bf16.msra.mxu0 %v2467
    %2478 = vmatprep.subr.bf16.mxu0 0
    %2479 = vmatpush1.bf16.msra.mxu0 %v2466
    %2480 = vmatprep.subr.bf16.mxu0 0
    %2481 = vmatpush1.bf16.msra.mxu0 %v2465
    %2482 = vmatprep.subr.bf16.mxu0 0
    %2483 = vmatpush1.bf16.msra.mxu0 %v2464
    %2484 = vmatprep.subr.bf16.mxu0 0
    %2485 = vmatpush1.bf16.msra.mxu0 %v2463
    %2486 = vmatprep.subr.bf16.mxu0 0
    %2487 = vmatpush1.bf16.msra.mxu0 %v2462
    %2488 = vmatprep.subr.bf16.mxu0 0
    %2489 = vmatpush1.bf16.msra.mxu0 %v2461
    %2490 = vmatprep.subr.bf16.mxu0 0
    %2491 = vmatpush1.bf16.msra.mxu0 %v2460
    %2492 = vmatprep.subr.bf16.mxu0 0
    %2493 = vmatpush2.bf16.msra.mxu0 0
    %2494 = vmatprep.subr.bf16.mxu0 0
    %2495 = vmatpush2.bf16.msra.mxu0 0
    %2496 = vmatprep.subr.bf16.mxu0 0
    %2497 = vmatpush2.bf16.msra.mxu0 0
    %2498 = vmatprep.subr.bf16.mxu0 0
    %2499 = vmatpush2.bf16.msra.mxu0 0
    %2500 = vmatprep.subr.bf16.mxu0 0
    %2501 = vmatpush2.bf16.msra.mxu0 0
    %2502 = vmatprep.subr.bf16.mxu0 0
    %2503 = vmatpush2.bf16.msra.mxu0 0
    %2504 = vmatprep.subr.bf16.mxu0 0
    %2505 = vmatpush2.bf16.msra.mxu0 0
    %2506 = vmatprep.subr.bf16.mxu0 0
    %2507 = vmatpush2.bf16.msra.mxu0 0
    %2508 = vmatprep.mubr.bf16.mxu0 0
    %2509 = vmatmul.mubr.bf16.gmra.mxu0 %v2402
    %v2510 = vpop.f32.mrf.mxu0
    %v2511 = vadd.f32 %v2426, %v2510
    %v2512 = vpop.f32.mrf.mxu0
    %v2513 = vpop.f32.mrf.mxu0
    %v2514 = vpop.f32.mrf.mxu0
    %2515 = vdwg.mxu0
    %v2516 = vadd.f32 %v2276, %v2511
    %v2517 = vld [vmem:[%s14] sm:$0x1]
    %v2518 = vld [vmem:[%s15] sm:$0x1]
    %v2519 = vsel %vm189, %v2516, 0.0
    %2520 = vadd.xlane.f32.xlu0 %v2519
    %v2521 = vpop.xlane.xlu0 %2520
    %v2522 = vmul.f32 %v2521, %v193
    %v2523 = vsub.f32 %v2516, %v2522
    %v2524 = vmul.f32 %v2523, %v2523
    %v2525 = vsel %vm189, %v2524, 0.0
    %2526 = vadd.xlane.f32.xlu0 %v2525
    %v2527 = vpop.xlane.xlu0 %2526
    %v2528 = vmul.f32 %v2527, %v193
    %v2529 = vadd.f32 %v2528, 1e-05
    %v2530 = vrsqrt.pop %v2529
    %v2531 = vmul.f32 %v2523, %v2530
    %v2533 = vlaneseq
    %v2534 = vshrl.u32 %v2533, 7
    %v2535 = vsub.s32 0, %v2534
    %v2536 = vrot.slane %v2517, %v2535
    %v2538 = vmul.f32 %v2531, %v2536
    %v2540 = vlaneseq
    %v2541 = vshrl.u32 %v2540, 7
    %v2542 = vsub.s32 0, %v2541
    %v2543 = vrot.slane %v2518, %v2542
    %v2545 = vadd.f32 %v2538, %v2543
    %2546 = vst.msk [vmem:[#allocation2] sm:$0xff] %vm189, %v2545
    // Predicated region
    $region90: #{tpu_custom_call.1} parent=1 // pred_check
      _
    $region91: #{tpu_custom_call.1} parent=1 // pred_check_branch
      %2548 = sbr.rel (0) target = $region93
    $region92: #{tpu_custom_call.1} parent=1 // pred_region
      %s2550 = ssub.s32 128, 128
      %2551 = vsyncadd [#allocation3], %s2550
      %s2553 = sshll.u32 [#allocation2], 4
      %s2554 = int_to_ptr.vmem [resolvable:$true] %s2553
      %2556 = dma.vmem_to_hbm [thread:$0]  %s2554, 128, %s22, [#allocation3]
    $region93: #{tpu_custom_call.1} parent=1 // pred_fallthru
      _
    // Predicated region
    $region94: #{tpu_custom_call.1} parent=1 // pred_check
      _
    $region95: #{tpu_custom_call.1} parent=1 // pred_check_branch
      %2558 = sbr.rel (0) target = $region97
    $region96: #{tpu_custom_call.1} parent=1 // pred_region
      %2559 = dma.done [#allocation3], 128
    $region97: #{tpu_custom_call.1} parent=1 // pred_fallthru
      _
    %2560 = vsyncpa [#allocation3], 1

</llo_original>
